<compile_context>
chip_gen: v7x
topology: tpu7x:2x2x1
jax: 0.10.0
libtpu: 0.0.40
codegen_flags: <defaults>
</compile_context>

<pallas_src>
import numpy as np
import jax
import jax.numpy as jnp
from jax import lax
from jax.experimental import pallas as pl
from jax.experimental.pallas import tpu as pltpu


# ------------------------ fixed geometry of the module -----------------------
# Linear(10816, 2) = 64 * 13 * 13 forces a 32x32 input.
H = W = 32
C0, C1, C2 = 3, 32, 64
HO1 = H - 2                     # 30   conv1 output spatial size
HO2 = HO1 - 2                   # 28   conv2 output spatial size
HP = (HO2 - 4) // 2 + 1         # 13   pooled spatial size
NCLS = 2

QH = HO2 // 2                   # 14   quadrant side
QS = QH * QH                    # 196  rows per quadrant
M = 4 * QS                      # 784  conv2 output positions (rows)
KIN = 5 * 5 * C0                # 75   im2col depth (union of the 9 conv1 taps)
KMID = 9 * C1                   # 288  conv1 "all taps" output width
UP = (HP - 1) * QH + HP         # 181  dense pooled rows (169 real, 12 zero-weighted)


# ------------------------------- fused kernel --------------------------------

def _fused_forward_kernel(xcol_ref, w1_ref, s1_ref, w2_ref, s2_ref, wl_ref, b_ref,
                          o_ref, y1_scr, y2_scr):
    """Whole forward for a small block of images; intermediates stay in VMEM."""
    n_img = xcol_ref.shape[0]
    for img in range(n_img):
        # conv1 + folded BN1 + ReLU: one matmul (M,75) @ (75,288), single store.
        y1_scr[...] = jnp.maximum(
            jnp.dot(xcol_ref[img], w1_ref[...],
                    preferred_element_type=jnp.float32) + s1_ref[...], 0.0)

        # conv2 + folded BN2 + ReLU: one matmul (M,288) @ (288,64), single store.
        y2_scr[...] = jnp.maximum(
            jnp.dot(y1_scr[...], w2_ref[...],
                    preferred_element_type=jnp.float32) + s2_ref[...], 0.0)

        # maxpool 4x4 stride 2: quadrant row order makes this 16 contiguous
        # shifted whole-tile maxes; the pooled value stays in registers.
        pooled = None
        for q in range(4):
            for off in (0, 1, QH, QH + 1):
                start = q * QS + off
                sl = y2_scr[start:start + UP, :]
                pooled = sl if pooled is None else jnp.maximum(pooled, sl)

        # linear (10816 -> 2): dense (181,64) weighted reduction per class
        # (weights were pre-scattered onto the pooled layout, zeros on pad rows).
        for o in range(NCLS):
            prod = pooled * wl_ref[o]
            s = jnp.sum(jnp.sum(prod, axis=0, keepdims=True),
                        axis=1, keepdims=True)
            o_ref[img, :, o:o + 1] = s + b_ref[:, o:o + 1]


# --------------------------------- wrapper -----------------------------------

def _pick_img_block(b):
    # Amortize per-grid-step overhead, but keep >=2 grid steps (v7x megacore).
    for cand in (4, 2):
        if b % cand == 0 and b // cand >= 2:
            return cand
    return 1


def model_forward(params, x_nchw):
    eps = 1e-5
    f32 = jnp.float32
    b = x_nchw.shape[0]

    # ---- host-side im2col (5x5x3 patches) in quadrant row order -------------
    xh = jnp.transpose(x_nchw, (0, 2, 3, 1)).astype(f32)          # (B,32,32,3)
    patches = [xh[:, dh:dh + HO2, dw:dw + HO2, :]                 # (B,28,28,3)
               for dh in range(5) for dw in range(5)]
    big = jnp.concatenate(patches, axis=-1)                       # (B,28,28,75)
    big = big.reshape(b, QH, 2, QH, 2, KIN)
    xcol = jnp.transpose(big, (0, 2, 4, 1, 3, 5)).reshape(b, M, KIN)

    # ---- conv1 weights (BN1 folded), expanded to all 9 tap placements -------
    scale1 = params["bn1_gamma"] / jnp.sqrt(params["bn1_var"] + eps)
    w1s = params["conv1_w"] * scale1[:, None, None, None]         # (32,3,3,3)
    w1t = jnp.transpose(w1s, (2, 3, 1, 0))                        # (kh,kw,c0,c1)
    blocks = []
    for di in range(3):
        for dj in range(3):
            blk = jnp.pad(w1t, ((di, 2 - di), (dj, 2 - dj), (0, 0), (0, 0)))
            blocks.append(blk.reshape(KIN, C1))                   # (75,32)
    w1cat = jnp.concatenate(blocks, axis=1)                       # (75,288)
    shift1 = params["bn1_beta"] + (params["conv1_b"] - params["bn1_mean"]) * scale1
    s1cat = jnp.tile(shift1, 9)[None, :]                          # (1,288)

    # ---- conv2 weights (BN2 folded) as a single (288,64) contraction --------
    scale2 = params["bn2_gamma"] / jnp.sqrt(params["bn2_var"] + eps)
    w2s = params["conv2_w"] * scale2[:, None, None, None]         # (64,32,3,3)
    w2cat = jnp.transpose(w2s, (2, 3, 1, 0)).reshape(KMID, C2)    # (288,64)
    shift2 = (params["bn2_beta"] +
              (params["conv2_b"] - params["bn2_mean"]) * scale2)[None, :]

    # ---- linear weight onto the dense pooled (181,64) layout ----------------
    lw = params["lin_w"].reshape(NCLS, C2, HP, HP)                # (o,c,r,s)
    lw = jnp.transpose(lw, (0, 2, 3, 1))                          # (o,r,s,c)
    lw = jnp.pad(lw, ((0, 0), (0, 0), (0, 1), (0, 0)))            # (o,13,14,c)
    wl = lw.reshape(NCLS, HP * QH, C2)[:, :UP, :]                 # (2,181,64)
    lb = params["lin_b"][None, :]                                 # (1,2)

    img = _pick_img_block(b)
    out = pl.pallas_call(
        _fused_forward_kernel,
        out_shape=jax.ShapeDtypeStruct((b, 1, NCLS), f32),
        grid=(b // img,),
        in_specs=[
            pl.BlockSpec((img, M, KIN), lambda i: (i, 0, 0)),
            pl.BlockSpec((KIN, KMID), lambda i: (0, 0)),
            pl.BlockSpec((1, KMID), lambda i: (0, 0)),
            pl.BlockSpec((KMID, C2), lambda i: (0, 0)),
            pl.BlockSpec((1, C2), lambda i: (0, 0)),
            pl.BlockSpec((NCLS, UP, C2), lambda i: (0, 0, 0)),
            pl.BlockSpec((1, NCLS), lambda i: (0, 0)),
        ],
        out_specs=pl.BlockSpec((img, 1, NCLS), lambda i: (i, 0, 0)),
        scratch_shapes=[
            pltpu.VMEM((M, KMID), f32),    # conv1 "all taps" output
            pltpu.VMEM((M, C2), f32),      # conv2 output (quadrant order)
        ],
        compiler_params=pltpu.CompilerParams(dimension_semantics=("parallel",)),
    )(xcol, w1cat, s1cat, w2cat, shift2, wl, lb)
    return out[:, 0, :]


# --------------------------- params / reference ------------------------------

def init_params(key):
    ks = jax.random.split(key, 14)
    f32 = jnp.float32
    p = {}
    p["conv1_w"] = 0.10 * jax.random.normal(ks[0], (32, 3, 3, 3), f32)
    p["conv1_b"] = 0.10 * jax.random.normal(ks[1], (32,), f32)
    p["bn1_gamma"] = 1.0 + 0.1 * jax.random.normal(ks[2], (32,), f32)
    p["bn1_beta"] = 0.1 * jax.random.normal(ks[3], (32,), f32)
    p["bn1_mean"] = 0.1 * jax.random.normal(ks[4], (32,), f32)
    p["bn1_var"] = 1.0 + 0.1 * jnp.abs(jax.random.normal(ks[5], (32,), f32))
    p["conv2_w"] = 0.05 * jax.random.normal(ks[6], (64, 32, 3, 3), f32)
    p["conv2_b"] = 0.05 * jax.random.normal(ks[7], (64,), f32)
    p["bn2_gamma"] = 1.0 + 0.1 * jax.random.normal(ks[8], (64,), f32)
    p["bn2_beta"] = 0.1 * jax.random.normal(ks[9], (64,), f32)
    p["bn2_mean"] = 0.1 * jax.random.normal(ks[10], (64,), f32)
    p["bn2_var"] = 1.0 + 0.1 * jnp.abs(jax.random.normal(ks[11], (64,), f32))
    p["lin_w"] = 0.01 * jax.random.normal(ks[12], (2, 10816), f32)
    p["lin_b"] = 0.01 * jax.random.normal(ks[13], (2,), f32)
    return p


def reference_forward(params, x_nchw):
    eps = 1e-5

    def bn(z, g, b_, m, v):
        inv = (g / jnp.sqrt(v + eps))[None, :, None, None]
        return (z - m[None, :, None, None]) * inv + b_[None, :, None, None]

    z = lax.conv_general_dilated(x_nchw, params["conv1_w"], (1, 1), "VALID",
                                 dimension_numbers=("NCHW", "OIHW", "NCHW"))
    z = z + params["conv1_b"][None, :, None, None]
    z = jnp.maximum(bn(z, params["bn1_gamma"], params["bn1_beta"],
                       params["bn1_mean"], params["bn1_var"]), 0.0)
    z = lax.conv_general_dilated(z, params["conv2_w"], (1, 1), "VALID",
                                 dimension_numbers=("NCHW", "OIHW", "NCHW"))
    z = z + params["conv2_b"][None, :, None, None]
    z = jnp.maximum(bn(z, params["bn2_gamma"], params["bn2_beta"],
                       params["bn2_mean"], params["bn2_var"]), 0.0)
    z = lax.reduce_window(z, -jnp.inf, lax.max, (1, 1, 4, 4), (1, 1, 2, 2), "VALID")
    f = z.reshape(z.shape[0], -1)
    return f @ params["lin_w"].T + params["lin_b"][None, :]


if __name__ == "__main__":
    key = jax.random.PRNGKey(0)
    kx, kp = jax.random.split(key)
    # CIFAR-10 sized input (the 10816-wide linear layer fixes spatial size to 32x32).
    x = jax.random.normal(kx, (2, 3, 32, 32), jnp.float32)   # NCHW
    params = init_params(kp)

    out = jax.jit(model_forward)(params, x)
    out = jax.block_until_ready(out)
    assert out.shape == (2, 2)

    ref = reference_forward(params, x)
    np.testing.assert_allclose(np.asarray(out), np.asarray(ref), rtol=2e-3, atol=2e-3)

    print("KERNEL_OK")
</pallas_src>

<mosaic_0001>
module attributes {stable_mosaic.version = 11 : i64} {
  func.func @_fused_forward_kernel(%arg0: i32, %arg1: memref<1x784x75xf32, #tpu.memory_space<vmem>>, %arg2: memref<75x288xf32, #tpu.memory_space<vmem>>, %arg3: memref<1x288xf32, #tpu.memory_space<vmem>>, %arg4: memref<288x64xf32, #tpu.memory_space<vmem>>, %arg5: memref<1x64xf32, #tpu.memory_space<vmem>>, %arg6: memref<2x181x64xf32, #tpu.memory_space<vmem>>, %arg7: memref<1x2xf32, #tpu.memory_space<vmem>>, %arg8: memref<1x1x2xf32, #tpu.memory_space<vmem>>, %arg9: memref<784x288xf32, #tpu.memory_space<vmem>>, %arg10: memref<784x64xf32, #tpu.memory_space<vmem>>) attributes {dimension_semantics = [#tpu.dimension_semantics<parallel>], iteration_bounds = array<i64: 2>, scalar_prefetch = 0 : i64, scratch_operands = 2 : i64, tpu.core_type = #tpu.core_type<tc>, window_params = [{transform_indices = @transform_0, window_bounds = array<i64: 1, 784, 75>}, {pipeline_mode = #tpu.pipeline_mode<synchronous>, transform_indices = @transform_1, window_bounds = array<i64: 75, 288>}, {pipeline_mode = #tpu.pipeline_mode<synchronous>, transform_indices = @transform_2, window_bounds = array<i64: 1, 288>}, {pipeline_mode = #tpu.pipeline_mode<synchronous>, transform_indices = @transform_3, window_bounds = array<i64: 288, 64>}, {pipeline_mode = #tpu.pipeline_mode<synchronous>, transform_indices = @transform_4, window_bounds = array<i64: 1, 64>}, {pipeline_mode = #tpu.pipeline_mode<synchronous>, transform_indices = @transform_5, window_bounds = array<i64: 2, 181, 64>}, {pipeline_mode = #tpu.pipeline_mode<synchronous>, transform_indices = @transform_6, window_bounds = array<i64: 1, 2>}, {transform_indices = @transform_7, window_bounds = array<i64: 1, 1, 2>}]} {
    %c0 = arith.constant 0 : index
    %c0_0 = arith.constant 0 : index
    %c0_1 = arith.constant 0 : index
    %0 = vector.load %arg1[%c0, %c0_0, %c0_1] : memref<1x784x75xf32, #tpu.memory_space<vmem>>, vector<1x784x75xf32>
    %1 = vector.shape_cast %0 : vector<1x784x75xf32> to vector<784x75xf32>
    %c0_2 = arith.constant 0 : index
    %c0_3 = arith.constant 0 : index
    %2 = vector.load %arg2[%c0_2, %c0_3] : memref<75x288xf32, #tpu.memory_space<vmem>>, vector<75x288xf32>
    %cst = arith.constant dense<0.000000e+00> : vector<784x288xf32>
    %3 = tpu.matmul %1, %2, %cst {dimension_numbers = #tpu.dot_dimension_numbers<[1], [0], [0], [1], [0, 0, 1, 1], [], []>} : vector<784x75xf32>, vector<75x288xf32>, vector<784x288xf32> -> vector<784x288xf32>
    %c0_4 = arith.constant 0 : index
    %c0_5 = arith.constant 0 : index
    %4 = vector.load %arg3[%c0_4, %c0_5] : memref<1x288xf32, #tpu.memory_space<vmem>>, vector<1x288xf32>
    %5 = vector.broadcast %4 : vector<1x288xf32> to vector<784x288xf32>
    %6 = arith.addf %3, %5 : vector<784x288xf32>
    %cst_6 = arith.constant 0.000000e+00 : f32
    %7 = vector.broadcast %cst_6 : f32 to vector<784x288xf32>
    %8 = arith.maximumf %6, %7 : vector<784x288xf32>
    %c0_7 = arith.constant 0 : index
    %c0_8 = arith.constant 0 : index
    %9 = vector.load %arg9[%c0_7, %c0_8] : memref<784x288xf32, #tpu.memory_space<vmem>>, vector<784x288xf32>
    tpu.vector_store %arg9[%c0_7, %c0_8], %8 {strides = array<i32>} : memref<784x288xf32, #tpu.memory_space<vmem>>, vector<784x288xf32>,
    %c0_9 = arith.constant 0 : index
    %c0_10 = arith.constant 0 : index
    %10 = vector.load %arg9[%c0_9, %c0_10] : memref<784x288xf32, #tpu.memory_space<vmem>>, vector<784x288xf32>
    %c0_11 = arith.constant 0 : index
    %c0_12 = arith.constant 0 : index
    %11 = vector.load %arg4[%c0_11, %c0_12] : memref<288x64xf32, #tpu.memory_space<vmem>>, vector<288x64xf32>
    %cst_13 = arith.constant dense<0.000000e+00> : vector<784x64xf32>
    %12 = tpu.matmul %10, %11, %cst_13 {dimension_numbers = #tpu.dot_dimension_numbers<[1], [0], [0], [1], [0, 0, 1, 1], [], []>} : vector<784x288xf32>, vector<288x64xf32>, vector<784x64xf32> -> vector<784x64xf32>
    %c0_14 = arith.constant 0 : index
    %c0_15 = arith.constant 0 : index
    %13 = vector.load %arg5[%c0_14, %c0_15] : memref<1x64xf32, #tpu.memory_space<vmem>>, vector<1x64xf32>
    %14 = vector.broadcast %13 : vector<1x64xf32> to vector<784x64xf32>
    %15 = arith.addf %12, %14 : vector<784x64xf32>
    %cst_16 = arith.constant 0.000000e+00 : f32
    %16 = vector.broadcast %cst_16 : f32 to vector<784x64xf32>
    %17 = arith.maximumf %15, %16 : vector<784x64xf32>
    %c0_17 = arith.constant 0 : index
    %c0_18 = arith.constant 0 : index
    %18 = vector.load %arg10[%c0_17, %c0_18] : memref<784x64xf32, #tpu.memory_space<vmem>>, vector<784x64xf32>
    tpu.vector_store %arg10[%c0_17, %c0_18], %17 {strides = array<i32>} : memref<784x64xf32, #tpu.memory_space<vmem>>, vector<784x64xf32>,
    %c0_19 = arith.constant 0 : index
    %c0_20 = arith.constant 0 : index
    %19 = vector.load %arg10[%c0_19, %c0_20] : memref<784x64xf32, #tpu.memory_space<vmem>>, vector<181x64xf32>
    %c1 = arith.constant 1 : index
    %c0_21 = arith.constant 0 : index
    %20 = vector.load %arg10[%c1, %c0_21] : memref<784x64xf32, #tpu.memory_space<vmem>>, vector<181x64xf32>
    %21 = arith.maximumf %19, %20 : vector<181x64xf32>
    %c14 = arith.constant 14 : index
    %c0_22 = arith.constant 0 : index
    %22 = vector.load %arg10[%c14, %c0_22] : memref<784x64xf32, #tpu.memory_space<vmem>>, vector<181x64xf32>
    %23 = arith.maximumf %21, %22 : vector<181x64xf32>
    %c15 = arith.constant 15 : index
    %c0_23 = arith.constant 0 : index
    %24 = vector.load %arg10[%c15, %c0_23] : memref<784x64xf32, #tpu.memory_space<vmem>>, vector<181x64xf32>
    %25 = arith.maximumf %23, %24 : vector<181x64xf32>
    %c196 = arith.constant 196 : index
    %c0_24 = arith.constant 0 : index
    %26 = vector.load %arg10[%c196, %c0_24] : memref<784x64xf32, #tpu.memory_space<vmem>>, vector<181x64xf32>
    %27 = arith.maximumf %25, %26 : vector<181x64xf32>
    %c197 = arith.constant 197 : index
    %c0_25 = arith.constant 0 : index
    %28 = vector.load %arg10[%c197, %c0_25] : memref<784x64xf32, #tpu.memory_space<vmem>>, vector<181x64xf32>
    %29 = arith.maximumf %27, %28 : vector<181x64xf32>
    %c210 = arith.constant 210 : index
    %c0_26 = arith.constant 0 : index
    %30 = vector.load %arg10[%c210, %c0_26] : memref<784x64xf32, #tpu.memory_space<vmem>>, vector<181x64xf32>
    %31 = arith.maximumf %29, %30 : vector<181x64xf32>
    %c211 = arith.constant 211 : index
    %c0_27 = arith.constant 0 : index
    %32 = vector.load %arg10[%c211, %c0_27] : memref<784x64xf32, #tpu.memory_space<vmem>>, vector<181x64xf32>
    %33 = arith.maximumf %31, %32 : vector<181x64xf32>
    %c392 = arith.constant 392 : index
    %c0_28 = arith.constant 0 : index
    %34 = vector.load %arg10[%c392, %c0_28] : memref<784x64xf32, #tpu.memory_space<vmem>>, vector<181x64xf32>
    %35 = arith.maximumf %33, %34 : vector<181x64xf32>
    %c393 = arith.constant 393 : index
    %c0_29 = arith.constant 0 : index
    %36 = vector.load %arg10[%c393, %c0_29] : memref<784x64xf32, #tpu.memory_space<vmem>>, vector<181x64xf32>
    %37 = arith.maximumf %35, %36 : vector<181x64xf32>
    %c406 = arith.constant 406 : index
    %c0_30 = arith.constant 0 : index
    %38 = vector.load %arg10[%c406, %c0_30] : memref<784x64xf32, #tpu.memory_space<vmem>>, vector<181x64xf32>
    %39 = arith.maximumf %37, %38 : vector<181x64xf32>
    %c407 = arith.constant 407 : index
    %c0_31 = arith.constant 0 : index
    %40 = vector.load %arg10[%c407, %c0_31] : memref<784x64xf32, #tpu.memory_space<vmem>>, vector<181x64xf32>
    %41 = arith.maximumf %39, %40 : vector<181x64xf32>
    %c588 = arith.constant 588 : index
    %c0_32 = arith.constant 0 : index
    %42 = vector.load %arg10[%c588, %c0_32] : memref<784x64xf32, #tpu.memory_space<vmem>>, vector<181x64xf32>
    %43 = arith.maximumf %41, %42 : vector<181x64xf32>
    %c589 = arith.constant 589 : index
    %c0_33 = arith.constant 0 : index
    %44 = vector.load %arg10[%c589, %c0_33] : memref<784x64xf32, #tpu.memory_space<vmem>>, vector<181x64xf32>
    %45 = arith.maximumf %43, %44 : vector<181x64xf32>
    %c602 = arith.constant 602 : index
    %c0_34 = arith.constant 0 : index
    %46 = vector.load %arg10[%c602, %c0_34] : memref<784x64xf32, #tpu.memory_space<vmem>>, vector<181x64xf32>
    %47 = arith.maximumf %45, %46 : vector<181x64xf32>
    %c603 = arith.constant 603 : index
    %c0_35 = arith.constant 0 : index
    %48 = vector.load %arg10[%c603, %c0_35] : memref<784x64xf32, #tpu.memory_space<vmem>>, vector<181x64xf32>
    %49 = arith.maximumf %47, %48 : vector<181x64xf32>
    %c0_36 = arith.constant 0 : index
    %c0_37 = arith.constant 0 : index
    %c0_38 = arith.constant 0 : index
    %50 = vector.load %arg6[%c0_36, %c0_37, %c0_38] : memref<2x181x64xf32, #tpu.memory_space<vmem>>, vector<1x181x64xf32>
    %51 = vector.shape_cast %50 : vector<1x181x64xf32> to vector<181x64xf32>
    %52 = arith.mulf %49, %51 : vector<181x64xf32>
    %cst_39 = arith.constant dense<0.000000e+00> : vector<64xf32>
    %53 = vector.multi_reduction <add>, %52, %cst_39 [0] : vector<181x64xf32> to vector<64xf32>
    %54 = vector.shape_cast %53 : vector<64xf32> to vector<1x64xf32>
    %cst_40 = arith.constant dense<0.000000e+00> : vector<1xf32>
    %55 = vector.multi_reduction <add>, %54, %cst_40 [1] : vector<1x64xf32> to vector<1xf32>
    %56 = vector.shape_cast %55 : vector<1xf32> to vector<1x1xf32>
    %c0_41 = arith.constant 0 : index
    %c0_42 = arith.constant 0 : index
    %57 = vector.load %arg7[%c0_41, %c0_42] : memref<1x2xf32, #tpu.memory_space<vmem>>, vector<1x1xf32>
    %58 = arith.addf %56, %57 : vector<1x1xf32>
    %c0_43 = arith.constant 0 : index
    %c0_44 = arith.constant 0 : index
    %c0_45 = arith.constant 0 : index
    %59 = vector.load %arg8[%c0_43, %c0_44, %c0_45] : memref<1x1x2xf32, #tpu.memory_space<vmem>>, vector<1x1x1xf32>
    %60 = vector.shape_cast %59 : vector<1x1x1xf32> to vector<1x1xf32>
    %61 = vector.shape_cast %58 : vector<1x1xf32> to vector<1x1x1xf32>
    tpu.vector_store %arg8[%c0_43, %c0_44, %c0_45], %61 {strides = array<i32>} : memref<1x1x2xf32, #tpu.memory_space<vmem>>, vector<1x1x1xf32>,
    %c1_46 = arith.constant 1 : index
    %c0_47 = arith.constant 0 : index
    %c0_48 = arith.constant 0 : index
    %62 = vector.load %arg6[%c1_46, %c0_47, %c0_48] : memref<2x181x64xf32, #tpu.memory_space<vmem>>, vector<1x181x64xf32>
    %63 = vector.shape_cast %62 : vector<1x181x64xf32> to vector<181x64xf32>
    %64 = arith.mulf %49, %63 : vector<181x64xf32>
    %cst_49 = arith.constant dense<0.000000e+00> : vector<64xf32>
    %65 = vector.multi_reduction <add>, %64, %cst_49 [0] : vector<181x64xf32> to vector<64xf32>
    %66 = vector.shape_cast %65 : vector<64xf32> to vector<1x64xf32>
    %cst_50 = arith.constant dense<0.000000e+00> : vector<1xf32>
    %67 = vector.multi_reduction <add>, %66, %cst_50 [1] : vector<1x64xf32> to vector<1xf32>
    %68 = vector.shape_cast %67 : vector<1xf32> to vector<1x1xf32>
    %c0_51 = arith.constant 0 : index
    %c1_52 = arith.constant 1 : index
    %69 = vector.load %arg7[%c0_51, %c1_52] : memref<1x2xf32, #tpu.memory_space<vmem>>, vector<1x1xf32>
    %70 = arith.addf %68, %69 : vector<1x1xf32>
    %c0_53 = arith.constant 0 : index
    %c0_54 = arith.constant 0 : index
    %c1_55 = arith.constant 1 : index
    %71 = vector.load %arg8[%c0_53, %c0_54, %c1_55] : memref<1x1x2xf32, #tpu.memory_space<vmem>>, vector<1x1x1xf32>
    %72 = vector.shape_cast %71 : vector<1x1x1xf32> to vector<1x1xf32>
    %73 = vector.shape_cast %70 : vector<1x1xf32> to vector<1x1x1xf32>
    tpu.vector_store %arg8[%c0_53, %c0_54, %c1_55], %73 {strides = array<i32>} : memref<1x1x2xf32, #tpu.memory_space<vmem>>, vector<1x1x1xf32>,
    return
  }
  func.func @transform_0(%arg0: i32) -> (i32, i32, i32) {
    %c0_i32 = arith.constant 0 : i32
    %c0_i32_0 = arith.constant 0 : i32
    %c0_i32_1 = arith.constant 0 : i32
    return %arg0, %c0_i32, %c0_i32_0 : i32, i32, i32
  }
  func.func @transform_1(%arg0: i32) -> (i32, i32) {
    %c0_i32 = arith.constant 0 : i32
    %c0_i32_0 = arith.constant 0 : i32
    %c0_i32_1 = arith.constant 0 : i32
    return %c0_i32, %c0_i32_0 : i32, i32
  }
  func.func @transform_2(%arg0: i32) -> (i32, i32) {
    %c0_i32 = arith.constant 0 : i32
    %c0_i32_0 = arith.constant 0 : i32
    %c0_i32_1 = arith.constant 0 : i32
    return %c0_i32, %c0_i32_0 : i32, i32
  }
  func.func @transform_3(%arg0: i32) -> (i32, i32) {
    %c0_i32 = arith.constant 0 : i32
    %c0_i32_0 = arith.constant 0 : i32
    %c0_i32_1 = arith.constant 0 : i32
    return %c0_i32, %c0_i32_0 : i32, i32
  }
  func.func @transform_4(%arg0: i32) -> (i32, i32) {
    %c0_i32 = arith.constant 0 : i32
    %c0_i32_0 = arith.constant 0 : i32
    %c0_i32_1 = arith.constant 0 : i32
    return %c0_i32, %c0_i32_0 : i32, i32
  }
  func.func @transform_5(%arg0: i32) -> (i32, i32, i32) {
    %c0_i32 = arith.constant 0 : i32
    %c0_i32_0 = arith.constant 0 : i32
    %c0_i32_1 = arith.constant 0 : i32
    %c0_i32_2 = arith.constant 0 : i32
    return %c0_i32, %c0_i32_0, %c0_i32_1 : i32, i32, i32
  }
  func.func @transform_6(%arg0: i32) -> (i32, i32) {
    %c0_i32 = arith.constant 0 : i32
    %c0_i32_0 = arith.constant 0 : i32
    %c0_i32_1 = arith.constant 0 : i32
    return %c0_i32, %c0_i32_0 : i32, i32
  }
  func.func @transform_7(%arg0: i32) -> (i32, i32, i32) {
    %c0_i32 = arith.constant 0 : i32
    %c0_i32_0 = arith.constant 0 : i32
    %c0_i32_1 = arith.constant 0 : i32
    return %arg0, %c0_i32, %c0_i32_0 : i32, i32, i32
  }
}

</mosaic_0001>

<llo_original>
// kernel: tile.8
$region0: #{tile.8}
  #allocation0 [shape = 's32[1]{0}', space=sflag, size = 0x4, scoped, tag = 'scoped memory for tile.8']
  %s0 = inlined_call_operand.vmem [shape: f32[32], index: 0, kind: input, shape index: {}]
  %s1 = inlined_call_operand.vmem [shape: f32[9,32], index: 1, kind: output, shape index: {}]
  // Predicated region
  $region2: #{tile.8} parent=0 // pred_check
    _
  $region3: #{tile.8} parent=0 // pred_check_branch
    %3 = sbr.rel (0) target = $region5
  $region4: #{tile.8} parent=0 // pred_region
    _
  $region5: #{tile.8} parent=0 // pred_fallthru
    _
  %v4 = vld [vmem:[%s0] ss:$0 sm:$0xff]
  %5 = vst [vmem:[%s1] sm:$0xff] %v4
  %s6 = scalar_lea.vmem %s1, 8
  %7 = vst [vmem:[%s6] sm:$0xff] %v4

// kernel: tile.9
$region0: #{tile.9}
  %s0 = inlined_call_operand.vmem [shape: f32[9,32], index: 0, kind: input, shape index: {}]
  %s1 = inlined_call_operand.vmem [shape: f32[1,288], index: 1, kind: output, shape index: {}]
  $region1: #{tile.9} parent=0
    #allocation0 [shape = 'u8[12288]{0}', space=vmem, size = 0x3000, scoped, tag = 'scoped mem for output reshape']
    %v2 = vld [vmem:[%s0] ss:$4 sm:$0x7]
    %vm3 = vcmask 261120
    %4 = vst.msk [vmem:[#allocation0] ss:$8 sm:$0x7] %vm3, %v2
    %s5 = scalar_lea.vmem %s0, 3
    %s6 = smov 3
    %v7 = vld [vmem:[%s5] ss:$4 sm:%s6]
    %8 = vrot.lane.b32.xlu0 %v7, 96
    %v9 = vpop.permute.xlu0 %8
    %vm10 = vcmask 1048320
    %11 = vst.msk [vmem:[#allocation0] ss:$8 sm:$0x3] %vm10, %v9
    %s12 = scalar_lea.vmem %s0, 2
    %s13 = smov 3
    %v14 = vld [vmem:[%s12] ss:$4 sm:%s13]
    %15 = vrot.lane.b32.xlu0 %v14, 64
    %v16 = vpop.permute.xlu0 %15
    %vm17 = vcmask 785920
    %18 = vst.msk [vmem:[#allocation0] ss:$8 sm:$0x3] %vm17, %v16
    %s19 = scalar_lea.vmem %s0, 1
    %s20 = smov 3
    %v21 = vld [vmem:[%s19] ss:$4 sm:%s20]
    %22 = vrot.lane.b32.xlu0 %v21, 32
    %v23 = vpop.permute.xlu0 %22
    %vm24 = vcmask 523520
    %25 = vst.msk [vmem:[#allocation0] ss:$8 sm:$0x3] %vm24, %v23
    %s27 = sshllo.u32 0, 1
    %v29 = vld [vmem:[#allocation0] sm:%s27]
    %s30 = sshllo.u32 0, 1
    %31 = vst [vmem:[%s1] sm:%s30] %v29
    %s32 = scalar_lea.vmem [#allocation0], 8
    %v33 = vld [vmem:[%s32] sm:%s27]
    %s34 = sshllo.u32 0, 1
    %s35 = scalar_lea.vmem %s1, 1
    %36 = vst [vmem:[%s35] sm:%s34] %v33
    %s37 = scalar_lea.vmem [#allocation0], 16
    %v38 = vld [vmem:[%s37] sm:%s27]
    %s39 = sshllo.u32 0, 1
    %s40 = smul.addr 1, 2
    %s41 = scalar_lea.vmem %s1, %s40
    %42 = vst [vmem:[%s41] sm:%s39] %v38

// kernel: model_forward.1
$region0: #{model_forward.1}
  #allocation0 [shape = 'u32[]', space=smem, size = 0x4, offset = 0x4, fixed_abs, tag = 'smem constant byte address 0x4 - core index']
  #allocation1 [shape = 'u32[144,128]{1,0:T(1,128)}', space=vmem, size = 0x12000, scoped, tag = 'internal scratch']
  #allocation2 [shape = 'f32[784,288]{1,0:T(8,128)}', space=vmem, size = 0x126000, scoped, tag = 'scratch operand']
  #allocation3 [shape = 'f32[784,64]{1,0:T(8,128)}', space=vmem, size = 0x62000, scoped, tag = 'scratch operand']
  %s0 = inlined_call_operand.vmem [shape: f32[2,784,75], index: 0, kind: input, shape index: {}]
  %s1 = inlined_call_operand.vmem [shape: f32[75,288], index: 1, kind: input, shape index: {}]
  %s2 = inlined_call_operand.vmem [shape: f32[1,288], index: 2, kind: input, shape index: {}]
  %s3 = inlined_call_operand.vmem [shape: f32[288,64], index: 3, kind: input, shape index: {}]
  %s4 = inlined_call_operand.vmem [shape: f32[1,64], index: 4, kind: input, shape index: {}]
  %s5 = inlined_call_operand.vmem [shape: f32[2,181,64], index: 5, kind: input, shape index: {}]
  %s6 = inlined_call_operand.vmem [shape: f32[1,2], index: 6, kind: input, shape index: {}]
  %s7 = inlined_call_operand.hbm [shape: f32[2,1,2], index: 7, kind: output, shape index: {}]
  %s8 = sld [smem:[#allocation0]]
  $region61: #{model_forward.1} parent=0
    _
  %s10 = ssub.s32 1, %s8
  %s11 = scalar_select 0, %s10, %s8
  $region1: #{model_forward.1} parent=0
    #allocation4 [shape = 'u8[1024]{0}', space=vmem, size = 0x400, scoped, tag = 'output window, operand 0']
    #allocation5 [shape = 's32[2]{0}', space=sflag, size = 0x8, scoped, tag = 'scoped memory for model_forward.1']
    %12 = vsyncpa [#allocation5], 0
    %s13 = scalar_lea.sflag [#allocation5], 1
    %14 = vsyncpa %s13, 0
    loop: start=0, step=1, limit=4
    $region2: #{model_forward.1} parent=1 // loop_pre_header
      _
    $region3: #{model_forward.1} parent=1 // loop_header
      %s16 = sphi 0, %s20
      %p17 = scmp.ge.s32.totalorder %s16, 4
      %s26 = sphi 0, %s28
      %s29 = sphi 0, %s26
      %s30 = sphi 0, %s29
      %s46 = sphi 0, %s30
      %s50 = sphi 0, %s50
      %s52 = sphi 0, %s50
      %s53 = sphi 0, %s52
      %s67 = sphi 0, %s53
      %s71 = sphi 0, %s71
      %s73 = sphi 0, %s71
      %s74 = sphi 0, %s73
      %s88 = sphi 0, %s74
      %s92 = sphi 0, %s92
      %s94 = sphi 0, %s92
      %s95 = sphi 0, %s94
      %s109 = sphi 0, %s95
      %s113 = sphi 0, %s113
      %s115 = sphi 0, %s113
      %s116 = sphi 0, %s115
      %s130 = sphi 0, %s116
      %s134 = sphi 0, %s134
      %s136 = sphi 0, %s134
      %s137 = sphi 0, %s136
      %s151 = sphi 0, %s137
      %s155 = sphi 0, %s155
      %s157 = sphi 0, %s155
      %s158 = sphi 0, %s157
      %s172 = sphi 0, %s158
      %s178 = sphi 0, %s180
      %s181 = sphi 0, %s178
      %s182 = sphi 0, %s181
      %s198 = sphi 0, %s182
    $region4: #{model_forward.1} parent=1 // loop_header_branch
      %19 = sbr.rel (%p17) target = $region8
    $region5: #{model_forward.1} parent=1 // loop_body
      %s21 = ssub.s32 %s16, 1
      %s22 = ssub.s32 %s16, 2
      %s23 = sadd.s32 %s16, 1
      %s24 = ssub.s32 %s16, %s23
      %p25 = scmp.eq.s32.totalorder %s24, 0
      %s27 = sadd.s32 %s26, 1
      %s28 = scalar_select %p25, %s26, %s27
      %p31 = pneg %p25
      %p32 = scmp.eq.s32.totalorder %s16, 1
      %p33 = por %p31, %p32
      %p34 = scmp.ne.s32.totalorder %s26, %s29
      %p35 = scmp.eq.s32.totalorder %s16, 0
      %p36 = por %p34, %p35
      %p37 = scmp.ne.s32.totalorder %s26, %s29
      %p38 = scmp.eq.s32.totalorder %s21, 1
      %p39 = por %p37, %p38
      %p40 = scmp.ne.s32.totalorder %s29, %s30
      %p41 = scmp.eq.s32.totalorder %s21, 0
      %p42 = por %p40, %p41
      %p43 = scmp.ne.s32.totalorder %s29, %s30
      %p44 = scmp.eq.s32.totalorder %s22, 1
      %p45 = por %p43, %p44
      %p47 = scmp.ne.s32.totalorder %s30, %s46
      %p48 = scmp.eq.s32.totalorder %s22, 0
      %p49 = por %p47, %p48
      %s51 = sadd.s32 %s50, 1
      %p54 = scmp.eq.s32.totalorder %s16, 1
      %p55 = scmp.ne.s32.totalorder %s50, %s52
      %p56 = scmp.eq.s32.totalorder %s16, 0
      %p57 = por %p55, %p56
      %p58 = scmp.ne.s32.totalorder %s50, %s52
      %p59 = scmp.eq.s32.totalorder %s21, 1
      %p60 = por %p58, %p59
      %p61 = scmp.ne.s32.totalorder %s52, %s53
      %p62 = scmp.eq.s32.totalorder %s21, 0
      %p63 = por %p61, %p62
      %p64 = scmp.ne.s32.totalorder %s52, %s53
      %p65 = scmp.eq.s32.totalorder %s22, 1
      %p66 = por %p64, %p65
      %p68 = scmp.ne.s32.totalorder %s53, %s67
      %p69 = scmp.eq.s32.totalorder %s22, 0
      %p70 = por %p68, %p69
      %s72 = sadd.s32 %s71, 1
      %p75 = scmp.eq.s32.totalorder %s16, 1
      %p76 = scmp.ne.s32.totalorder %s71, %s73
      %p77 = scmp.eq.s32.totalorder %s16, 0
      %p78 = por %p76, %p77
      %p79 = scmp.ne.s32.totalorder %s71, %s73
      %p80 = scmp.eq.s32.totalorder %s21, 1
      %p81 = por %p79, %p80
      %p82 = scmp.ne.s32.totalorder %s73, %s74
      %p83 = scmp.eq.s32.totalorder %s21, 0
      %p84 = por %p82, %p83
      %p85 = scmp.ne.s32.totalorder %s73, %s74
      %p86 = scmp.eq.s32.totalorder %s22, 1
      %p87 = por %p85, %p86
      %p89 = scmp.ne.s32.totalorder %s74, %s88
      %p90 = scmp.eq.s32.totalorder %s22, 0
      %p91 = por %p89, %p90
      %s93 = sadd.s32 %s92, 1
      %p96 = scmp.eq.s32.totalorder %s16, 1
      %p97 = scmp.ne.s32.totalorder %s92, %s94
      %p98 = scmp.eq.s32.totalorder %s16, 0
      %p99 = por %p97, %p98
      %p100 = scmp.ne.s32.totalorder %s92, %s94
      %p101 = scmp.eq.s32.totalorder %s21, 1
      %p102 = por %p100, %p101
      %p103 = scmp.ne.s32.totalorder %s94, %s95
      %p104 = scmp.eq.s32.totalorder %s21, 0
      %p105 = por %p103, %p104
      %p106 = scmp.ne.s32.totalorder %s94, %s95
      %p107 = scmp.eq.s32.totalorder %s22, 1
      %p108 = por %p106, %p107
      %p110 = scmp.ne.s32.totalorder %s95, %s109
      %p111 = scmp.eq.s32.totalorder %s22, 0
      %p112 = por %p110, %p111
      %s114 = sadd.s32 %s113, 1
      %p117 = scmp.eq.s32.totalorder %s16, 1
      %p118 = scmp.ne.s32.totalorder %s113, %s115
      %p119 = scmp.eq.s32.totalorder %s16, 0
      %p120 = por %p118, %p119
      %p121 = scmp.ne.s32.totalorder %s113, %s115
      %p122 = scmp.eq.s32.totalorder %s21, 1
      %p123 = por %p121, %p122
      %p124 = scmp.ne.s32.totalorder %s115, %s116
      %p125 = scmp.eq.s32.totalorder %s21, 0
      %p126 = por %p124, %p125
      %p127 = scmp.ne.s32.totalorder %s115, %s116
      %p128 = scmp.eq.s32.totalorder %s22, 1
      %p129 = por %p127, %p128
      %p131 = scmp.ne.s32.totalorder %s116, %s130
      %p132 = scmp.eq.s32.totalorder %s22, 0
      %p133 = por %p131, %p132
      %s135 = sadd.s32 %s134, 1
      %p138 = scmp.eq.s32.totalorder %s16, 1
      %p139 = scmp.ne.s32.totalorder %s134, %s136
      %p140 = scmp.eq.s32.totalorder %s16, 0
      %p141 = por %p139, %p140
      %p142 = scmp.ne.s32.totalorder %s134, %s136
      %p143 = scmp.eq.s32.totalorder %s21, 1
      %p144 = por %p142, %p143
      %p145 = scmp.ne.s32.totalorder %s136, %s137
      %p146 = scmp.eq.s32.totalorder %s21, 0
      %p147 = por %p145, %p146
      %p148 = scmp.ne.s32.totalorder %s136, %s137
      %p149 = scmp.eq.s32.totalorder %s22, 1
      %p150 = por %p148, %p149
      %p152 = scmp.ne.s32.totalorder %s137, %s151
      %p153 = scmp.eq.s32.totalorder %s22, 0
      %p154 = por %p152, %p153
      %s156 = sadd.s32 %s155, 1
      %p159 = scmp.eq.s32.totalorder %s16, 1
      %p160 = scmp.ne.s32.totalorder %s155, %s157
      %p161 = scmp.eq.s32.totalorder %s16, 0
      %p162 = por %p160, %p161
      %p163 = scmp.ne.s32.totalorder %s155, %s157
      %p164 = scmp.eq.s32.totalorder %s21, 1
      %p165 = por %p163, %p164
      %p166 = scmp.ne.s32.totalorder %s157, %s158
      %p167 = scmp.eq.s32.totalorder %s21, 0
      %p168 = por %p166, %p167
      %p169 = scmp.ne.s32.totalorder %s157, %s158
      %p170 = scmp.eq.s32.totalorder %s22, 1
      %p171 = por %p169, %p170
      %p173 = scmp.ne.s32.totalorder %s158, %s172
      %p174 = scmp.eq.s32.totalorder %s22, 0
      %p175 = por %p173, %p174
      %s176 = ssub.s32 %s16, %s23
      %p177 = scmp.eq.s32.totalorder %s176, 0
      %s179 = sadd.s32 %s178, 1
      %s180 = scalar_select %p177, %s178, %s179
      %p183 = pneg %p177
      %p184 = scmp.eq.s32.totalorder %s16, 1
      %p185 = por %p183, %p184
      %p186 = scmp.ne.s32.totalorder %s178, %s181
      %p187 = scmp.eq.s32.totalorder %s16, 0
      %p188 = por %p186, %p187
      %p189 = scmp.ne.s32.totalorder %s178, %s181
      %p190 = scmp.eq.s32.totalorder %s21, 1
      %p191 = por %p189, %p190
      %p192 = scmp.ne.s32.totalorder %s181, %s182
      %p193 = scmp.eq.s32.totalorder %s21, 0
      %p194 = por %p192, %p193
      %p195 = scmp.ne.s32.totalorder %s181, %s182
      %p196 = scmp.eq.s32.totalorder %s22, 1
      %p197 = por %p195, %p196
      %p199 = scmp.ne.s32.totalorder %s182, %s198
      %p200 = scmp.eq.s32.totalorder %s22, 0
      %p201 = por %p199, %p200
      %p202 = scmp.le.s32.totalorder 1, %s16
      %p203 = scmp.lt.s32.totalorder %s16, 3
      %p204 = pnand %p202, %p203
      %p205 = pneg %p204
      // Predicated region
      $region9: #{model_forward.1} parent=5 // pred_check
        _
      $region10: #{model_forward.1} parent=5 // pred_check_branch
        %207 = sbr.rel (%p204) target = $region12
      $region11: #{model_forward.1} parent=5 // pred_region
        %s208 = ssub.s32 %s16, 1
        // Predicated region
        $region13: #{model_forward.1} parent=11 // pred_check
          %p209 = pneg %p63
        $region14: #{model_forward.1} parent=11 // pred_check_branch
          %211 = sbr.rel (%p209) target = $region16
        $region15: #{model_forward.1} parent=11 // pred_region
          _
        $region16: #{model_forward.1} parent=11 // pred_fallthru
          _
        // Predicated region
        $region17: #{model_forward.1} parent=11 // pred_check
          %p212 = pneg %p84
        $region18: #{model_forward.1} parent=11 // pred_check_branch
          %214 = sbr.rel (%p212) target = $region20
        $region19: #{model_forward.1} parent=11 // pred_region
          _
        $region20: #{model_forward.1} parent=11 // pred_fallthru
          _
        // Predicated region
        $region21: #{model_forward.1} parent=11 // pred_check
          %p215 = pneg %p105
        $region22: #{model_forward.1} parent=11 // pred_check_branch
          %217 = sbr.rel (%p215) target = $region24
        $region23: #{model_forward.1} parent=11 // pred_region
          _
        $region24: #{model_forward.1} parent=11 // pred_fallthru
          _
        // Predicated region
        $region25: #{model_forward.1} parent=11 // pred_check
          %p218 = pneg %p126
        $region26: #{model_forward.1} parent=11 // pred_check_branch
          %220 = sbr.rel (%p218) target = $region28
        $region27: #{model_forward.1} parent=11 // pred_region
          _
        $region28: #{model_forward.1} parent=11 // pred_fallthru
          _
        // Predicated region
        $region29: #{model_forward.1} parent=11 // pred_check
          %p221 = pneg %p147
        $region30: #{model_forward.1} parent=11 // pred_check_branch
          %223 = sbr.rel (%p221) target = $region32
        $region31: #{model_forward.1} parent=11 // pred_region
          _
        $region32: #{model_forward.1} parent=11 // pred_fallthru
          _
        // Predicated region
        $region33: #{model_forward.1} parent=11 // pred_check
          %p224 = pneg %p168
        $region34: #{model_forward.1} parent=11 // pred_check_branch
          %226 = sbr.rel (%p224) target = $region36
        $region35: #{model_forward.1} parent=11 // pred_region
          _
        $region36: #{model_forward.1} parent=11 // pred_fallthru
          _
      $region12: #{model_forward.1} parent=5 // pred_fallthru
        _
      %p227 = scmp.lt.s32.totalorder %s16, 2
      // Predicated region
      $region37: #{model_forward.1} parent=5 // pred_check
        %p228 = pneg %p227
      $region38: #{model_forward.1} parent=5 // pred_check_branch
        %230 = sbr.rel (%p228) target = $region40
      $region39: #{model_forward.1} parent=5 // pred_region
        // Predicated region
        $region41: #{model_forward.1} parent=39 // pred_check
          %p231 = pneg %p36
        $region42: #{model_forward.1} parent=39 // pred_check_branch
          %233 = sbr.rel (%p231) target = $region44
        $region43: #{model_forward.1} parent=39 // pred_region
          %p234 = scmp.lt.s32.totalorder %s16, 1
          %s235 = scalar_select %p234, %s16, 1
          %s236 = smul.addr %s235, 98
          %s237 = smul.addr %s236, 8
          %s238 = scalar_lea.vmem %s0, %s237
        $region44: #{model_forward.1} parent=39 // pred_fallthru
          _
      $region40: #{model_forward.1} parent=5 // pred_fallthru
        _
      %p239 = scmp.le.s32.totalorder 1, %s16
      %p240 = scmp.lt.s32.totalorder %s16, 3
      %p241 = pnand %p239, %p240
      %p242 = pneg %p241
      // Predicated region
      $region45: #{model_forward.1} parent=5 // pred_check
        _
      $region46: #{model_forward.1} parent=5 // pred_check_branch
        %244 = sbr.rel (%p241) target = $region48
      $region47: #{model_forward.1} parent=5 // pred_region
        %s245 = ssub.s32 %s16, 1
        %p246 = scmp.lt.s32.totalorder %s21, 1
        %s247 = scalar_select %p246, %s21, 1
        %s248 = smul.addr %s247, 98
        %s249 = smul.addr %s248, 8
        %s250 = scalar_lea.vmem %s0, %s249
        %p251 = pneg %p42
        %p252 = pneg %p39
        %p253 = pneg %p63
        %p254 = pneg %p60
        %p255 = pneg %p84
        %p256 = pneg %p81
        %p257 = pneg %p105
        %p258 = pneg %p102
        %p259 = pneg %p126
        %p260 = pneg %p123
        %p261 = pneg %p147
        %p262 = pneg %p144
        %p263 = pneg %p168
        %p264 = pneg %p165
        %p265 = pneg %p194
        %p266 = pneg %p191
        %s267 = sand.u32 %s181, 1
        %s268 = scalar_lea.sflag [#allocation5], %s267
        %s269 = sand.u32 %s181, 1
        %s270 = scalar_lea.vmem [#allocation4], %s269
        %p271 = scmp.lt.s32.totalorder %s21, 1
        %s272 = scalar_select %p271, %s21, 1
        %s273 = smul.addr %s272, 98
        %s274 = smul.addr %s273, 8
        %s275 = scalar_lea.vmem %s0, %s274
        %v276 = vld [vmem:[%s275] sm:$0xff]
        %v277 = vld [vmem:[%s275 + $0x8] sm:$0xff]
        %v278 = vld [vmem:[%s275 + $0x10] sm:$0xff]
        %v279 = vld [vmem:[%s275 + $0x18] sm:$0xff]
        %v280 = vld [vmem:[%s275 + $0x20] sm:$0xff]
        %v281 = vld [vmem:[%s275 + $0x28] sm:$0xff]
        %v282 = vld [vmem:[%s275 + $0x30] sm:$0xff]
        %v283 = vld [vmem:[%s275 + $0x38] sm:$0xff]
        %v284 = vld [vmem:[%s275 + $0x40] sm:$0xff]
        %v285 = vld [vmem:[%s275 + $0x48] sm:$0xff]
        %v286 = vld [vmem:[%s275 + $0x50] sm:$0xff]
        %v287 = vld [vmem:[%s275 + $0x58] sm:$0xff]
        %v288 = vld [vmem:[%s275 + $0x60] sm:$0xff]
        %v289 = vld [vmem:[%s275 + $0x68] sm:$0xff]
        %v290 = vld [vmem:[%s275 + $0x70] sm:$0xff]
        %v291 = vld [vmem:[%s275 + $0x78] sm:$0xff]
        %v292 = vld [vmem:[%s275 + $0x80] sm:$0xff]
        %v293 = vld [vmem:[%s275 + $0x88] sm:$0xff]
        %v294 = vld [vmem:[%s275 + $0x90] sm:$0xff]
        %v295 = vld [vmem:[%s275 + $0x98] sm:$0xff]
        %v296 = vld [vmem:[%s275 + $0xa0] sm:$0xff]
        %v297 = vld [vmem:[%s275 + $0xa8] sm:$0xff]
        %v298 = vld [vmem:[%s275 + $0xb0] sm:$0xff]
        %v299 = vld [vmem:[%s275 + $0xb8] sm:$0xff]
        %v300 = vld [vmem:[%s275 + $0xc0] sm:$0xff]
        %v301 = vld [vmem:[%s275 + $0xc8] sm:$0xff]
        %v302 = vld [vmem:[%s275 + $0xd0] sm:$0xff]
        %v303 = vld [vmem:[%s275 + $0xd8] sm:$0xff]
        %v304 = vld [vmem:[%s275 + $0xe0] sm:$0xff]
        %v305 = vld [vmem:[%s275 + $0xe8] sm:$0xff]
        %v306 = vld [vmem:[%s275 + $0xf0] sm:$0xff]
        %v307 = vld [vmem:[%s275 + $0xf8] sm:$0xff]
        %v308 = vld [vmem:[%s275 + $0x100] sm:$0xff]
        %v309 = vld [vmem:[%s275 + $0x108] sm:$0xff]
        %v310 = vld [vmem:[%s275 + $0x110] sm:$0xff]
        %v311 = vld [vmem:[%s275 + $0x118] sm:$0xff]
        %v312 = vld [vmem:[%s275 + $0x120] sm:$0xff]
        %v313 = vld [vmem:[%s275 + $0x128] sm:$0xff]
        %v314 = vld [vmem:[%s275 + $0x130] sm:$0xff]
        %v315 = vld [vmem:[%s275 + $0x138] sm:$0xff]
        %v316 = vld [vmem:[%s275 + $0x140] sm:$0xff]
        %v317 = vld [vmem:[%s275 + $0x148] sm:$0xff]
        %v318 = vld [vmem:[%s275 + $0x150] sm:$0xff]
        %v319 = vld [vmem:[%s275 + $0x158] sm:$0xff]
        %v320 = vld [vmem:[%s275 + $0x160] sm:$0xff]
        %v321 = vld [vmem:[%s275 + $0x168] sm:$0xff]
        %v322 = vld [vmem:[%s275 + $0x170] sm:$0xff]
        %v323 = vld [vmem:[%s275 + $0x178] sm:$0xff]
        %v324 = vld [vmem:[%s275 + $0x180] sm:$0xff]
        %v325 = vld [vmem:[%s275 + $0x188] sm:$0xff]
        %v326 = vld [vmem:[%s275 + $0x190] sm:$0xff]
        %v327 = vld [vmem:[%s275 + $0x198] sm:$0xff]
        %v328 = vld [vmem:[%s275 + $0x1a0] sm:$0xff]
        %v329 = vld [vmem:[%s275 + $0x1a8] sm:$0xff]
        %v330 = vld [vmem:[%s275 + $0x1b0] sm:$0xff]
        %v331 = vld [vmem:[%s275 + $0x1b8] sm:$0xff]
        %v332 = vld [vmem:[%s275 + $0x1c0] sm:$0xff]
        %v333 = vld [vmem:[%s275 + $0x1c8] sm:$0xff]
        %v334 = vld [vmem:[%s275 + $0x1d0] sm:$0xff]
        %v335 = vld [vmem:[%s275 + $0x1d8] sm:$0xff]
        %v336 = vld [vmem:[%s275 + $0x1e0] sm:$0xff]
        %v337 = vld [vmem:[%s275 + $0x1e8] sm:$0xff]
        %v338 = vld [vmem:[%s275 + $0x1f0] sm:$0xff]
        %v339 = vld [vmem:[%s275 + $0x1f8] sm:$0xff]
        %v340 = vld [vmem:[%s275 + $0x200] sm:$0xff]
        %v341 = vld [vmem:[%s275 + $0x208] sm:$0xff]
        %v342 = vld [vmem:[%s275 + $0x210] sm:$0xff]
        %v343 = vld [vmem:[%s275 + $0x218] sm:$0xff]
        %v344 = vld [vmem:[%s275 + $0x220] sm:$0xff]
        %v345 = vld [vmem:[%s275 + $0x228] sm:$0xff]
        %v346 = vld [vmem:[%s275 + $0x230] sm:$0xff]
        %v347 = vld [vmem:[%s275 + $0x238] sm:$0xff]
        %v348 = vld [vmem:[%s275 + $0x240] sm:$0xff]
        %v349 = vld [vmem:[%s275 + $0x248] sm:$0xff]
        %v350 = vld [vmem:[%s275 + $0x250] sm:$0xff]
        %v351 = vld [vmem:[%s275 + $0x258] sm:$0xff]
        %v352 = vld [vmem:[%s275 + $0x260] sm:$0xff]
        %v353 = vld [vmem:[%s275 + $0x268] sm:$0xff]
        %v354 = vld [vmem:[%s275 + $0x270] sm:$0xff]
        %v355 = vld [vmem:[%s275 + $0x278] sm:$0xff]
        %v356 = vld [vmem:[%s275 + $0x280] sm:$0xff]
        %v357 = vld [vmem:[%s275 + $0x288] sm:$0xff]
        %v358 = vld [vmem:[%s275 + $0x290] sm:$0xff]
        %v359 = vld [vmem:[%s275 + $0x298] sm:$0xff]
        %v360 = vld [vmem:[%s275 + $0x2a0] sm:$0xff]
        %v361 = vld [vmem:[%s275 + $0x2a8] sm:$0xff]
        %v362 = vld [vmem:[%s275 + $0x2b0] sm:$0xff]
        %v363 = vld [vmem:[%s275 + $0x2b8] sm:$0xff]
        %v364 = vld [vmem:[%s275 + $0x2c0] sm:$0xff]
        %v365 = vld [vmem:[%s275 + $0x2c8] sm:$0xff]
        %v366 = vld [vmem:[%s275 + $0x2d0] sm:$0xff]
        %v367 = vld [vmem:[%s275 + $0x2d8] sm:$0xff]
        %v368 = vld [vmem:[%s275 + $0x2e0] sm:$0xff]
        %v369 = vld [vmem:[%s275 + $0x2e8] sm:$0xff]
        %v370 = vld [vmem:[%s275 + $0x2f0] sm:$0xff]
        %v371 = vld [vmem:[%s275 + $0x2f8] sm:$0xff]
        %v372 = vld [vmem:[%s275 + $0x300] sm:$0xff]
        %v373 = vld [vmem:[%s275 + $0x308] sm:$0xff]
        %v374 = vld [vmem:[%s1] sm:$0xff]
        %v375 = vld [vmem:[%s1 + $0x8] sm:$0xff]
        %v376 = vld [vmem:[%s1 + $0x10] sm:$0xff]
        %v377 = vld [vmem:[%s1 + $0x18] sm:$0xff]
        %v378 = vld [vmem:[%s1 + $0x20] sm:$0xff]
        %v379 = vld [vmem:[%s1 + $0x28] sm:$0xff]
        %v380 = vld [vmem:[%s1 + $0x30] sm:$0xff]
        %v381 = vld [vmem:[%s1 + $0x38] sm:$0xff]
        %v382 = vld [vmem:[%s1 + $0x40] sm:$0xff]
        %v383 = vld [vmem:[%s1 + $0x48] sm:$0xff]
        %v384 = vld [vmem:[%s1 + $0x50] sm:$0xff]
        %v385 = vld [vmem:[%s1 + $0x58] sm:$0xff]
        %v386 = vld [vmem:[%s1 + $0x60] sm:$0xff]
        %v387 = vld [vmem:[%s1 + $0x68] sm:$0xff]
        %v388 = vld [vmem:[%s1 + $0x70] sm:$0xff]
        %v389 = vld [vmem:[%s1 + $0x78] sm:$0xff]
        %v390 = vld [vmem:[%s1 + $0x80] sm:$0xff]
        %v391 = vld [vmem:[%s1 + $0x88] sm:$0xff]
        %v392 = vld [vmem:[%s1 + $0x90] sm:$0xff]
        %v393 = vld [vmem:[%s1 + $0x98] sm:$0xff]
        %v394 = vld [vmem:[%s1 + $0xa0] sm:$0xff]
        %v395 = vld [vmem:[%s1 + $0xa8] sm:$0xff]
        %v396 = vld [vmem:[%s1 + $0xb0] sm:$0xff]
        %v397 = vld [vmem:[%s1 + $0xb8] sm:$0xff]
        %v398 = vld [vmem:[%s1 + $0xc0] sm:$0xff]
        %v399 = vld [vmem:[%s1 + $0xc8] sm:$0xff]
        %v400 = vld [vmem:[%s1 + $0xd0] sm:$0xff]
        %v401 = vld [vmem:[%s1 + $0xd8] sm:$0x7]
        %v402 = vld [vmem:[%s1 + $0xe0] sm:$0x7]
        %v403 = vld [vmem:[%s1 + $0xe8] sm:$0x7]
        %v404 = vld [vmem:[%s2] sm:$0x7]
        %v406 = vlaneseq
        %v407 = vshrl.u32 %v406, 7
        %v408 = vsub.s32 0, %v407
        %v409 = vrot.slane %v404, %v408
        %v410 = vlaneseq
        %v411 = vshrl.u32 %v410, 7
        %v412 = vsub.s32 1, %v411
        %v413 = vrot.slane %v404, %v412
        %v414 = vlaneseq
        %v415 = vshrl.u32 %v414, 7
        %v416 = vsub.s32 2, %v415
        %v417 = vrot.slane %v404, %v416
        %vm421 = vcmask 613376
        %v423 = vsel %vm421, %v276, 0
        %v426 = vsel %vm421, %v277, 0
        %v429 = vsel %vm421, %v278, 0
        %v432 = vsel %vm421, %v279, 0
        %v435 = vsel %vm421, %v280, 0
        %v438 = vsel %vm421, %v281, 0
        %v441 = vsel %vm421, %v282, 0
        %v444 = vsel %vm421, %v283, 0
        %v447 = vsel %vm421, %v284, 0
        %v450 = vsel %vm421, %v285, 0
        %v453 = vsel %vm421, %v286, 0
        %v456 = vsel %vm421, %v287, 0
        %v459 = vsel %vm421, %v288, 0
        %v462 = vsel %vm421, %v289, 0
        %v465 = vsel %vm421, %v290, 0
        %v468 = vsel %vm421, %v291, 0
        %v471 = vsel %vm421, %v292, 0
        %v474 = vsel %vm421, %v293, 0
        %v477 = vsel %vm421, %v294, 0
        %v480 = vsel %vm421, %v295, 0
        %v483 = vsel %vm421, %v296, 0
        %v486 = vsel %vm421, %v297, 0
        %v489 = vsel %vm421, %v298, 0
        %v492 = vsel %vm421, %v299, 0
        %v495 = vsel %vm421, %v300, 0
        %v498 = vsel %vm421, %v301, 0
        %v501 = vsel %vm421, %v302, 0
        %v504 = vsel %vm421, %v303, 0
        %v507 = vsel %vm421, %v304, 0
        %v510 = vsel %vm421, %v305, 0
        %v513 = vsel %vm421, %v306, 0
        %v516 = vsel %vm421, %v307, 0
        %v519 = vsel %vm421, %v308, 0
        %v522 = vsel %vm421, %v309, 0
        %v525 = vsel %vm421, %v310, 0
        %v528 = vsel %vm421, %v311, 0
        %v531 = vsel %vm421, %v312, 0
        %v534 = vsel %vm421, %v313, 0
        %v537 = vsel %vm421, %v314, 0
        %v540 = vsel %vm421, %v315, 0
        %v543 = vsel %vm421, %v316, 0
        %v546 = vsel %vm421, %v317, 0
        %v549 = vsel %vm421, %v318, 0
        %v552 = vsel %vm421, %v319, 0
        %v555 = vsel %vm421, %v320, 0
        %v558 = vsel %vm421, %v321, 0
        %v561 = vsel %vm421, %v322, 0
        %v564 = vsel %vm421, %v323, 0
        %v567 = vsel %vm421, %v324, 0
        %v570 = vsel %vm421, %v325, 0
        %v573 = vsel %vm421, %v326, 0
        %v576 = vsel %vm421, %v327, 0
        %v579 = vsel %vm421, %v328, 0
        %v582 = vsel %vm421, %v329, 0
        %v585 = vsel %vm421, %v330, 0
        %v588 = vsel %vm421, %v331, 0
        %v591 = vsel %vm421, %v332, 0
        %v594 = vsel %vm421, %v333, 0
        %v597 = vsel %vm421, %v334, 0
        %v600 = vsel %vm421, %v335, 0
        %v603 = vsel %vm421, %v336, 0
        %v606 = vsel %vm421, %v337, 0
        %v609 = vsel %vm421, %v338, 0
        %v612 = vsel %vm421, %v339, 0
        %v615 = vsel %vm421, %v340, 0
        %v618 = vsel %vm421, %v341, 0
        %v621 = vsel %vm421, %v342, 0
        %v624 = vsel %vm421, %v343, 0
        %v627 = vsel %vm421, %v344, 0
        %v630 = vsel %vm421, %v345, 0
        %v633 = vsel %vm421, %v346, 0
        %v636 = vsel %vm421, %v347, 0
        %v639 = vsel %vm421, %v348, 0
        %v642 = vsel %vm421, %v349, 0
        %v645 = vsel %vm421, %v350, 0
        %v648 = vsel %vm421, %v351, 0
        %v651 = vsel %vm421, %v352, 0
        %v654 = vsel %vm421, %v353, 0
        %v657 = vsel %vm421, %v354, 0
        %v660 = vsel %vm421, %v355, 0
        %v663 = vsel %vm421, %v356, 0
        %v666 = vsel %vm421, %v357, 0
        %v669 = vsel %vm421, %v358, 0
        %v672 = vsel %vm421, %v359, 0
        %v675 = vsel %vm421, %v360, 0
        %v678 = vsel %vm421, %v361, 0
        %v681 = vsel %vm421, %v362, 0
        %v684 = vsel %vm421, %v363, 0
        %v687 = vsel %vm421, %v364, 0
        %v690 = vsel %vm421, %v365, 0
        %v693 = vsel %vm421, %v366, 0
        %v696 = vsel %vm421, %v367, 0
        %v699 = vsel %vm421, %v368, 0
        %v702 = vsel %vm421, %v369, 0
        %v705 = vsel %vm421, %v370, 0
        %v708 = vsel %vm421, %v371, 0
        %v711 = vsel %vm421, %v372, 0
        %v714 = vsel %vm421, %v373, 0
        %vm716 = vcmask 1042432
        %v718 = vsel %vm716, %v401, 0
        %v721 = vsel %vm716, %v402, 0
        %v724 = vsel %vm716, %v403, 0
        %726 = vmatprep.subr.mxu0 %v375
        %727 = vmatpush1.msra.mxu0 %v374
        %728 = vmatprep.subr.mxu0 %v378
        %729 = vmatpush1.msra.mxu0 %v377
        %730 = vmatprep.subr.mxu0 %v381
        %731 = vmatpush1.msra.mxu0 %v380
        %732 = vmatprep.subr.mxu0 %v384
        %733 = vmatpush1.msra.mxu0 %v383
        %734 = vmatprep.subr.mxu0 %v387
        %735 = vmatpush1.msra.mxu0 %v386
        %736 = vmatprep.subr.mxu0 %v390
        %737 = vmatpush1.msra.mxu0 %v389
        %738 = vmatprep.subr.mxu0 %v393
        %739 = vmatpush1.msra.mxu0 %v392
        %740 = vmatprep.subr.mxu0 %v396
        %741 = vmatpush1.msra.mxu0 %v395
        %742 = vmatprep.subr.mxu0 %v399
        %743 = vmatpush1.msra.mxu0 %v398
        %744 = vmatprep.subr.mxu0 %v721
        %745 = vmatpush1.msra.mxu0 %v718
        %746 = vmatprep.subr.mxu0 0.0
        %747 = vmatpush1.msra.mxu0 0.0
        %748 = vmatprep.subr.mxu0 0.0
        %749 = vmatpush1.msra.mxu0 0.0
        %750 = vmatprep.subr.mxu0 0.0
        %751 = vmatpush1.msra.mxu0 0.0
        %752 = vmatprep.subr.mxu0 0.0
        %753 = vmatpush1.msra.mxu0 0.0
        %754 = vmatprep.subr.mxu0 0.0
        %755 = vmatpush1.msra.mxu0 0.0
        %756 = vmatprep.subr.mxu0 0.0
        %757 = vmatpush1.msra.mxu0 0.0
        %758 = vmatprep.subr.mxu0 0.0
        %759 = vmatpush1.msra.mxu0 0.0
        %760 = vmatprep.subr.mxu0 0.0
        %761 = vmatpush1.msra.mxu0 0.0
        %762 = vmatprep.subr.mxu0 0.0
        %763 = vmatpush1.msra.mxu0 0.0
        %764 = vmatprep.subr.mxu0 0.0
        %765 = vmatpush1.msra.mxu0 0.0
        %766 = vmatprep.subr.mxu0 0.0
        %767 = vmatpush1.msra.mxu0 0.0
        %768 = vmatprep.subr.mxu0 0.0
        %769 = vmatpush1.msra.mxu0 0.0
        %770 = vmatprep.subr.mxu0 0.0
        %771 = vmatpush1.msra.mxu0 0.0
        %772 = vmatprep.subr.mxu0 0.0
        %773 = vmatpush1.msra.mxu0 0.0
        %774 = vmatprep.subr.mxu0 0.0
        %775 = vmatpush1.msra.mxu0 0.0
        %776 = vmatprep.subr.mxu0 0.0
        %777 = vmatpush1.msra.mxu0 0.0
        %778 = vmatprep.subr.mxu0 0.0
        %779 = vmatpush1.msra.mxu0 0.0
        %780 = vmatprep.subr.mxu0 0.0
        %781 = vmatpush1.msra.mxu0 0.0
        %782 = vmatprep.subr.mxu0 0.0
        %783 = vmatpush1.msra.mxu0 0.0
        %784 = vmatprep.subr.mxu0 0.0
        %785 = vmatpush1.msra.mxu0 0.0
        %786 = vmatprep.subr.mxu0 0.0
        %787 = vmatpush1.msra.mxu0 0.0
        %788 = vmatprep.subr.mxu0 0.0
        %789 = vmatpush1.msra.mxu0 0.0
        %790 = vmatprep.mubr.f32.mxu0 0.0
        %791 = vmatmul.mubr.f32.gmra.mrb[0].mxu0 %v423
        %v792 = vpop.f32.mrb[0].mxu0
        %v793 = vadd.f32 %v409, %v792
        %v794 = vpop.f32.mrb[0].mxu0
        %v795 = vadd.f32 %v413, %v794
        %796 = vmatprep.mubr.f32.mxu0 0.0
        %797 = vmatmul.mubr.f32.gmra.mrb[0].mxu0 %v426
        %v798 = vpop.f32.mrb[0].mxu0
        %v799 = vadd.f32 %v409, %v798
        %v800 = vpop.f32.mrb[0].mxu0
        %v801 = vadd.f32 %v413, %v800
        %802 = vmatprep.mubr.f32.mxu0 0.0
        %803 = vmatmul.mubr.f32.gmra.mrb[0].mxu0 %v429
        %v804 = vpop.f32.mrb[0].mxu0
        %v805 = vadd.f32 %v409, %v804
        %v806 = vpop.f32.mrb[0].mxu0
        %v807 = vadd.f32 %v413, %v806
        %808 = vmatprep.mubr.f32.mxu0 0.0
        %809 = vmatmul.mubr.f32.gmra.mrb[0].mxu0 %v432
        %v810 = vpop.f32.mrb[0].mxu0
        %v811 = vadd.f32 %v409, %v810
        %v812 = vpop.f32.mrb[0].mxu0
        %v813 = vadd.f32 %v413, %v812
        %814 = vmatprep.mubr.f32.mxu0 0.0
        %815 = vmatmul.mubr.f32.gmra.mrb[0].mxu0 %v435
        %v816 = vpop.f32.mrb[0].mxu0
        %v817 = vadd.f32 %v409, %v816
        %v818 = vpop.f32.mrb[0].mxu0
        %v819 = vadd.f32 %v413, %v818
        %820 = vmatprep.mubr.f32.mxu0 0.0
        %821 = vmatmul.mubr.f32.gmra.mrb[0].mxu0 %v438
        %v822 = vpop.f32.mrb[0].mxu0
        %v823 = vadd.f32 %v409, %v822
        %v824 = vpop.f32.mrb[0].mxu0
        %v825 = vadd.f32 %v413, %v824
        %826 = vmatprep.mubr.f32.mxu0 0.0
        %827 = vmatmul.mubr.f32.gmra.mrb[0].mxu0 %v441
        %v828 = vpop.f32.mrb[0].mxu0
        %v829 = vadd.f32 %v409, %v828
        %v830 = vpop.f32.mrb[0].mxu0
        %v831 = vadd.f32 %v413, %v830
        %832 = vmatprep.mubr.f32.mxu0 0.0
        %833 = vmatmul.mubr.f32.gmra.mrb[0].mxu0 %v444
        %v834 = vpop.f32.mrb[0].mxu0
        %v835 = vadd.f32 %v409, %v834
        %v836 = vpop.f32.mrb[0].mxu0
        %v837 = vadd.f32 %v413, %v836
        %838 = vmatprep.mubr.f32.mxu0 0.0
        %839 = vmatmul.mubr.f32.gmra.mrb[0].mxu0 %v447
        %v840 = vpop.f32.mrb[0].mxu0
        %v841 = vadd.f32 %v409, %v840
        %v842 = vpop.f32.mrb[0].mxu0
        %v843 = vadd.f32 %v413, %v842
        %844 = vmatprep.mubr.f32.mxu0 0.0
        %845 = vmatmul.mubr.f32.gmra.mrb[0].mxu0 %v450
        %v846 = vpop.f32.mrb[0].mxu0
        %v847 = vadd.f32 %v409, %v846
        %v848 = vpop.f32.mrb[0].mxu0
        %v849 = vadd.f32 %v413, %v848
        %850 = vmatprep.mubr.f32.mxu0 0.0
        %851 = vmatmul.mubr.f32.gmra.mrb[0].mxu0 %v453
        %v852 = vpop.f32.mrb[0].mxu0
        %v853 = vadd.f32 %v409, %v852
        %v854 = vpop.f32.mrb[0].mxu0
        %v855 = vadd.f32 %v413, %v854
        %856 = vmatprep.mubr.f32.mxu0 0.0
        %857 = vmatmul.mubr.f32.gmra.mrb[0].mxu0 %v456
        %v858 = vpop.f32.mrb[0].mxu0
        %v859 = vadd.f32 %v409, %v858
        %v860 = vpop.f32.mrb[0].mxu0
        %v861 = vadd.f32 %v413, %v860
        %862 = vmatprep.mubr.f32.mxu0 0.0
        %863 = vmatmul.mubr.f32.gmra.mrb[0].mxu0 %v459
        %v864 = vpop.f32.mrb[0].mxu0
        %v865 = vadd.f32 %v409, %v864
        %v866 = vpop.f32.mrb[0].mxu0
        %v867 = vadd.f32 %v413, %v866
        %868 = vmatprep.mubr.f32.mxu0 0.0
        %869 = vmatmul.mubr.f32.gmra.mrb[0].mxu0 %v462
        %v870 = vpop.f32.mrb[0].mxu0
        %v871 = vadd.f32 %v409, %v870
        %v872 = vpop.f32.mrb[0].mxu0
        %v873 = vadd.f32 %v413, %v872
        %874 = vmatprep.mubr.f32.mxu0 0.0
        %875 = vmatmul.mubr.f32.gmra.mrb[0].mxu0 %v465
        %v876 = vpop.f32.mrb[0].mxu0
        %v877 = vadd.f32 %v409, %v876
        %v878 = vpop.f32.mrb[0].mxu0
        %v879 = vadd.f32 %v413, %v878
        %880 = vmatprep.mubr.f32.mxu0 0.0
        %881 = vmatmul.mubr.f32.gmra.mrb[0].mxu0 %v468
        %v882 = vpop.f32.mrb[0].mxu0
        %v883 = vadd.f32 %v409, %v882
        %v884 = vpop.f32.mrb[0].mxu0
        %v885 = vadd.f32 %v413, %v884
        %886 = vmatprep.mubr.f32.mxu0 0.0
        %887 = vmatmul.mubr.f32.gmra.mrb[0].mxu0 %v471
        %v888 = vpop.f32.mrb[0].mxu0
        %v889 = vadd.f32 %v409, %v888
        %v890 = vpop.f32.mrb[0].mxu0
        %v891 = vadd.f32 %v413, %v890
        %892 = vmatprep.mubr.f32.mxu0 0.0
        %893 = vmatmul.mubr.f32.gmra.mrb[0].mxu0 %v474
        %v894 = vpop.f32.mrb[0].mxu0
        %v895 = vadd.f32 %v409, %v894
        %v896 = vpop.f32.mrb[0].mxu0
        %v897 = vadd.f32 %v413, %v896
        %898 = vmatprep.mubr.f32.mxu0 0.0
        %899 = vmatmul.mubr.f32.gmra.mrb[0].mxu0 %v477
        %v900 = vpop.f32.mrb[0].mxu0
        %v901 = vadd.f32 %v409, %v900
        %v902 = vpop.f32.mrb[0].mxu0
        %v903 = vadd.f32 %v413, %v902
        %904 = vmatprep.mubr.f32.mxu0 0.0
        %905 = vmatmul.mubr.f32.gmra.mrb[0].mxu0 %v480
        %v906 = vpop.f32.mrb[0].mxu0
        %v907 = vadd.f32 %v409, %v906
        %v908 = vpop.f32.mrb[0].mxu0
        %v909 = vadd.f32 %v413, %v908
        %910 = vmatprep.mubr.f32.mxu0 0.0
        %911 = vmatmul.mubr.f32.gmra.mrb[0].mxu0 %v483
        %v912 = vpop.f32.mrb[0].mxu0
        %v913 = vadd.f32 %v409, %v912
        %v914 = vpop.f32.mrb[0].mxu0
        %v915 = vadd.f32 %v413, %v914
        %916 = vmatprep.mubr.f32.mxu0 0.0
        %917 = vmatmul.mubr.f32.gmra.mrb[0].mxu0 %v486
        %v918 = vpop.f32.mrb[0].mxu0
        %v919 = vadd.f32 %v409, %v918
        %v920 = vpop.f32.mrb[0].mxu0
        %v921 = vadd.f32 %v413, %v920
        %922 = vmatprep.mubr.f32.mxu0 0.0
        %923 = vmatmul.mubr.f32.gmra.mrb[0].mxu0 %v489
        %v924 = vpop.f32.mrb[0].mxu0
        %v925 = vadd.f32 %v409, %v924
        %v926 = vpop.f32.mrb[0].mxu0
        %v927 = vadd.f32 %v413, %v926
        %928 = vmatprep.mubr.f32.mxu0 0.0
        %929 = vmatmul.mubr.f32.gmra.mrb[0].mxu0 %v492
        %v930 = vpop.f32.mrb[0].mxu0
        %v931 = vadd.f32 %v409, %v930
        %v932 = vpop.f32.mrb[0].mxu0
        %v933 = vadd.f32 %v413, %v932
        %934 = vmatprep.mubr.f32.mxu0 0.0
        %935 = vmatmul.mubr.f32.gmra.mrb[0].mxu0 %v495
        %v936 = vpop.f32.mrb[0].mxu0
        %v937 = vadd.f32 %v409, %v936
        %v938 = vpop.f32.mrb[0].mxu0
        %v939 = vadd.f32 %v413, %v938
        %940 = vmatprep.mubr.f32.mxu0 0.0
        %941 = vmatmul.mubr.f32.gmra.mrb[0].mxu0 %v498
        %v942 = vpop.f32.mrb[0].mxu0
        %v943 = vadd.f32 %v409, %v942
        %v944 = vpop.f32.mrb[0].mxu0
        %v945 = vadd.f32 %v413, %v944
        %946 = vmatprep.mubr.f32.mxu0 0.0
        %947 = vmatmul.mubr.f32.gmra.mrb[0].mxu0 %v501
        %v948 = vpop.f32.mrb[0].mxu0
        %v949 = vadd.f32 %v409, %v948
        %v950 = vpop.f32.mrb[0].mxu0
        %v951 = vadd.f32 %v413, %v950
        %952 = vmatprep.mubr.f32.mxu0 0.0
        %953 = vmatmul.mubr.f32.gmra.mrb[0].mxu0 %v504
        %v954 = vpop.f32.mrb[0].mxu0
        %v955 = vadd.f32 %v409, %v954
        %v956 = vpop.f32.mrb[0].mxu0
        %v957 = vadd.f32 %v413, %v956
        %958 = vmatprep.mubr.f32.mxu0 0.0
        %959 = vmatmul.mubr.f32.gmra.mrb[0].mxu0 %v507
        %v960 = vpop.f32.mrb[0].mxu0
        %v961 = vadd.f32 %v409, %v960
        %v962 = vpop.f32.mrb[0].mxu0
        %v963 = vadd.f32 %v413, %v962
        %964 = vmatprep.mubr.f32.mxu0 0.0
        %965 = vmatmul.mubr.f32.gmra.mrb[0].mxu0 %v510
        %v966 = vpop.f32.mrb[0].mxu0
        %v967 = vadd.f32 %v409, %v966
        %v968 = vpop.f32.mrb[0].mxu0
        %v969 = vadd.f32 %v413, %v968
        %970 = vmatprep.mubr.f32.mxu0 0.0
        %971 = vmatmul.mubr.f32.gmra.mrb[0].mxu0 %v513
        %v972 = vpop.f32.mrb[0].mxu0
        %v973 = vadd.f32 %v409, %v972
        %v974 = vpop.f32.mrb[0].mxu0
        %v975 = vadd.f32 %v413, %v974
        %976 = vmatprep.mubr.f32.mxu0 0.0
        %977 = vmatmul.mubr.f32.gmra.mrb[0].mxu0 %v516
        %v978 = vpop.f32.mrb[0].mxu0
        %v979 = vadd.f32 %v409, %v978
        %v980 = vpop.f32.mrb[0].mxu0
        %v981 = vadd.f32 %v413, %v980
        %982 = vmatprep.mubr.f32.mxu0 0.0
        %983 = vmatmul.mubr.f32.gmra.mrb[0].mxu0 %v519
        %v984 = vpop.f32.mrb[0].mxu0
        %v985 = vadd.f32 %v409, %v984
        %v986 = vpop.f32.mrb[0].mxu0
        %v987 = vadd.f32 %v413, %v986
        %988 = vmatprep.mubr.f32.mxu0 0.0
        %989 = vmatmul.mubr.f32.gmra.mrb[0].mxu0 %v522
        %v990 = vpop.f32.mrb[0].mxu0
        %v991 = vadd.f32 %v409, %v990
        %v992 = vpop.f32.mrb[0].mxu0
        %v993 = vadd.f32 %v413, %v992
        %994 = vmatprep.mubr.f32.mxu0 0.0
        %995 = vmatmul.mubr.f32.gmra.mrb[0].mxu0 %v525
        %v996 = vpop.f32.mrb[0].mxu0
        %v997 = vadd.f32 %v409, %v996
        %v998 = vpop.f32.mrb[0].mxu0
        %v999 = vadd.f32 %v413, %v998
        %1000 = vmatprep.mubr.f32.mxu0 0.0
        %1001 = vmatmul.mubr.f32.gmra.mrb[0].mxu0 %v528
        %v1002 = vpop.f32.mrb[0].mxu0
        %v1003 = vadd.f32 %v409, %v1002
        %v1004 = vpop.f32.mrb[0].mxu0
        %v1005 = vadd.f32 %v413, %v1004
        %1006 = vmatprep.mubr.f32.mxu0 0.0
        %1007 = vmatmul.mubr.f32.gmra.mrb[0].mxu0 %v531
        %v1008 = vpop.f32.mrb[0].mxu0
        %v1009 = vadd.f32 %v409, %v1008
        %v1010 = vpop.f32.mrb[0].mxu0
        %v1011 = vadd.f32 %v413, %v1010
        %1012 = vmatprep.mubr.f32.mxu0 0.0
        %1013 = vmatmul.mubr.f32.gmra.mrb[0].mxu0 %v534
        %v1014 = vpop.f32.mrb[0].mxu0
        %v1015 = vadd.f32 %v409, %v1014
        %v1016 = vpop.f32.mrb[0].mxu0
        %v1017 = vadd.f32 %v413, %v1016
        %1018 = vmatprep.mubr.f32.mxu0 0.0
        %1019 = vmatmul.mubr.f32.gmra.mrb[0].mxu0 %v537
        %v1020 = vpop.f32.mrb[0].mxu0
        %v1021 = vadd.f32 %v409, %v1020
        %v1022 = vpop.f32.mrb[0].mxu0
        %v1023 = vadd.f32 %v413, %v1022
        %1024 = vmatprep.mubr.f32.mxu0 0.0
        %1025 = vmatmul.mubr.f32.gmra.mrb[0].mxu0 %v540
        %v1026 = vpop.f32.mrb[0].mxu0
        %v1027 = vadd.f32 %v409, %v1026
        %v1028 = vpop.f32.mrb[0].mxu0
        %v1029 = vadd.f32 %v413, %v1028
        %1030 = vmatprep.mubr.f32.mxu0 0.0
        %1031 = vmatmul.mubr.f32.gmra.mrb[0].mxu0 %v543
        %v1032 = vpop.f32.mrb[0].mxu0
        %v1033 = vadd.f32 %v409, %v1032
        %v1034 = vpop.f32.mrb[0].mxu0
        %v1035 = vadd.f32 %v413, %v1034
        %1036 = vmatprep.mubr.f32.mxu0 0.0
        %1037 = vmatmul.mubr.f32.gmra.mrb[0].mxu0 %v546
        %v1038 = vpop.f32.mrb[0].mxu0
        %v1039 = vadd.f32 %v409, %v1038
        %v1040 = vpop.f32.mrb[0].mxu0
        %v1041 = vadd.f32 %v413, %v1040
        %1042 = vmatprep.mubr.f32.mxu0 0.0
        %1043 = vmatmul.mubr.f32.gmra.mrb[0].mxu0 %v549
        %v1044 = vpop.f32.mrb[0].mxu0
        %v1045 = vadd.f32 %v409, %v1044
        %v1046 = vpop.f32.mrb[0].mxu0
        %v1047 = vadd.f32 %v413, %v1046
        %1048 = vmatprep.mubr.f32.mxu0 0.0
        %1049 = vmatmul.mubr.f32.gmra.mrb[0].mxu0 %v552
        %v1050 = vpop.f32.mrb[0].mxu0
        %v1051 = vadd.f32 %v409, %v1050
        %v1052 = vpop.f32.mrb[0].mxu0
        %v1053 = vadd.f32 %v413, %v1052
        %1054 = vmatprep.mubr.f32.mxu0 0.0
        %1055 = vmatmul.mubr.f32.gmra.mrb[0].mxu0 %v555
        %v1056 = vpop.f32.mrb[0].mxu0
        %v1057 = vadd.f32 %v409, %v1056
        %v1058 = vpop.f32.mrb[0].mxu0
        %v1059 = vadd.f32 %v413, %v1058
        %1060 = vmatprep.mubr.f32.mxu0 0.0
        %1061 = vmatmul.mubr.f32.gmra.mrb[0].mxu0 %v558
        %v1062 = vpop.f32.mrb[0].mxu0
        %v1063 = vadd.f32 %v409, %v1062
        %v1064 = vpop.f32.mrb[0].mxu0
        %v1065 = vadd.f32 %v413, %v1064
        %1066 = vmatprep.mubr.f32.mxu0 0.0
        %1067 = vmatmul.mubr.f32.gmra.mrb[0].mxu0 %v561
        %v1068 = vpop.f32.mrb[0].mxu0
        %v1069 = vadd.f32 %v409, %v1068
        %v1070 = vpop.f32.mrb[0].mxu0
        %v1071 = vadd.f32 %v413, %v1070
        %1072 = vmatprep.mubr.f32.mxu0 0.0
        %1073 = vmatmul.mubr.f32.gmra.mrb[0].mxu0 %v564
        %v1074 = vpop.f32.mrb[0].mxu0
        %v1075 = vadd.f32 %v409, %v1074
        %v1076 = vpop.f32.mrb[0].mxu0
        %v1077 = vadd.f32 %v413, %v1076
        %1078 = vmatprep.mubr.f32.mxu0 0.0
        %1079 = vmatmul.mubr.f32.gmra.mrb[0].mxu0 %v567
        %v1080 = vpop.f32.mrb[0].mxu0
        %v1081 = vadd.f32 %v409, %v1080
        %v1082 = vpop.f32.mrb[0].mxu0
        %v1083 = vadd.f32 %v413, %v1082
        %1084 = vmatprep.mubr.f32.mxu0 0.0
        %1085 = vmatmul.mubr.f32.gmra.mrb[0].mxu0 %v570
        %v1086 = vpop.f32.mrb[0].mxu0
        %v1087 = vadd.f32 %v409, %v1086
        %v1088 = vpop.f32.mrb[0].mxu0
        %v1089 = vadd.f32 %v413, %v1088
        %1090 = vmatprep.mubr.f32.mxu0 0.0
        %1091 = vmatmul.mubr.f32.gmra.mrb[0].mxu0 %v573
        %v1092 = vpop.f32.mrb[0].mxu0
        %v1093 = vadd.f32 %v409, %v1092
        %v1094 = vpop.f32.mrb[0].mxu0
        %v1095 = vadd.f32 %v413, %v1094
        %1096 = vmatprep.mubr.f32.mxu0 0.0
        %1097 = vmatmul.mubr.f32.gmra.mrb[0].mxu0 %v576
        %v1098 = vpop.f32.mrb[0].mxu0
        %v1099 = vadd.f32 %v409, %v1098
        %v1100 = vpop.f32.mrb[0].mxu0
        %v1101 = vadd.f32 %v413, %v1100
        %1102 = vmatprep.mubr.f32.mxu0 0.0
        %1103 = vmatmul.mubr.f32.gmra.mrb[0].mxu0 %v579
        %v1104 = vpop.f32.mrb[0].mxu0
        %v1105 = vadd.f32 %v409, %v1104
        %v1106 = vpop.f32.mrb[0].mxu0
        %v1107 = vadd.f32 %v413, %v1106
        %1108 = vmatprep.mubr.f32.mxu0 0.0
        %1109 = vmatmul.mubr.f32.gmra.mrb[0].mxu0 %v582
        %v1110 = vpop.f32.mrb[0].mxu0
        %v1111 = vadd.f32 %v409, %v1110
        %v1112 = vpop.f32.mrb[0].mxu0
        %v1113 = vadd.f32 %v413, %v1112
        %1114 = vmatprep.mubr.f32.mxu0 0.0
        %1115 = vmatmul.mubr.f32.gmra.mrb[0].mxu0 %v585
        %v1116 = vpop.f32.mrb[0].mxu0
        %v1117 = vadd.f32 %v409, %v1116
        %v1118 = vpop.f32.mrb[0].mxu0
        %v1119 = vadd.f32 %v413, %v1118
        %1120 = vmatprep.mubr.f32.mxu0 0.0
        %1121 = vmatmul.mubr.f32.gmra.mrb[0].mxu0 %v588
        %v1122 = vpop.f32.mrb[0].mxu0
        %v1123 = vadd.f32 %v409, %v1122
        %v1124 = vpop.f32.mrb[0].mxu0
        %v1125 = vadd.f32 %v413, %v1124
        %1126 = vmatprep.mubr.f32.mxu0 0.0
        %1127 = vmatmul.mubr.f32.gmra.mrb[0].mxu0 %v591
        %v1128 = vpop.f32.mrb[0].mxu0
        %v1129 = vadd.f32 %v409, %v1128
        %v1130 = vpop.f32.mrb[0].mxu0
        %v1131 = vadd.f32 %v413, %v1130
        %1132 = vmatprep.mubr.f32.mxu0 0.0
        %1133 = vmatmul.mubr.f32.gmra.mrb[0].mxu0 %v594
        %v1134 = vpop.f32.mrb[0].mxu0
        %v1135 = vadd.f32 %v409, %v1134
        %v1136 = vpop.f32.mrb[0].mxu0
        %v1137 = vadd.f32 %v413, %v1136
        %1138 = vmatprep.mubr.f32.mxu0 0.0
        %1139 = vmatmul.mubr.f32.gmra.mrb[0].mxu0 %v597
        %v1140 = vpop.f32.mrb[0].mxu0
        %v1141 = vadd.f32 %v409, %v1140
        %v1142 = vpop.f32.mrb[0].mxu0
        %v1143 = vadd.f32 %v413, %v1142
        %1144 = vmatprep.mubr.f32.mxu0 0.0
        %1145 = vmatmul.mubr.f32.gmra.mrb[0].mxu0 %v600
        %v1146 = vpop.f32.mrb[0].mxu0
        %v1147 = vadd.f32 %v409, %v1146
        %v1148 = vpop.f32.mrb[0].mxu0
        %v1149 = vadd.f32 %v413, %v1148
        %1150 = vmatprep.mubr.f32.mxu0 0.0
        %1151 = vmatmul.mubr.f32.gmra.mrb[0].mxu0 %v603
        %v1152 = vpop.f32.mrb[0].mxu0
        %v1153 = vadd.f32 %v409, %v1152
        %v1154 = vpop.f32.mrb[0].mxu0
        %v1155 = vadd.f32 %v413, %v1154
        %1156 = vmatprep.mubr.f32.mxu0 0.0
        %1157 = vmatmul.mubr.f32.gmra.mrb[0].mxu0 %v606
        %v1158 = vpop.f32.mrb[0].mxu0
        %v1159 = vadd.f32 %v409, %v1158
        %v1160 = vpop.f32.mrb[0].mxu0
        %v1161 = vadd.f32 %v413, %v1160
        %1162 = vmatprep.mubr.f32.mxu0 0.0
        %1163 = vmatmul.mubr.f32.gmra.mrb[0].mxu0 %v609
        %v1164 = vpop.f32.mrb[0].mxu0
        %v1165 = vadd.f32 %v409, %v1164
        %v1166 = vpop.f32.mrb[0].mxu0
        %v1167 = vadd.f32 %v413, %v1166
        %1168 = vmatprep.mubr.f32.mxu0 0.0
        %1169 = vmatmul.mubr.f32.gmra.mrb[0].mxu0 %v612
        %v1170 = vpop.f32.mrb[0].mxu0
        %v1171 = vadd.f32 %v409, %v1170
        %v1172 = vpop.f32.mrb[0].mxu0
        %v1173 = vadd.f32 %v413, %v1172
        %1174 = vmatprep.mubr.f32.mxu0 0.0
        %1175 = vmatmul.mubr.f32.gmra.mrb[0].mxu0 %v615
        %v1176 = vpop.f32.mrb[0].mxu0
        %v1177 = vadd.f32 %v409, %v1176
        %v1178 = vpop.f32.mrb[0].mxu0
        %v1179 = vadd.f32 %v413, %v1178
        %1180 = vmatprep.mubr.f32.mxu0 0.0
        %1181 = vmatmul.mubr.f32.gmra.mrb[0].mxu0 %v618
        %v1182 = vpop.f32.mrb[0].mxu0
        %v1183 = vadd.f32 %v409, %v1182
        %v1184 = vpop.f32.mrb[0].mxu0
        %v1185 = vadd.f32 %v413, %v1184
        %1186 = vmatprep.mubr.f32.mxu0 0.0
        %1187 = vmatmul.mubr.f32.gmra.mrb[0].mxu0 %v621
        %v1188 = vpop.f32.mrb[0].mxu0
        %v1189 = vadd.f32 %v409, %v1188
        %v1190 = vpop.f32.mrb[0].mxu0
        %v1191 = vadd.f32 %v413, %v1190
        %1192 = vmatprep.mubr.f32.mxu0 0.0
        %1193 = vmatmul.mubr.f32.gmra.mrb[0].mxu0 %v624
        %v1194 = vpop.f32.mrb[0].mxu0
        %v1195 = vadd.f32 %v409, %v1194
        %v1196 = vpop.f32.mrb[0].mxu0
        %v1197 = vadd.f32 %v413, %v1196
        %1198 = vmatprep.mubr.f32.mxu0 0.0
        %1199 = vmatmul.mubr.f32.gmra.mrb[0].mxu0 %v627
        %v1200 = vpop.f32.mrb[0].mxu0
        %v1201 = vadd.f32 %v409, %v1200
        %v1202 = vpop.f32.mrb[0].mxu0
        %v1203 = vadd.f32 %v413, %v1202
        %1204 = vmatprep.mubr.f32.mxu0 0.0
        %1205 = vmatmul.mubr.f32.gmra.mrb[0].mxu0 %v630
        %v1206 = vpop.f32.mrb[0].mxu0
        %v1207 = vadd.f32 %v409, %v1206
        %v1208 = vpop.f32.mrb[0].mxu0
        %v1209 = vadd.f32 %v413, %v1208
        %1210 = vmatprep.mubr.f32.mxu0 0.0
        %1211 = vmatmul.mubr.f32.gmra.mrb[0].mxu0 %v633
        %v1212 = vpop.f32.mrb[0].mxu0
        %v1213 = vadd.f32 %v409, %v1212
        %v1214 = vpop.f32.mrb[0].mxu0
        %v1215 = vadd.f32 %v413, %v1214
        %1216 = vmatprep.mubr.f32.mxu0 0.0
        %1217 = vmatmul.mubr.f32.gmra.mrb[0].mxu0 %v636
        %v1218 = vpop.f32.mrb[0].mxu0
        %v1219 = vadd.f32 %v409, %v1218
        %v1220 = vpop.f32.mrb[0].mxu0
        %v1221 = vadd.f32 %v413, %v1220
        %1222 = vmatprep.mubr.f32.mxu0 0.0
        %1223 = vmatmul.mubr.f32.gmra.mrb[0].mxu0 %v639
        %v1224 = vpop.f32.mrb[0].mxu0
        %v1225 = vadd.f32 %v409, %v1224
        %v1226 = vpop.f32.mrb[0].mxu0
        %v1227 = vadd.f32 %v413, %v1226
        %1228 = vmatprep.mubr.f32.mxu0 0.0
        %1229 = vmatmul.mubr.f32.gmra.mrb[0].mxu0 %v642
        %v1230 = vpop.f32.mrb[0].mxu0
        %v1231 = vadd.f32 %v409, %v1230
        %v1232 = vpop.f32.mrb[0].mxu0
        %v1233 = vadd.f32 %v413, %v1232
        %1234 = vmatprep.mubr.f32.mxu0 0.0
        %1235 = vmatmul.mubr.f32.gmra.mrb[0].mxu0 %v645
        %v1236 = vpop.f32.mrb[0].mxu0
        %v1237 = vadd.f32 %v409, %v1236
        %v1238 = vpop.f32.mrb[0].mxu0
        %v1239 = vadd.f32 %v413, %v1238
        %1240 = vmatprep.mubr.f32.mxu0 0.0
        %1241 = vmatmul.mubr.f32.gmra.mrb[0].mxu0 %v648
        %v1242 = vpop.f32.mrb[0].mxu0
        %v1243 = vadd.f32 %v409, %v1242
        %v1244 = vpop.f32.mrb[0].mxu0
        %v1245 = vadd.f32 %v413, %v1244
        %1246 = vmatprep.mubr.f32.mxu0 0.0
        %1247 = vmatmul.mubr.f32.gmra.mrb[0].mxu0 %v651
        %v1248 = vpop.f32.mrb[0].mxu0
        %v1249 = vadd.f32 %v409, %v1248
        %v1250 = vpop.f32.mrb[0].mxu0
        %v1251 = vadd.f32 %v413, %v1250
        %1252 = vmatprep.mubr.f32.mxu0 0.0
        %1253 = vmatmul.mubr.f32.gmra.mrb[0].mxu0 %v654
        %v1254 = vpop.f32.mrb[0].mxu0
        %v1255 = vadd.f32 %v409, %v1254
        %v1256 = vpop.f32.mrb[0].mxu0
        %v1257 = vadd.f32 %v413, %v1256
        %1258 = vmatprep.mubr.f32.mxu0 0.0
        %1259 = vmatmul.mubr.f32.gmra.mrb[0].mxu0 %v657
        %v1260 = vpop.f32.mrb[0].mxu0
        %v1261 = vadd.f32 %v409, %v1260
        %v1262 = vpop.f32.mrb[0].mxu0
        %v1263 = vadd.f32 %v413, %v1262
        %1264 = vmatprep.mubr.f32.mxu0 0.0
        %1265 = vmatmul.mubr.f32.gmra.mrb[0].mxu0 %v660
        %v1266 = vpop.f32.mrb[0].mxu0
        %v1267 = vadd.f32 %v409, %v1266
        %v1268 = vpop.f32.mrb[0].mxu0
        %v1269 = vadd.f32 %v413, %v1268
        %1270 = vmatprep.mubr.f32.mxu0 0.0
        %1271 = vmatmul.mubr.f32.gmra.mrb[0].mxu0 %v663
        %v1272 = vpop.f32.mrb[0].mxu0
        %v1273 = vadd.f32 %v409, %v1272
        %v1274 = vpop.f32.mrb[0].mxu0
        %v1275 = vadd.f32 %v413, %v1274
        %1276 = vmatprep.mubr.f32.mxu0 0.0
        %1277 = vmatmul.mubr.f32.gmra.mrb[0].mxu0 %v666
        %v1278 = vpop.f32.mrb[0].mxu0
        %v1279 = vadd.f32 %v409, %v1278
        %v1280 = vpop.f32.mrb[0].mxu0
        %v1281 = vadd.f32 %v413, %v1280
        %1282 = vmatprep.mubr.f32.mxu0 0.0
        %1283 = vmatmul.mubr.f32.gmra.mrb[0].mxu0 %v669
        %v1284 = vpop.f32.mrb[0].mxu0
        %v1285 = vadd.f32 %v409, %v1284
        %v1286 = vpop.f32.mrb[0].mxu0
        %v1287 = vadd.f32 %v413, %v1286
        %1288 = vmatprep.mubr.f32.mxu0 0.0
        %1289 = vmatmul.mubr.f32.gmra.mrb[0].mxu0 %v672
        %v1290 = vpop.f32.mrb[0].mxu0
        %v1291 = vadd.f32 %v409, %v1290
        %v1292 = vpop.f32.mrb[0].mxu0
        %v1293 = vadd.f32 %v413, %v1292
        %1294 = vmatprep.mubr.f32.mxu0 0.0
        %1295 = vmatmul.mubr.f32.gmra.mrb[0].mxu0 %v675
        %v1296 = vpop.f32.mrb[0].mxu0
        %v1297 = vadd.f32 %v409, %v1296
        %v1298 = vpop.f32.mrb[0].mxu0
        %v1299 = vadd.f32 %v413, %v1298
        %1300 = vmatprep.mubr.f32.mxu0 0.0
        %1301 = vmatmul.mubr.f32.gmra.mrb[0].mxu0 %v678
        %v1302 = vpop.f32.mrb[0].mxu0
        %v1303 = vadd.f32 %v409, %v1302
        %v1304 = vpop.f32.mrb[0].mxu0
        %v1305 = vadd.f32 %v413, %v1304
        %1306 = vmatprep.mubr.f32.mxu0 0.0
        %1307 = vmatmul.mubr.f32.gmra.mrb[0].mxu0 %v681
        %v1308 = vpop.f32.mrb[0].mxu0
        %v1309 = vadd.f32 %v409, %v1308
        %v1310 = vpop.f32.mrb[0].mxu0
        %v1311 = vadd.f32 %v413, %v1310
        %1312 = vmatprep.mubr.f32.mxu0 0.0
        %1313 = vmatmul.mubr.f32.gmra.mrb[0].mxu0 %v684
        %v1314 = vpop.f32.mrb[0].mxu0
        %v1315 = vadd.f32 %v409, %v1314
        %v1316 = vpop.f32.mrb[0].mxu0
        %v1317 = vadd.f32 %v413, %v1316
        %1318 = vmatprep.mubr.f32.mxu0 0.0
        %1319 = vmatmul.mubr.f32.gmra.mrb[0].mxu0 %v687
        %v1320 = vpop.f32.mrb[0].mxu0
        %v1321 = vadd.f32 %v409, %v1320
        %v1322 = vpop.f32.mrb[0].mxu0
        %v1323 = vadd.f32 %v413, %v1322
        %1324 = vmatprep.mubr.f32.mxu0 0.0
        %1325 = vmatmul.mubr.f32.gmra.mrb[0].mxu0 %v690
        %v1326 = vpop.f32.mrb[0].mxu0
        %v1327 = vadd.f32 %v409, %v1326
        %v1328 = vpop.f32.mrb[0].mxu0
        %v1329 = vadd.f32 %v413, %v1328
        %1330 = vmatprep.mubr.f32.mxu0 0.0
        %1331 = vmatmul.mubr.f32.gmra.mrb[0].mxu0 %v693
        %v1332 = vpop.f32.mrb[0].mxu0
        %v1333 = vadd.f32 %v409, %v1332
        %v1334 = vpop.f32.mrb[0].mxu0
        %v1335 = vadd.f32 %v413, %v1334
        %1336 = vmatprep.mubr.f32.mxu0 0.0
        %1337 = vmatmul.mubr.f32.gmra.mrb[0].mxu0 %v696
        %v1338 = vpop.f32.mrb[0].mxu0
        %v1339 = vadd.f32 %v409, %v1338
        %v1340 = vpop.f32.mrb[0].mxu0
        %v1341 = vadd.f32 %v413, %v1340
        %1342 = vmatprep.mubr.f32.mxu0 0.0
        %1343 = vmatmul.mubr.f32.gmra.mrb[0].mxu0 %v699
        %v1344 = vpop.f32.mrb[0].mxu0
        %v1345 = vadd.f32 %v409, %v1344
        %v1346 = vpop.f32.mrb[0].mxu0
        %v1347 = vadd.f32 %v413, %v1346
        %1348 = vmatprep.mubr.f32.mxu0 0.0
        %1349 = vmatmul.mubr.f32.gmra.mrb[0].mxu0 %v702
        %v1350 = vpop.f32.mrb[0].mxu0
        %v1351 = vadd.f32 %v409, %v1350
        %v1352 = vpop.f32.mrb[0].mxu0
        %v1353 = vadd.f32 %v413, %v1352
        %1354 = vmatprep.mubr.f32.mxu0 0.0
        %1355 = vmatmul.mubr.f32.gmra.mrb[0].mxu0 %v705
        %v1356 = vpop.f32.mrb[0].mxu0
        %v1357 = vadd.f32 %v409, %v1356
        %v1358 = vpop.f32.mrb[0].mxu0
        %v1359 = vadd.f32 %v413, %v1358
        %1360 = vmatprep.mubr.f32.mxu0 0.0
        %1361 = vmatmul.mubr.f32.gmra.mrb[0].mxu0 %v708
        %v1362 = vpop.f32.mrb[0].mxu0
        %v1363 = vadd.f32 %v409, %v1362
        %v1364 = vpop.f32.mrb[0].mxu0
        %v1365 = vadd.f32 %v413, %v1364
        %1366 = vmatprep.mubr.f32.mxu0 0.0
        %1367 = vmatmul.mubr.f32.gmra.mrb[0].mxu0 %v711
        %v1368 = vpop.f32.mrb[0].mxu0
        %v1369 = vadd.f32 %v409, %v1368
        %v1370 = vpop.f32.mrb[0].mxu0
        %v1371 = vadd.f32 %v413, %v1370
        %1372 = vmatprep.mubr.f32.mxu0 0.0
        %1373 = vmatmul.mubr.f32.gmra.mrb[0].mxu0 %v714
        %v1374 = vpop.f32.mrb[0].mxu0
        %v1375 = vadd.f32 %v409, %v1374
        %v1376 = vpop.f32.mrb[0].mxu0
        %v1377 = vadd.f32 %v413, %v1376
        %1378 = vdwg.mxu0
        %1379 = vmatprep.subr.mxu0 0.0
        %1380 = vmatpush1.msra.mxu0 %v376
        %1381 = vmatprep.subr.mxu0 0.0
        %1382 = vmatpush1.msra.mxu0 %v379
        %1383 = vmatprep.subr.mxu0 0.0
        %1384 = vmatpush1.msra.mxu0 %v382
        %1385 = vmatprep.subr.mxu0 0.0
        %1386 = vmatpush1.msra.mxu0 %v385
        %1387 = vmatprep.subr.mxu0 0.0
        %1388 = vmatpush1.msra.mxu0 %v388
        %1389 = vmatprep.subr.mxu0 0.0
        %1390 = vmatpush1.msra.mxu0 %v391
        %1391 = vmatprep.subr.mxu0 0.0
        %1392 = vmatpush1.msra.mxu0 %v394
        %1393 = vmatprep.subr.mxu0 0.0
        %1394 = vmatpush1.msra.mxu0 %v397
        %1395 = vmatprep.subr.mxu0 0.0
        %1396 = vmatpush1.msra.mxu0 %v400
        %1397 = vmatprep.subr.mxu0 0.0
        %1398 = vmatpush1.msra.mxu0 %v724
        %1399 = vmatprep.subr.mxu0 0.0
        %1400 = vmatpush1.msra.mxu0 0.0
        %1401 = vmatprep.subr.mxu0 0.0
        %1402 = vmatpush1.msra.mxu0 0.0
        %1403 = vmatprep.subr.mxu0 0.0
        %1404 = vmatpush1.msra.mxu0 0.0
        %1405 = vmatprep.subr.mxu0 0.0
        %1406 = vmatpush1.msra.mxu0 0.0
        %1407 = vmatprep.subr.mxu0 0.0
        %1408 = vmatpush1.msra.mxu0 0.0
        %1409 = vmatprep.subr.mxu0 0.0
        %1410 = vmatpush1.msra.mxu0 0.0
        %1411 = vmatprep.subr.mxu0 0.0
        %1412 = vmatpush1.msra.mxu0 0.0
        %1413 = vmatprep.subr.mxu0 0.0
        %1414 = vmatpush1.msra.mxu0 0.0
        %1415 = vmatprep.subr.mxu0 0.0
        %1416 = vmatpush1.msra.mxu0 0.0
        %1417 = vmatprep.subr.mxu0 0.0
        %1418 = vmatpush1.msra.mxu0 0.0
        %1419 = vmatprep.subr.mxu0 0.0
        %1420 = vmatpush1.msra.mxu0 0.0
        %1421 = vmatprep.subr.mxu0 0.0
        %1422 = vmatpush1.msra.mxu0 0.0
        %1423 = vmatprep.subr.mxu0 0.0
        %1424 = vmatpush1.msra.mxu0 0.0
        %1425 = vmatprep.subr.mxu0 0.0
        %1426 = vmatpush1.msra.mxu0 0.0
        %1427 = vmatprep.subr.mxu0 0.0
        %1428 = vmatpush1.msra.mxu0 0.0
        %1429 = vmatprep.subr.mxu0 0.0
        %1430 = vmatpush1.msra.mxu0 0.0
        %1431 = vmatprep.subr.mxu0 0.0
        %1432 = vmatpush1.msra.mxu0 0.0
        %1433 = vmatprep.subr.mxu0 0.0
        %1434 = vmatpush1.msra.mxu0 0.0
        %1435 = vmatprep.subr.mxu0 0.0
        %1436 = vmatpush1.msra.mxu0 0.0
        %1437 = vmatprep.subr.mxu0 0.0
        %1438 = vmatpush1.msra.mxu0 0.0
        %1439 = vmatprep.subr.mxu0 0.0
        %1440 = vmatpush1.msra.mxu0 0.0
        %1441 = vmatprep.subr.mxu0 0.0
        %1442 = vmatpush1.msra.mxu0 0.0
        %1443 = vmatprep.mubr.f32.mxu0 0.0
        %1444 = vmatmul.mubr.f32.gmra.mrb[0].mxu0 %v423
        %v1445 = vpop.f32.mrb[0].mxu0
        %v1446 = vadd.f32 %v417, %v1445
        %v1447 = vpop.f32.mrb[0].mxu0
        %1448 = vmatprep.mubr.f32.mxu0 0.0
        %1449 = vmatmul.mubr.f32.gmra.mrb[0].mxu0 %v426
        %v1450 = vpop.f32.mrb[0].mxu0
        %v1451 = vadd.f32 %v417, %v1450
        %v1452 = vpop.f32.mrb[0].mxu0
        %1453 = vmatprep.mubr.f32.mxu0 0.0
        %1454 = vmatmul.mubr.f32.gmra.mrb[0].mxu0 %v429
        %v1455 = vpop.f32.mrb[0].mxu0
        %v1456 = vadd.f32 %v417, %v1455
        %v1457 = vpop.f32.mrb[0].mxu0
        %1458 = vmatprep.mubr.f32.mxu0 0.0
        %1459 = vmatmul.mubr.f32.gmra.mrb[0].mxu0 %v432
        %v1460 = vpop.f32.mrb[0].mxu0
        %v1461 = vadd.f32 %v417, %v1460
        %v1462 = vpop.f32.mrb[0].mxu0
        %1463 = vmatprep.mubr.f32.mxu0 0.0
        %1464 = vmatmul.mubr.f32.gmra.mrb[0].mxu0 %v435
        %v1465 = vpop.f32.mrb[0].mxu0
        %v1466 = vadd.f32 %v417, %v1465
        %v1467 = vpop.f32.mrb[0].mxu0
        %1468 = vmatprep.mubr.f32.mxu0 0.0
        %1469 = vmatmul.mubr.f32.gmra.mrb[0].mxu0 %v438
        %v1470 = vpop.f32.mrb[0].mxu0
        %v1471 = vadd.f32 %v417, %v1470
        %v1472 = vpop.f32.mrb[0].mxu0
        %1473 = vmatprep.mubr.f32.mxu0 0.0
        %1474 = vmatmul.mubr.f32.gmra.mrb[0].mxu0 %v441
        %v1475 = vpop.f32.mrb[0].mxu0
        %v1476 = vadd.f32 %v417, %v1475
        %v1477 = vpop.f32.mrb[0].mxu0
        %1478 = vmatprep.mubr.f32.mxu0 0.0
        %1479 = vmatmul.mubr.f32.gmra.mrb[0].mxu0 %v444
        %v1480 = vpop.f32.mrb[0].mxu0
        %v1481 = vadd.f32 %v417, %v1480
        %v1482 = vpop.f32.mrb[0].mxu0
        %1483 = vmatprep.mubr.f32.mxu0 0.0
        %1484 = vmatmul.mubr.f32.gmra.mrb[0].mxu0 %v447
        %v1485 = vpop.f32.mrb[0].mxu0
        %v1486 = vadd.f32 %v417, %v1485
        %v1487 = vpop.f32.mrb[0].mxu0
        %1488 = vmatprep.mubr.f32.mxu0 0.0
        %1489 = vmatmul.mubr.f32.gmra.mrb[0].mxu0 %v450
        %v1490 = vpop.f32.mrb[0].mxu0
        %v1491 = vadd.f32 %v417, %v1490
        %v1492 = vpop.f32.mrb[0].mxu0
        %1493 = vmatprep.mubr.f32.mxu0 0.0
        %1494 = vmatmul.mubr.f32.gmra.mrb[0].mxu0 %v453
        %v1495 = vpop.f32.mrb[0].mxu0
        %v1496 = vadd.f32 %v417, %v1495
        %v1497 = vpop.f32.mrb[0].mxu0
        %1498 = vmatprep.mubr.f32.mxu0 0.0
        %1499 = vmatmul.mubr.f32.gmra.mrb[0].mxu0 %v456
        %v1500 = vpop.f32.mrb[0].mxu0
        %v1501 = vadd.f32 %v417, %v1500
        %v1502 = vpop.f32.mrb[0].mxu0
        %1503 = vmatprep.mubr.f32.mxu0 0.0
        %1504 = vmatmul.mubr.f32.gmra.mrb[0].mxu0 %v459
        %v1505 = vpop.f32.mrb[0].mxu0
        %v1506 = vadd.f32 %v417, %v1505
        %v1507 = vpop.f32.mrb[0].mxu0
        %1508 = vmatprep.mubr.f32.mxu0 0.0
        %1509 = vmatmul.mubr.f32.gmra.mrb[0].mxu0 %v462
        %v1510 = vpop.f32.mrb[0].mxu0
        %v1511 = vadd.f32 %v417, %v1510
        %v1512 = vpop.f32.mrb[0].mxu0
        %1513 = vmatprep.mubr.f32.mxu0 0.0
        %1514 = vmatmul.mubr.f32.gmra.mrb[0].mxu0 %v465
        %v1515 = vpop.f32.mrb[0].mxu0
        %v1516 = vadd.f32 %v417, %v1515
        %v1517 = vpop.f32.mrb[0].mxu0
        %1518 = vmatprep.mubr.f32.mxu0 0.0
        %1519 = vmatmul.mubr.f32.gmra.mrb[0].mxu0 %v468
        %v1520 = vpop.f32.mrb[0].mxu0
        %v1521 = vadd.f32 %v417, %v1520
        %v1522 = vpop.f32.mrb[0].mxu0
        %1523 = vmatprep.mubr.f32.mxu0 0.0
        %1524 = vmatmul.mubr.f32.gmra.mrb[0].mxu0 %v471
        %v1525 = vpop.f32.mrb[0].mxu0
        %v1526 = vadd.f32 %v417, %v1525
        %v1527 = vpop.f32.mrb[0].mxu0
        %1528 = vmatprep.mubr.f32.mxu0 0.0
        %1529 = vmatmul.mubr.f32.gmra.mrb[0].mxu0 %v474
        %v1530 = vpop.f32.mrb[0].mxu0
        %v1531 = vadd.f32 %v417, %v1530
        %v1532 = vpop.f32.mrb[0].mxu0
        %1533 = vmatprep.mubr.f32.mxu0 0.0
        %1534 = vmatmul.mubr.f32.gmra.mrb[0].mxu0 %v477
        %v1535 = vpop.f32.mrb[0].mxu0
        %v1536 = vadd.f32 %v417, %v1535
        %v1537 = vpop.f32.mrb[0].mxu0
        %1538 = vmatprep.mubr.f32.mxu0 0.0
        %1539 = vmatmul.mubr.f32.gmra.mrb[0].mxu0 %v480
        %v1540 = vpop.f32.mrb[0].mxu0
        %v1541 = vadd.f32 %v417, %v1540
        %v1542 = vpop.f32.mrb[0].mxu0
        %1543 = vmatprep.mubr.f32.mxu0 0.0
        %1544 = vmatmul.mubr.f32.gmra.mrb[0].mxu0 %v483
        %v1545 = vpop.f32.mrb[0].mxu0
        %v1546 = vadd.f32 %v417, %v1545
        %v1547 = vpop.f32.mrb[0].mxu0
        %1548 = vmatprep.mubr.f32.mxu0 0.0
        %1549 = vmatmul.mubr.f32.gmra.mrb[0].mxu0 %v486
        %v1550 = vpop.f32.mrb[0].mxu0
        %v1551 = vadd.f32 %v417, %v1550
        %v1552 = vpop.f32.mrb[0].mxu0
        %1553 = vmatprep.mubr.f32.mxu0 0.0
        %1554 = vmatmul.mubr.f32.gmra.mrb[0].mxu0 %v489
        %v1555 = vpop.f32.mrb[0].mxu0
        %v1556 = vadd.f32 %v417, %v1555
        %v1557 = vpop.f32.mrb[0].mxu0
        %1558 = vmatprep.mubr.f32.mxu0 0.0
        %1559 = vmatmul.mubr.f32.gmra.mrb[0].mxu0 %v492
        %v1560 = vpop.f32.mrb[0].mxu0
        %v1561 = vadd.f32 %v417, %v1560
        %v1562 = vpop.f32.mrb[0].mxu0
        %1563 = vmatprep.mubr.f32.mxu0 0.0
        %1564 = vmatmul.mubr.f32.gmra.mrb[0].mxu0 %v495
        %v1565 = vpop.f32.mrb[0].mxu0
        %v1566 = vadd.f32 %v417, %v1565
        %v1567 = vpop.f32.mrb[0].mxu0
        %1568 = vmatprep.mubr.f32.mxu0 0.0
        %1569 = vmatmul.mubr.f32.gmra.mrb[0].mxu0 %v498
        %v1570 = vpop.f32.mrb[0].mxu0
        %v1571 = vadd.f32 %v417, %v1570
        %v1572 = vpop.f32.mrb[0].mxu0
        %1573 = vmatprep.mubr.f32.mxu0 0.0
        %1574 = vmatmul.mubr.f32.gmra.mrb[0].mxu0 %v501
        %v1575 = vpop.f32.mrb[0].mxu0
        %v1576 = vadd.f32 %v417, %v1575
        %v1577 = vpop.f32.mrb[0].mxu0
        %1578 = vmatprep.mubr.f32.mxu0 0.0
        %1579 = vmatmul.mubr.f32.gmra.mrb[0].mxu0 %v504
        %v1580 = vpop.f32.mrb[0].mxu0
        %v1581 = vadd.f32 %v417, %v1580
        %v1582 = vpop.f32.mrb[0].mxu0
        %1583 = vmatprep.mubr.f32.mxu0 0.0
        %1584 = vmatmul.mubr.f32.gmra.mrb[0].mxu0 %v507
        %v1585 = vpop.f32.mrb[0].mxu0
        %v1586 = vadd.f32 %v417, %v1585
        %v1587 = vpop.f32.mrb[0].mxu0
        %1588 = vmatprep.mubr.f32.mxu0 0.0
        %1589 = vmatmul.mubr.f32.gmra.mrb[0].mxu0 %v510
        %v1590 = vpop.f32.mrb[0].mxu0
        %v1591 = vadd.f32 %v417, %v1590
        %v1592 = vpop.f32.mrb[0].mxu0
        %1593 = vmatprep.mubr.f32.mxu0 0.0
        %1594 = vmatmul.mubr.f32.gmra.mrb[0].mxu0 %v513
        %v1595 = vpop.f32.mrb[0].mxu0
        %v1596 = vadd.f32 %v417, %v1595
        %v1597 = vpop.f32.mrb[0].mxu0
        %1598 = vmatprep.mubr.f32.mxu0 0.0
        %1599 = vmatmul.mubr.f32.gmra.mrb[0].mxu0 %v516
        %v1600 = vpop.f32.mrb[0].mxu0
        %v1601 = vadd.f32 %v417, %v1600
        %v1602 = vpop.f32.mrb[0].mxu0
        %1603 = vmatprep.mubr.f32.mxu0 0.0
        %1604 = vmatmul.mubr.f32.gmra.mrb[0].mxu0 %v519
        %v1605 = vpop.f32.mrb[0].mxu0
        %v1606 = vadd.f32 %v417, %v1605
        %v1607 = vpop.f32.mrb[0].mxu0
        %1608 = vmatprep.mubr.f32.mxu0 0.0
        %1609 = vmatmul.mubr.f32.gmra.mrb[0].mxu0 %v522
        %v1610 = vpop.f32.mrb[0].mxu0
        %v1611 = vadd.f32 %v417, %v1610
        %v1612 = vpop.f32.mrb[0].mxu0
        %1613 = vmatprep.mubr.f32.mxu0 0.0
        %1614 = vmatmul.mubr.f32.gmra.mrb[0].mxu0 %v525
        %v1615 = vpop.f32.mrb[0].mxu0
        %v1616 = vadd.f32 %v417, %v1615
        %v1617 = vpop.f32.mrb[0].mxu0
        %1618 = vmatprep.mubr.f32.mxu0 0.0
        %1619 = vmatmul.mubr.f32.gmra.mrb[0].mxu0 %v528
        %v1620 = vpop.f32.mrb[0].mxu0
        %v1621 = vadd.f32 %v417, %v1620
        %v1622 = vpop.f32.mrb[0].mxu0
        %1623 = vmatprep.mubr.f32.mxu0 0.0
        %1624 = vmatmul.mubr.f32.gmra.mrb[0].mxu0 %v531
        %v1625 = vpop.f32.mrb[0].mxu0
        %v1626 = vadd.f32 %v417, %v1625
        %v1627 = vpop.f32.mrb[0].mxu0
        %1628 = vmatprep.mubr.f32.mxu0 0.0
        %1629 = vmatmul.mubr.f32.gmra.mrb[0].mxu0 %v534
        %v1630 = vpop.f32.mrb[0].mxu0
        %v1631 = vadd.f32 %v417, %v1630
        %v1632 = vpop.f32.mrb[0].mxu0
        %1633 = vmatprep.mubr.f32.mxu0 0.0
        %1634 = vmatmul.mubr.f32.gmra.mrb[0].mxu0 %v537
        %v1635 = vpop.f32.mrb[0].mxu0
        %v1636 = vadd.f32 %v417, %v1635
        %v1637 = vpop.f32.mrb[0].mxu0
        %1638 = vmatprep.mubr.f32.mxu0 0.0
        %1639 = vmatmul.mubr.f32.gmra.mrb[0].mxu0 %v540
        %v1640 = vpop.f32.mrb[0].mxu0
        %v1641 = vadd.f32 %v417, %v1640
        %v1642 = vpop.f32.mrb[0].mxu0
        %1643 = vmatprep.mubr.f32.mxu0 0.0
        %1644 = vmatmul.mubr.f32.gmra.mrb[0].mxu0 %v543
        %v1645 = vpop.f32.mrb[0].mxu0
        %v1646 = vadd.f32 %v417, %v1645
        %v1647 = vpop.f32.mrb[0].mxu0
        %1648 = vmatprep.mubr.f32.mxu0 0.0
        %1649 = vmatmul.mubr.f32.gmra.mrb[0].mxu0 %v546
        %v1650 = vpop.f32.mrb[0].mxu0
        %v1651 = vadd.f32 %v417, %v1650
        %v1652 = vpop.f32.mrb[0].mxu0
        %1653 = vmatprep.mubr.f32.mxu0 0.0
        %1654 = vmatmul.mubr.f32.gmra.mrb[0].mxu0 %v549
        %v1655 = vpop.f32.mrb[0].mxu0
        %v1656 = vadd.f32 %v417, %v1655
        %v1657 = vpop.f32.mrb[0].mxu0
        %1658 = vmatprep.mubr.f32.mxu0 0.0
        %1659 = vmatmul.mubr.f32.gmra.mrb[0].mxu0 %v552
        %v1660 = vpop.f32.mrb[0].mxu0
        %v1661 = vadd.f32 %v417, %v1660
        %v1662 = vpop.f32.mrb[0].mxu0
        %1663 = vmatprep.mubr.f32.mxu0 0.0
        %1664 = vmatmul.mubr.f32.gmra.mrb[0].mxu0 %v555
        %v1665 = vpop.f32.mrb[0].mxu0
        %v1666 = vadd.f32 %v417, %v1665
        %v1667 = vpop.f32.mrb[0].mxu0
        %1668 = vmatprep.mubr.f32.mxu0 0.0
        %1669 = vmatmul.mubr.f32.gmra.mrb[0].mxu0 %v558
        %v1670 = vpop.f32.mrb[0].mxu0
        %v1671 = vadd.f32 %v417, %v1670
        %v1672 = vpop.f32.mrb[0].mxu0
        %1673 = vmatprep.mubr.f32.mxu0 0.0
        %1674 = vmatmul.mubr.f32.gmra.mrb[0].mxu0 %v561
        %v1675 = vpop.f32.mrb[0].mxu0
        %v1676 = vadd.f32 %v417, %v1675
        %v1677 = vpop.f32.mrb[0].mxu0
        %1678 = vmatprep.mubr.f32.mxu0 0.0
        %1679 = vmatmul.mubr.f32.gmra.mrb[0].mxu0 %v564
        %v1680 = vpop.f32.mrb[0].mxu0
        %v1681 = vadd.f32 %v417, %v1680
        %v1682 = vpop.f32.mrb[0].mxu0
        %1683 = vmatprep.mubr.f32.mxu0 0.0
        %1684 = vmatmul.mubr.f32.gmra.mrb[0].mxu0 %v567
        %v1685 = vpop.f32.mrb[0].mxu0
        %v1686 = vadd.f32 %v417, %v1685
        %v1687 = vpop.f32.mrb[0].mxu0
        %1688 = vmatprep.mubr.f32.mxu0 0.0
        %1689 = vmatmul.mubr.f32.gmra.mrb[0].mxu0 %v570
        %v1690 = vpop.f32.mrb[0].mxu0
        %v1691 = vadd.f32 %v417, %v1690
        %v1692 = vpop.f32.mrb[0].mxu0
        %1693 = vmatprep.mubr.f32.mxu0 0.0
        %1694 = vmatmul.mubr.f32.gmra.mrb[0].mxu0 %v573
        %v1695 = vpop.f32.mrb[0].mxu0
        %v1696 = vadd.f32 %v417, %v1695
        %v1697 = vpop.f32.mrb[0].mxu0
        %1698 = vmatprep.mubr.f32.mxu0 0.0
        %1699 = vmatmul.mubr.f32.gmra.mrb[0].mxu0 %v576
        %v1700 = vpop.f32.mrb[0].mxu0
        %v1701 = vadd.f32 %v417, %v1700
        %v1702 = vpop.f32.mrb[0].mxu0
        %1703 = vmatprep.mubr.f32.mxu0 0.0
        %1704 = vmatmul.mubr.f32.gmra.mrb[0].mxu0 %v579
        %v1705 = vpop.f32.mrb[0].mxu0
        %v1706 = vadd.f32 %v417, %v1705
        %v1707 = vpop.f32.mrb[0].mxu0
        %1708 = vmatprep.mubr.f32.mxu0 0.0
        %1709 = vmatmul.mubr.f32.gmra.mrb[0].mxu0 %v582
        %v1710 = vpop.f32.mrb[0].mxu0
        %v1711 = vadd.f32 %v417, %v1710
        %v1712 = vpop.f32.mrb[0].mxu0
        %1713 = vmatprep.mubr.f32.mxu0 0.0
        %1714 = vmatmul.mubr.f32.gmra.mrb[0].mxu0 %v585
        %v1715 = vpop.f32.mrb[0].mxu0
        %v1716 = vadd.f32 %v417, %v1715
        %v1717 = vpop.f32.mrb[0].mxu0
        %1718 = vmatprep.mubr.f32.mxu0 0.0
        %1719 = vmatmul.mubr.f32.gmra.mrb[0].mxu0 %v588
        %v1720 = vpop.f32.mrb[0].mxu0
        %v1721 = vadd.f32 %v417, %v1720
        %v1722 = vpop.f32.mrb[0].mxu0
        %1723 = vmatprep.mubr.f32.mxu0 0.0
        %1724 = vmatmul.mubr.f32.gmra.mrb[0].mxu0 %v591
        %v1725 = vpop.f32.mrb[0].mxu0
        %v1726 = vadd.f32 %v417, %v1725
        %v1727 = vpop.f32.mrb[0].mxu0
        %1728 = vmatprep.mubr.f32.mxu0 0.0
        %1729 = vmatmul.mubr.f32.gmra.mrb[0].mxu0 %v594
        %v1730 = vpop.f32.mrb[0].mxu0
        %v1731 = vadd.f32 %v417, %v1730
        %v1732 = vpop.f32.mrb[0].mxu0
        %1733 = vmatprep.mubr.f32.mxu0 0.0
        %1734 = vmatmul.mubr.f32.gmra.mrb[0].mxu0 %v597
        %v1735 = vpop.f32.mrb[0].mxu0
        %v1736 = vadd.f32 %v417, %v1735
        %v1737 = vpop.f32.mrb[0].mxu0
        %1738 = vmatprep.mubr.f32.mxu0 0.0
        %1739 = vmatmul.mubr.f32.gmra.mrb[0].mxu0 %v600
        %v1740 = vpop.f32.mrb[0].mxu0
        %v1741 = vadd.f32 %v417, %v1740
        %v1742 = vpop.f32.mrb[0].mxu0
        %1743 = vmatprep.mubr.f32.mxu0 0.0
        %1744 = vmatmul.mubr.f32.gmra.mrb[0].mxu0 %v603
        %v1745 = vpop.f32.mrb[0].mxu0
        %v1746 = vadd.f32 %v417, %v1745
        %v1747 = vpop.f32.mrb[0].mxu0
        %1748 = vmatprep.mubr.f32.mxu0 0.0
        %1749 = vmatmul.mubr.f32.gmra.mrb[0].mxu0 %v606
        %v1750 = vpop.f32.mrb[0].mxu0
        %v1751 = vadd.f32 %v417, %v1750
        %v1752 = vpop.f32.mrb[0].mxu0
        %1753 = vmatprep.mubr.f32.mxu0 0.0
        %1754 = vmatmul.mubr.f32.gmra.mrb[0].mxu0 %v609
        %v1755 = vpop.f32.mrb[0].mxu0
        %v1756 = vadd.f32 %v417, %v1755
        %v1757 = vpop.f32.mrb[0].mxu0
        %1758 = vmatprep.mubr.f32.mxu0 0.0
        %1759 = vmatmul.mubr.f32.gmra.mrb[0].mxu0 %v612
        %v1760 = vpop.f32.mrb[0].mxu0
        %v1761 = vadd.f32 %v417, %v1760
        %v1762 = vpop.f32.mrb[0].mxu0
        %1763 = vmatprep.mubr.f32.mxu0 0.0
        %1764 = vmatmul.mubr.f32.gmra.mrb[0].mxu0 %v615
        %v1765 = vpop.f32.mrb[0].mxu0
        %v1766 = vadd.f32 %v417, %v1765
        %v1767 = vpop.f32.mrb[0].mxu0
        %1768 = vmatprep.mubr.f32.mxu0 0.0
        %1769 = vmatmul.mubr.f32.gmra.mrb[0].mxu0 %v618
        %v1770 = vpop.f32.mrb[0].mxu0
        %v1771 = vadd.f32 %v417, %v1770
        %v1772 = vpop.f32.mrb[0].mxu0
        %1773 = vmatprep.mubr.f32.mxu0 0.0
        %1774 = vmatmul.mubr.f32.gmra.mrb[0].mxu0 %v621
        %v1775 = vpop.f32.mrb[0].mxu0
        %v1776 = vadd.f32 %v417, %v1775
        %v1777 = vpop.f32.mrb[0].mxu0
        %1778 = vmatprep.mubr.f32.mxu0 0.0
        %1779 = vmatmul.mubr.f32.gmra.mrb[0].mxu0 %v624
        %v1780 = vpop.f32.mrb[0].mxu0
        %v1781 = vadd.f32 %v417, %v1780
        %v1782 = vpop.f32.mrb[0].mxu0
        %1783 = vmatprep.mubr.f32.mxu0 0.0
        %1784 = vmatmul.mubr.f32.gmra.mrb[0].mxu0 %v627
        %v1785 = vpop.f32.mrb[0].mxu0
        %v1786 = vadd.f32 %v417, %v1785
        %v1787 = vpop.f32.mrb[0].mxu0
        %1788 = vmatprep.mubr.f32.mxu0 0.0
        %1789 = vmatmul.mubr.f32.gmra.mrb[0].mxu0 %v630
        %v1790 = vpop.f32.mrb[0].mxu0
        %v1791 = vadd.f32 %v417, %v1790
        %v1792 = vpop.f32.mrb[0].mxu0
        %1793 = vmatprep.mubr.f32.mxu0 0.0
        %1794 = vmatmul.mubr.f32.gmra.mrb[0].mxu0 %v633
        %v1795 = vpop.f32.mrb[0].mxu0
        %v1796 = vadd.f32 %v417, %v1795
        %v1797 = vpop.f32.mrb[0].mxu0
        %1798 = vmatprep.mubr.f32.mxu0 0.0
        %1799 = vmatmul.mubr.f32.gmra.mrb[0].mxu0 %v636
        %v1800 = vpop.f32.mrb[0].mxu0
        %v1801 = vadd.f32 %v417, %v1800
        %v1802 = vpop.f32.mrb[0].mxu0
        %1803 = vmatprep.mubr.f32.mxu0 0.0
        %1804 = vmatmul.mubr.f32.gmra.mrb[0].mxu0 %v639
        %v1805 = vpop.f32.mrb[0].mxu0
        %v1806 = vadd.f32 %v417, %v1805
        %v1807 = vpop.f32.mrb[0].mxu0
        %1808 = vmatprep.mubr.f32.mxu0 0.0
        %1809 = vmatmul.mubr.f32.gmra.mrb[0].mxu0 %v642
        %v1810 = vpop.f32.mrb[0].mxu0
        %v1811 = vadd.f32 %v417, %v1810
        %v1812 = vpop.f32.mrb[0].mxu0
        %1813 = vmatprep.mubr.f32.mxu0 0.0
        %1814 = vmatmul.mubr.f32.gmra.mrb[0].mxu0 %v645
        %v1815 = vpop.f32.mrb[0].mxu0
        %v1816 = vadd.f32 %v417, %v1815
        %v1817 = vpop.f32.mrb[0].mxu0
        %1818 = vmatprep.mubr.f32.mxu0 0.0
        %1819 = vmatmul.mubr.f32.gmra.mrb[0].mxu0 %v648
        %v1820 = vpop.f32.mrb[0].mxu0
        %v1821 = vadd.f32 %v417, %v1820
        %v1822 = vpop.f32.mrb[0].mxu0
        %1823 = vmatprep.mubr.f32.mxu0 0.0
        %1824 = vmatmul.mubr.f32.gmra.mrb[0].mxu0 %v651
        %v1825 = vpop.f32.mrb[0].mxu0
        %v1826 = vadd.f32 %v417, %v1825
        %v1827 = vpop.f32.mrb[0].mxu0
        %1828 = vmatprep.mubr.f32.mxu0 0.0
        %1829 = vmatmul.mubr.f32.gmra.mrb[0].mxu0 %v654
        %v1830 = vpop.f32.mrb[0].mxu0
        %v1831 = vadd.f32 %v417, %v1830
        %v1832 = vpop.f32.mrb[0].mxu0
        %1833 = vmatprep.mubr.f32.mxu0 0.0
        %1834 = vmatmul.mubr.f32.gmra.mrb[0].mxu0 %v657
        %v1835 = vpop.f32.mrb[0].mxu0
        %v1836 = vadd.f32 %v417, %v1835
        %v1837 = vpop.f32.mrb[0].mxu0
        %1838 = vmatprep.mubr.f32.mxu0 0.0
        %1839 = vmatmul.mubr.f32.gmra.mrb[0].mxu0 %v660
        %v1840 = vpop.f32.mrb[0].mxu0
        %v1841 = vadd.f32 %v417, %v1840
        %v1842 = vpop.f32.mrb[0].mxu0
        %1843 = vmatprep.mubr.f32.mxu0 0.0
        %1844 = vmatmul.mubr.f32.gmra.mrb[0].mxu0 %v663
        %v1845 = vpop.f32.mrb[0].mxu0
        %v1846 = vadd.f32 %v417, %v1845
        %v1847 = vpop.f32.mrb[0].mxu0
        %1848 = vmatprep.mubr.f32.mxu0 0.0
        %1849 = vmatmul.mubr.f32.gmra.mrb[0].mxu0 %v666
        %v1850 = vpop.f32.mrb[0].mxu0
        %v1851 = vadd.f32 %v417, %v1850
        %v1852 = vpop.f32.mrb[0].mxu0
        %1853 = vmatprep.mubr.f32.mxu0 0.0
        %1854 = vmatmul.mubr.f32.gmra.mrb[0].mxu0 %v669
        %v1855 = vpop.f32.mrb[0].mxu0
        %v1856 = vadd.f32 %v417, %v1855
        %v1857 = vpop.f32.mrb[0].mxu0
        %1858 = vmatprep.mubr.f32.mxu0 0.0
        %1859 = vmatmul.mubr.f32.gmra.mrb[0].mxu0 %v672
        %v1860 = vpop.f32.mrb[0].mxu0
        %v1861 = vadd.f32 %v417, %v1860
        %v1862 = vpop.f32.mrb[0].mxu0
        %1863 = vmatprep.mubr.f32.mxu0 0.0
        %1864 = vmatmul.mubr.f32.gmra.mrb[0].mxu0 %v675
        %v1865 = vpop.f32.mrb[0].mxu0
        %v1866 = vadd.f32 %v417, %v1865
        %v1867 = vpop.f32.mrb[0].mxu0
        %1868 = vmatprep.mubr.f32.mxu0 0.0
        %1869 = vmatmul.mubr.f32.gmra.mrb[0].mxu0 %v678
        %v1870 = vpop.f32.mrb[0].mxu0
        %v1871 = vadd.f32 %v417, %v1870
        %v1872 = vpop.f32.mrb[0].mxu0
        %1873 = vmatprep.mubr.f32.mxu0 0.0
        %1874 = vmatmul.mubr.f32.gmra.mrb[0].mxu0 %v681
        %v1875 = vpop.f32.mrb[0].mxu0
        %v1876 = vadd.f32 %v417, %v1875
        %v1877 = vpop.f32.mrb[0].mxu0
        %1878 = vmatprep.mubr.f32.mxu0 0.0
        %1879 = vmatmul.mubr.f32.gmra.mrb[0].mxu0 %v684
        %v1880 = vpop.f32.mrb[0].mxu0
        %v1881 = vadd.f32 %v417, %v1880
        %v1882 = vpop.f32.mrb[0].mxu0
        %1883 = vmatprep.mubr.f32.mxu0 0.0
        %1884 = vmatmul.mubr.f32.gmra.mrb[0].mxu0 %v687
        %v1885 = vpop.f32.mrb[0].mxu0
        %v1886 = vadd.f32 %v417, %v1885
        %v1887 = vpop.f32.mrb[0].mxu0
        %1888 = vmatprep.mubr.f32.mxu0 0.0
        %1889 = vmatmul.mubr.f32.gmra.mrb[0].mxu0 %v690
        %v1890 = vpop.f32.mrb[0].mxu0
        %v1891 = vadd.f32 %v417, %v1890
        %v1892 = vpop.f32.mrb[0].mxu0
        %1893 = vmatprep.mubr.f32.mxu0 0.0
        %1894 = vmatmul.mubr.f32.gmra.mrb[0].mxu0 %v693
        %v1895 = vpop.f32.mrb[0].mxu0
        %v1896 = vadd.f32 %v417, %v1895
        %v1897 = vpop.f32.mrb[0].mxu0
        %1898 = vmatprep.mubr.f32.mxu0 0.0
        %1899 = vmatmul.mubr.f32.gmra.mrb[0].mxu0 %v696
        %v1900 = vpop.f32.mrb[0].mxu0
        %v1901 = vadd.f32 %v417, %v1900
        %v1902 = vpop.f32.mrb[0].mxu0
        %1903 = vmatprep.mubr.f32.mxu0 0.0
        %1904 = vmatmul.mubr.f32.gmra.mrb[0].mxu0 %v699
        %v1905 = vpop.f32.mrb[0].mxu0
        %v1906 = vadd.f32 %v417, %v1905
        %v1907 = vpop.f32.mrb[0].mxu0
        %1908 = vmatprep.mubr.f32.mxu0 0.0
        %1909 = vmatmul.mubr.f32.gmra.mrb[0].mxu0 %v702
        %v1910 = vpop.f32.mrb[0].mxu0
        %v1911 = vadd.f32 %v417, %v1910
        %v1912 = vpop.f32.mrb[0].mxu0
        %1913 = vmatprep.mubr.f32.mxu0 0.0
        %1914 = vmatmul.mubr.f32.gmra.mrb[0].mxu0 %v705
        %v1915 = vpop.f32.mrb[0].mxu0
        %v1916 = vadd.f32 %v417, %v1915
        %v1917 = vpop.f32.mrb[0].mxu0
        %1918 = vmatprep.mubr.f32.mxu0 0.0
        %1919 = vmatmul.mubr.f32.gmra.mrb[0].mxu0 %v708
        %v1920 = vpop.f32.mrb[0].mxu0
        %v1921 = vadd.f32 %v417, %v1920
        %v1922 = vpop.f32.mrb[0].mxu0
        %1923 = vmatprep.mubr.f32.mxu0 0.0
        %1924 = vmatmul.mubr.f32.gmra.mrb[0].mxu0 %v711
        %v1925 = vpop.f32.mrb[0].mxu0
        %v1926 = vadd.f32 %v417, %v1925
        %v1927 = vpop.f32.mrb[0].mxu0
        %1928 = vmatprep.mubr.f32.mxu0 0.0
        %1929 = vmatmul.mubr.f32.gmra.mrb[0].mxu0 %v714
        %v1930 = vpop.f32.mrb[0].mxu0
        %v1931 = vadd.f32 %v417, %v1930
        %v1932 = vpop.f32.mrb[0].mxu0
        %1933 = vdwg.mxu0
        %v1934 = vmax.f32 %v793, 0.0
        %v1935 = vmax.f32 %v795, 0.0
        %v1936 = vmax.f32 %v1446, 0.0
        %v1937 = vmax.f32 %v799, 0.0
        %v1938 = vmax.f32 %v801, 0.0
        %v1939 = vmax.f32 %v1451, 0.0
        %v1940 = vmax.f32 %v805, 0.0
        %v1941 = vmax.f32 %v807, 0.0
        %v1942 = vmax.f32 %v1456, 0.0
        %v1943 = vmax.f32 %v811, 0.0
        %v1944 = vmax.f32 %v813, 0.0
        %v1945 = vmax.f32 %v1461, 0.0
        %v1946 = vmax.f32 %v817, 0.0
        %v1947 = vmax.f32 %v819, 0.0
        %v1948 = vmax.f32 %v1466, 0.0
        %v1949 = vmax.f32 %v823, 0.0
        %v1950 = vmax.f32 %v825, 0.0
        %v1951 = vmax.f32 %v1471, 0.0
        %v1952 = vmax.f32 %v829, 0.0
        %v1953 = vmax.f32 %v831, 0.0
        %v1954 = vmax.f32 %v1476, 0.0
        %v1955 = vmax.f32 %v835, 0.0
        %v1956 = vmax.f32 %v837, 0.0
        %v1957 = vmax.f32 %v1481, 0.0
        %v1958 = vmax.f32 %v841, 0.0
        %v1959 = vmax.f32 %v843, 0.0
        %v1960 = vmax.f32 %v1486, 0.0
        %v1961 = vmax.f32 %v847, 0.0
        %v1962 = vmax.f32 %v849, 0.0
        %v1963 = vmax.f32 %v1491, 0.0
        %v1964 = vmax.f32 %v853, 0.0
        %v1965 = vmax.f32 %v855, 0.0
        %v1966 = vmax.f32 %v1496, 0.0
        %v1967 = vmax.f32 %v859, 0.0
        %v1968 = vmax.f32 %v861, 0.0
        %v1969 = vmax.f32 %v1501, 0.0
        %v1970 = vmax.f32 %v865, 0.0
        %v1971 = vmax.f32 %v867, 0.0
        %v1972 = vmax.f32 %v1506, 0.0
        %v1973 = vmax.f32 %v871, 0.0
        %v1974 = vmax.f32 %v873, 0.0
        %v1975 = vmax.f32 %v1511, 0.0
        %v1976 = vmax.f32 %v877, 0.0
        %v1977 = vmax.f32 %v879, 0.0
        %v1978 = vmax.f32 %v1516, 0.0
        %v1979 = vmax.f32 %v883, 0.0
        %v1980 = vmax.f32 %v885, 0.0
        %v1981 = vmax.f32 %v1521, 0.0
        %v1982 = vmax.f32 %v889, 0.0
        %v1983 = vmax.f32 %v891, 0.0
        %v1984 = vmax.f32 %v1526, 0.0
        %v1985 = vmax.f32 %v895, 0.0
        %v1986 = vmax.f32 %v897, 0.0
        %v1987 = vmax.f32 %v1531, 0.0
        %v1988 = vmax.f32 %v901, 0.0
        %v1989 = vmax.f32 %v903, 0.0
        %v1990 = vmax.f32 %v1536, 0.0
        %v1991 = vmax.f32 %v907, 0.0
        %v1992 = vmax.f32 %v909, 0.0
        %v1993 = vmax.f32 %v1541, 0.0
        %v1994 = vmax.f32 %v913, 0.0
        %v1995 = vmax.f32 %v915, 0.0
        %v1996 = vmax.f32 %v1546, 0.0
        %v1997 = vmax.f32 %v919, 0.0
        %v1998 = vmax.f32 %v921, 0.0
        %v1999 = vmax.f32 %v1551, 0.0
        %v2000 = vmax.f32 %v925, 0.0
        %v2001 = vmax.f32 %v927, 0.0
        %v2002 = vmax.f32 %v1556, 0.0
        %v2003 = vmax.f32 %v931, 0.0
        %v2004 = vmax.f32 %v933, 0.0
        %v2005 = vmax.f32 %v1561, 0.0
        %v2006 = vmax.f32 %v937, 0.0
        %v2007 = vmax.f32 %v939, 0.0
        %v2008 = vmax.f32 %v1566, 0.0
        %v2009 = vmax.f32 %v943, 0.0
        %v2010 = vmax.f32 %v945, 0.0
        %v2011 = vmax.f32 %v1571, 0.0
        %v2012 = vmax.f32 %v949, 0.0
        %v2013 = vmax.f32 %v951, 0.0
        %v2014 = vmax.f32 %v1576, 0.0
        %v2015 = vmax.f32 %v955, 0.0
        %v2016 = vmax.f32 %v957, 0.0
        %v2017 = vmax.f32 %v1581, 0.0
        %v2018 = vmax.f32 %v961, 0.0
        %v2019 = vmax.f32 %v963, 0.0
        %v2020 = vmax.f32 %v1586, 0.0
        %v2021 = vmax.f32 %v967, 0.0
        %v2022 = vmax.f32 %v969, 0.0
        %v2023 = vmax.f32 %v1591, 0.0
        %v2024 = vmax.f32 %v973, 0.0
        %v2025 = vmax.f32 %v975, 0.0
        %v2026 = vmax.f32 %v1596, 0.0
        %v2027 = vmax.f32 %v979, 0.0
        %v2028 = vmax.f32 %v981, 0.0
        %v2029 = vmax.f32 %v1601, 0.0
        %v2030 = vmax.f32 %v985, 0.0
        %v2031 = vmax.f32 %v987, 0.0
        %v2032 = vmax.f32 %v1606, 0.0
        %v2033 = vmax.f32 %v991, 0.0
        %v2034 = vmax.f32 %v993, 0.0
        %v2035 = vmax.f32 %v1611, 0.0
        %v2036 = vmax.f32 %v997, 0.0
        %v2037 = vmax.f32 %v999, 0.0
        %v2038 = vmax.f32 %v1616, 0.0
        %v2039 = vmax.f32 %v1003, 0.0
        %v2040 = vmax.f32 %v1005, 0.0
        %v2041 = vmax.f32 %v1621, 0.0
        %v2042 = vmax.f32 %v1009, 0.0
        %v2043 = vmax.f32 %v1011, 0.0
        %v2044 = vmax.f32 %v1626, 0.0
        %v2045 = vmax.f32 %v1015, 0.0
        %v2046 = vmax.f32 %v1017, 0.0
        %v2047 = vmax.f32 %v1631, 0.0
        %v2048 = vmax.f32 %v1021, 0.0
        %v2049 = vmax.f32 %v1023, 0.0
        %v2050 = vmax.f32 %v1636, 0.0
        %v2051 = vmax.f32 %v1027, 0.0
        %v2052 = vmax.f32 %v1029, 0.0
        %v2053 = vmax.f32 %v1641, 0.0
        %v2054 = vmax.f32 %v1033, 0.0
        %v2055 = vmax.f32 %v1035, 0.0
        %v2056 = vmax.f32 %v1646, 0.0
        %v2057 = vmax.f32 %v1039, 0.0
        %v2058 = vmax.f32 %v1041, 0.0
        %v2059 = vmax.f32 %v1651, 0.0
        %v2060 = vmax.f32 %v1045, 0.0
        %v2061 = vmax.f32 %v1047, 0.0
        %v2062 = vmax.f32 %v1656, 0.0
        %v2063 = vmax.f32 %v1051, 0.0
        %v2064 = vmax.f32 %v1053, 0.0
        %v2065 = vmax.f32 %v1661, 0.0
        %v2066 = vmax.f32 %v1057, 0.0
        %v2067 = vmax.f32 %v1059, 0.0
        %v2068 = vmax.f32 %v1666, 0.0
        %v2069 = vmax.f32 %v1063, 0.0
        %v2070 = vmax.f32 %v1065, 0.0
        %v2071 = vmax.f32 %v1671, 0.0
        %v2072 = vmax.f32 %v1069, 0.0
        %v2073 = vmax.f32 %v1071, 0.0
        %v2074 = vmax.f32 %v1676, 0.0
        %v2075 = vmax.f32 %v1075, 0.0
        %v2076 = vmax.f32 %v1077, 0.0
        %v2077 = vmax.f32 %v1681, 0.0
        %v2078 = vmax.f32 %v1081, 0.0
        %v2079 = vmax.f32 %v1083, 0.0
        %v2080 = vmax.f32 %v1686, 0.0
        %v2081 = vmax.f32 %v1087, 0.0
        %v2082 = vmax.f32 %v1089, 0.0
        %v2083 = vmax.f32 %v1691, 0.0
        %v2084 = vmax.f32 %v1093, 0.0
        %v2085 = vmax.f32 %v1095, 0.0
        %v2086 = vmax.f32 %v1696, 0.0
        %v2087 = vmax.f32 %v1099, 0.0
        %v2088 = vmax.f32 %v1101, 0.0
        %v2089 = vmax.f32 %v1701, 0.0
        %v2090 = vmax.f32 %v1105, 0.0
        %v2091 = vmax.f32 %v1107, 0.0
        %v2092 = vmax.f32 %v1706, 0.0
        %v2093 = vmax.f32 %v1111, 0.0
        %v2094 = vmax.f32 %v1113, 0.0
        %v2095 = vmax.f32 %v1711, 0.0
        %v2096 = vmax.f32 %v1117, 0.0
        %v2097 = vmax.f32 %v1119, 0.0
        %v2098 = vmax.f32 %v1716, 0.0
        %v2099 = vmax.f32 %v1123, 0.0
        %v2100 = vmax.f32 %v1125, 0.0
        %v2101 = vmax.f32 %v1721, 0.0
        %v2102 = vmax.f32 %v1129, 0.0
        %v2103 = vmax.f32 %v1131, 0.0
        %v2104 = vmax.f32 %v1726, 0.0
        %v2105 = vmax.f32 %v1135, 0.0
        %v2106 = vmax.f32 %v1137, 0.0
        %v2107 = vmax.f32 %v1731, 0.0
        %v2108 = vmax.f32 %v1141, 0.0
        %v2109 = vmax.f32 %v1143, 0.0
        %v2110 = vmax.f32 %v1736, 0.0
        %v2111 = vmax.f32 %v1147, 0.0
        %v2112 = vmax.f32 %v1149, 0.0
        %v2113 = vmax.f32 %v1741, 0.0
        %v2114 = vmax.f32 %v1153, 0.0
        %v2115 = vmax.f32 %v1155, 0.0
        %v2116 = vmax.f32 %v1746, 0.0
        %v2117 = vmax.f32 %v1159, 0.0
        %v2118 = vmax.f32 %v1161, 0.0
        %v2119 = vmax.f32 %v1751, 0.0
        %v2120 = vmax.f32 %v1165, 0.0
        %v2121 = vmax.f32 %v1167, 0.0
        %v2122 = vmax.f32 %v1756, 0.0
        %v2123 = vmax.f32 %v1171, 0.0
        %v2124 = vmax.f32 %v1173, 0.0
        %v2125 = vmax.f32 %v1761, 0.0
        %v2126 = vmax.f32 %v1177, 0.0
        %v2127 = vmax.f32 %v1179, 0.0
        %v2128 = vmax.f32 %v1766, 0.0
        %v2129 = vmax.f32 %v1183, 0.0
        %v2130 = vmax.f32 %v1185, 0.0
        %v2131 = vmax.f32 %v1771, 0.0
        %v2132 = vmax.f32 %v1189, 0.0
        %v2133 = vmax.f32 %v1191, 0.0
        %v2134 = vmax.f32 %v1776, 0.0
        %v2135 = vmax.f32 %v1195, 0.0
        %v2136 = vmax.f32 %v1197, 0.0
        %v2137 = vmax.f32 %v1781, 0.0
        %v2138 = vmax.f32 %v1201, 0.0
        %v2139 = vmax.f32 %v1203, 0.0
        %v2140 = vmax.f32 %v1786, 0.0
        %v2141 = vmax.f32 %v1207, 0.0
        %v2142 = vmax.f32 %v1209, 0.0
        %v2143 = vmax.f32 %v1791, 0.0
        %v2144 = vmax.f32 %v1213, 0.0
        %v2145 = vmax.f32 %v1215, 0.0
        %v2146 = vmax.f32 %v1796, 0.0
        %v2147 = vmax.f32 %v1219, 0.0
        %v2148 = vmax.f32 %v1221, 0.0
        %v2149 = vmax.f32 %v1801, 0.0
        %v2150 = vmax.f32 %v1225, 0.0
        %v2151 = vmax.f32 %v1227, 0.0
        %v2152 = vmax.f32 %v1806, 0.0
        %v2153 = vmax.f32 %v1231, 0.0
        %v2154 = vmax.f32 %v1233, 0.0
        %v2155 = vmax.f32 %v1811, 0.0
        %v2156 = vmax.f32 %v1237, 0.0
        %v2157 = vmax.f32 %v1239, 0.0
        %v2158 = vmax.f32 %v1816, 0.0
        %v2159 = vmax.f32 %v1243, 0.0
        %v2160 = vmax.f32 %v1245, 0.0
        %v2161 = vmax.f32 %v1821, 0.0
        %v2162 = vmax.f32 %v1249, 0.0
        %v2163 = vmax.f32 %v1251, 0.0
        %v2164 = vmax.f32 %v1826, 0.0
        %v2165 = vmax.f32 %v1255, 0.0
        %v2166 = vmax.f32 %v1257, 0.0
        %v2167 = vmax.f32 %v1831, 0.0
        %v2168 = vmax.f32 %v1261, 0.0
        %v2169 = vmax.f32 %v1263, 0.0
        %v2170 = vmax.f32 %v1836, 0.0
        %v2171 = vmax.f32 %v1267, 0.0
        %v2172 = vmax.f32 %v1269, 0.0
        %v2173 = vmax.f32 %v1841, 0.0
        %v2174 = vmax.f32 %v1273, 0.0
        %v2175 = vmax.f32 %v1275, 0.0
        %v2176 = vmax.f32 %v1846, 0.0
        %v2177 = vmax.f32 %v1279, 0.0
        %v2178 = vmax.f32 %v1281, 0.0
        %v2179 = vmax.f32 %v1851, 0.0
        %v2180 = vmax.f32 %v1285, 0.0
        %v2181 = vmax.f32 %v1287, 0.0
        %v2182 = vmax.f32 %v1856, 0.0
        %v2183 = vmax.f32 %v1291, 0.0
        %v2184 = vmax.f32 %v1293, 0.0
        %v2185 = vmax.f32 %v1861, 0.0
        %v2186 = vmax.f32 %v1297, 0.0
        %v2187 = vmax.f32 %v1299, 0.0
        %v2188 = vmax.f32 %v1866, 0.0
        %v2189 = vmax.f32 %v1303, 0.0
        %v2190 = vmax.f32 %v1305, 0.0
        %v2191 = vmax.f32 %v1871, 0.0
        %v2192 = vmax.f32 %v1309, 0.0
        %v2193 = vmax.f32 %v1311, 0.0
        %v2194 = vmax.f32 %v1876, 0.0
        %v2195 = vmax.f32 %v1315, 0.0
        %v2196 = vmax.f32 %v1317, 0.0
        %v2197 = vmax.f32 %v1881, 0.0
        %v2198 = vmax.f32 %v1321, 0.0
        %v2199 = vmax.f32 %v1323, 0.0
        %v2200 = vmax.f32 %v1886, 0.0
        %v2201 = vmax.f32 %v1327, 0.0
        %v2202 = vmax.f32 %v1329, 0.0
        %v2203 = vmax.f32 %v1891, 0.0
        %v2204 = vmax.f32 %v1333, 0.0
        %v2205 = vmax.f32 %v1335, 0.0
        %v2206 = vmax.f32 %v1896, 0.0
        %v2207 = vmax.f32 %v1339, 0.0
        %v2208 = vmax.f32 %v1341, 0.0
        %v2209 = vmax.f32 %v1901, 0.0
        %v2210 = vmax.f32 %v1345, 0.0
        %v2211 = vmax.f32 %v1347, 0.0
        %v2212 = vmax.f32 %v1906, 0.0
        %v2213 = vmax.f32 %v1351, 0.0
        %v2214 = vmax.f32 %v1353, 0.0
        %v2215 = vmax.f32 %v1911, 0.0
        %v2216 = vmax.f32 %v1357, 0.0
        %v2217 = vmax.f32 %v1359, 0.0
        %v2218 = vmax.f32 %v1916, 0.0
        %v2219 = vmax.f32 %v1363, 0.0
        %v2220 = vmax.f32 %v1365, 0.0
        %v2221 = vmax.f32 %v1921, 0.0
        %v2222 = vmax.f32 %v1369, 0.0
        %v2223 = vmax.f32 %v1371, 0.0
        %v2224 = vmax.f32 %v1926, 0.0
        %v2225 = vmax.f32 %v1375, 0.0
        %v2226 = vmax.f32 %v1377, 0.0
        %v2227 = vmax.f32 %v1931, 0.0
        %2228 = vst [vmem:[#allocation2] sm:$0xff] %v1934
        %2229 = vst [vmem:[#allocation2 + $0x8] sm:$0xff] %v1935
        %vm2230 = vcmask 261120
        %2231 = vst.msk [vmem:[#allocation2 + $0x10] sm:$0xff] %vm2230, %v1936
        %2232 = vst [vmem:[#allocation2 + $0x18] sm:$0xff] %v1937
        %2233 = vst [vmem:[#allocation2 + $0x20] sm:$0xff] %v1938
        %2234 = vst.msk [vmem:[#allocation2 + $0x28] sm:$0xff] %vm2230, %v1939
        %2235 = vst [vmem:[#allocation2 + $0x30] sm:$0xff] %v1940
        %2236 = vst [vmem:[#allocation2 + $0x38] sm:$0xff] %v1941
        %2237 = vst.msk [vmem:[#allocation2 + $0x40] sm:$0xff] %vm2230, %v1942
        %2238 = vst [vmem:[#allocation2 + $0x48] sm:$0xff] %v1943
        %2239 = vst [vmem:[#allocation2 + $0x50] sm:$0xff] %v1944
        %2240 = vst.msk [vmem:[#allocation2 + $0x58] sm:$0xff] %vm2230, %v1945
        %2241 = vst [vmem:[#allocation2 + $0x60] sm:$0xff] %v1946
        %2242 = vst [vmem:[#allocation2 + $0x68] sm:$0xff] %v1947
        %2243 = vst.msk [vmem:[#allocation2 + $0x70] sm:$0xff] %vm2230, %v1948
        %2244 = vst [vmem:[#allocation2 + $0x78] sm:$0xff] %v1949
        %2245 = vst [vmem:[#allocation2 + $0x80] sm:$0xff] %v1950
        %2246 = vst.msk [vmem:[#allocation2 + $0x88] sm:$0xff] %vm2230, %v1951
        %2247 = vst [vmem:[#allocation2 + $0x90] sm:$0xff] %v1952
        %2248 = vst [vmem:[#allocation2 + $0x98] sm:$0xff] %v1953
        %2249 = vst.msk [vmem:[#allocation2 + $0xa0] sm:$0xff] %vm2230, %v1954
        %2250 = vst [vmem:[#allocation2 + $0xa8] sm:$0xff] %v1955
        %2251 = vst [vmem:[#allocation2 + $0xb0] sm:$0xff] %v1956
        %2252 = vst.msk [vmem:[#allocation2 + $0xb8] sm:$0xff] %vm2230, %v1957
        %2253 = vst [vmem:[#allocation2 + $0xc0] sm:$0xff] %v1958
        %2254 = vst [vmem:[#allocation2 + $0xc8] sm:$0xff] %v1959
        %2255 = vst.msk [vmem:[#allocation2 + $0xd0] sm:$0xff] %vm2230, %v1960
        %2256 = vst [vmem:[#allocation2 + $0xd8] sm:$0xff] %v1961
        %2257 = vst [vmem:[#allocation2 + $0xe0] sm:$0xff] %v1962
        %2258 = vst.msk [vmem:[#allocation2 + $0xe8] sm:$0xff] %vm2230, %v1963
        %2259 = vst [vmem:[#allocation2 + $0xf0] sm:$0xff] %v1964
        %2260 = vst [vmem:[#allocation2 + $0xf8] sm:$0xff] %v1965
        %2261 = vst.msk [vmem:[#allocation2 + $0x100] sm:$0xff] %vm2230, %v1966
        %2262 = vst [vmem:[#allocation2 + $0x108] sm:$0xff] %v1967
        %2263 = vst [vmem:[#allocation2 + $0x110] sm:$0xff] %v1968
        %2264 = vst.msk [vmem:[#allocation2 + $0x118] sm:$0xff] %vm2230, %v1969
        %2265 = vst [vmem:[#allocation2 + $0x120] sm:$0xff] %v1970
        %2266 = vst [vmem:[#allocation2 + $0x128] sm:$0xff] %v1971
        %2267 = vst.msk [vmem:[#allocation2 + $0x130] sm:$0xff] %vm2230, %v1972
        %2268 = vst [vmem:[#allocation2 + $0x138] sm:$0xff] %v1973
        %2269 = vst [vmem:[#allocation2 + $0x140] sm:$0xff] %v1974
        %2270 = vst.msk [vmem:[#allocation2 + $0x148] sm:$0xff] %vm2230, %v1975
        %2271 = vst [vmem:[#allocation2 + $0x150] sm:$0xff] %v1976
        %2272 = vst [vmem:[#allocation2 + $0x158] sm:$0xff] %v1977
        %2273 = vst.msk [vmem:[#allocation2 + $0x160] sm:$0xff] %vm2230, %v1978
        %2274 = vst [vmem:[#allocation2 + $0x168] sm:$0xff] %v1979
        %2275 = vst [vmem:[#allocation2 + $0x170] sm:$0xff] %v1980
        %2276 = vst.msk [vmem:[#allocation2 + $0x178] sm:$0xff] %vm2230, %v1981
        %2277 = vst [vmem:[#allocation2 + $0x180] sm:$0xff] %v1982
        %2278 = vst [vmem:[#allocation2 + $0x188] sm:$0xff] %v1983
        %2279 = vst.msk [vmem:[#allocation2 + $0x190] sm:$0xff] %vm2230, %v1984
        %2280 = vst [vmem:[#allocation2 + $0x198] sm:$0xff] %v1985
        %2281 = vst [vmem:[#allocation2 + $0x1a0] sm:$0xff] %v1986
        %2282 = vst.msk [vmem:[#allocation2 + $0x1a8] sm:$0xff] %vm2230, %v1987
        %2283 = vst [vmem:[#allocation2 + $0x1b0] sm:$0xff] %v1988
        %2284 = vst [vmem:[#allocation2 + $0x1b8] sm:$0xff] %v1989
        %2285 = vst.msk [vmem:[#allocation2 + $0x1c0] sm:$0xff] %vm2230, %v1990
        %2286 = vst [vmem:[#allocation2 + $0x1c8] sm:$0xff] %v1991
        %2287 = vst [vmem:[#allocation2 + $0x1d0] sm:$0xff] %v1992
        %2288 = vst.msk [vmem:[#allocation2 + $0x1d8] sm:$0xff] %vm2230, %v1993
        %2289 = vst [vmem:[#allocation2 + $0x1e0] sm:$0xff] %v1994
        %2290 = vst [vmem:[#allocation2 + $0x1e8] sm:$0xff] %v1995
        %2291 = vst.msk [vmem:[#allocation2 + $0x1f0] sm:$0xff] %vm2230, %v1996
        %2292 = vst [vmem:[#allocation2 + $0x1f8] sm:$0xff] %v1997
        %2293 = vst [vmem:[#allocation2 + $0x200] sm:$0xff] %v1998
        %2294 = vst.msk [vmem:[#allocation2 + $0x208] sm:$0xff] %vm2230, %v1999
        %2295 = vst [vmem:[#allocation2 + $0x210] sm:$0xff] %v2000
        %2296 = vst [vmem:[#allocation2 + $0x218] sm:$0xff] %v2001
        %2297 = vst.msk [vmem:[#allocation2 + $0x220] sm:$0xff] %vm2230, %v2002
        %2298 = vst [vmem:[#allocation2 + $0x228] sm:$0xff] %v2003
        %2299 = vst [vmem:[#allocation2 + $0x230] sm:$0xff] %v2004
        %2300 = vst.msk [vmem:[#allocation2 + $0x238] sm:$0xff] %vm2230, %v2005
        %2301 = vst [vmem:[#allocation2 + $0x240] sm:$0xff] %v2006
        %2302 = vst [vmem:[#allocation2 + $0x248] sm:$0xff] %v2007
        %2303 = vst.msk [vmem:[#allocation2 + $0x250] sm:$0xff] %vm2230, %v2008
        %2304 = vst [vmem:[#allocation2 + $0x258] sm:$0xff] %v2009
        %2305 = vst [vmem:[#allocation2 + $0x260] sm:$0xff] %v2010
        %2306 = vst.msk [vmem:[#allocation2 + $0x268] sm:$0xff] %vm2230, %v2011
        %2307 = vst [vmem:[#allocation2 + $0x270] sm:$0xff] %v2012
        %2308 = vst [vmem:[#allocation2 + $0x278] sm:$0xff] %v2013
        %2309 = vst.msk [vmem:[#allocation2 + $0x280] sm:$0xff] %vm2230, %v2014
        %2310 = vst [vmem:[#allocation2 + $0x288] sm:$0xff] %v2015
        %2311 = vst [vmem:[#allocation2 + $0x290] sm:$0xff] %v2016
        %2312 = vst.msk [vmem:[#allocation2 + $0x298] sm:$0xff] %vm2230, %v2017
        %2313 = vst [vmem:[#allocation2 + $0x2a0] sm:$0xff] %v2018
        %2314 = vst [vmem:[#allocation2 + $0x2a8] sm:$0xff] %v2019
        %2315 = vst.msk [vmem:[#allocation2 + $0x2b0] sm:$0xff] %vm2230, %v2020
        %2316 = vst [vmem:[#allocation2 + $0x2b8] sm:$0xff] %v2021
        %2317 = vst [vmem:[#allocation2 + $0x2c0] sm:$0xff] %v2022
        %2318 = vst.msk [vmem:[#allocation2 + $0x2c8] sm:$0xff] %vm2230, %v2023
        %2319 = vst [vmem:[#allocation2 + $0x2d0] sm:$0xff] %v2024
        %2320 = vst [vmem:[#allocation2 + $0x2d8] sm:$0xff] %v2025
        %2321 = vst.msk [vmem:[#allocation2 + $0x2e0] sm:$0xff] %vm2230, %v2026
        %2322 = vst [vmem:[#allocation2 + $0x2e8] sm:$0xff] %v2027
        %2323 = vst [vmem:[#allocation2 + $0x2f0] sm:$0xff] %v2028
        %2324 = vst.msk [vmem:[#allocation2 + $0x2f8] sm:$0xff] %vm2230, %v2029
        %2325 = vst [vmem:[#allocation2 + $0x300] sm:$0xff] %v2030
        %2326 = vst [vmem:[#allocation2 + $0x308] sm:$0xff] %v2031
        %2327 = vst.msk [vmem:[#allocation2 + $0x310] sm:$0xff] %vm2230, %v2032
        %2328 = vst [vmem:[#allocation2 + $0x318] sm:$0xff] %v2033
        %2329 = vst [vmem:[#allocation2 + $0x320] sm:$0xff] %v2034
        %2330 = vst.msk [vmem:[#allocation2 + $0x328] sm:$0xff] %vm2230, %v2035
        %2331 = vst [vmem:[#allocation2 + $0x330] sm:$0xff] %v2036
        %2332 = vst [vmem:[#allocation2 + $0x338] sm:$0xff] %v2037
        %2333 = vst.msk [vmem:[#allocation2 + $0x340] sm:$0xff] %vm2230, %v2038
        %2334 = vst [vmem:[#allocation2 + $0x348] sm:$0xff] %v2039
        %2335 = vst [vmem:[#allocation2 + $0x350] sm:$0xff] %v2040
        %2336 = vst.msk [vmem:[#allocation2 + $0x358] sm:$0xff] %vm2230, %v2041
        %2337 = vst [vmem:[#allocation2 + $0x360] sm:$0xff] %v2042
        %2338 = vst [vmem:[#allocation2 + $0x368] sm:$0xff] %v2043
        %2339 = vst.msk [vmem:[#allocation2 + $0x370] sm:$0xff] %vm2230, %v2044
        %2340 = vst [vmem:[#allocation2 + $0x378] sm:$0xff] %v2045
        %2341 = vst [vmem:[#allocation2 + $0x380] sm:$0xff] %v2046
        %2342 = vst.msk [vmem:[#allocation2 + $0x388] sm:$0xff] %vm2230, %v2047
        %2343 = vst [vmem:[#allocation2 + $0x390] sm:$0xff] %v2048
        %2344 = vst [vmem:[#allocation2 + $0x398] sm:$0xff] %v2049
        %2345 = vst.msk [vmem:[#allocation2 + $0x3a0] sm:$0xff] %vm2230, %v2050
        %2346 = vst [vmem:[#allocation2 + $0x3a8] sm:$0xff] %v2051
        %2347 = vst [vmem:[#allocation2 + $0x3b0] sm:$0xff] %v2052
        %2348 = vst.msk [vmem:[#allocation2 + $0x3b8] sm:$0xff] %vm2230, %v2053
        %2349 = vst [vmem:[#allocation2 + $0x3c0] sm:$0xff] %v2054
        %2350 = vst [vmem:[#allocation2 + $0x3c8] sm:$0xff] %v2055
        %2351 = vst.msk [vmem:[#allocation2 + $0x3d0] sm:$0xff] %vm2230, %v2056
        %2352 = vst [vmem:[#allocation2 + $0x3d8] sm:$0xff] %v2057
        %2353 = vst [vmem:[#allocation2 + $0x3e0] sm:$0xff] %v2058
        %2354 = vst.msk [vmem:[#allocation2 + $0x3e8] sm:$0xff] %vm2230, %v2059
        %2355 = vst [vmem:[#allocation2 + $0x3f0] sm:$0xff] %v2060
        %2356 = vst [vmem:[#allocation2 + $0x3f8] sm:$0xff] %v2061
        %2357 = vst.msk [vmem:[#allocation2 + $0x400] sm:$0xff] %vm2230, %v2062
        %2358 = vst [vmem:[#allocation2 + $0x408] sm:$0xff] %v2063
        %2359 = vst [vmem:[#allocation2 + $0x410] sm:$0xff] %v2064
        %2360 = vst.msk [vmem:[#allocation2 + $0x418] sm:$0xff] %vm2230, %v2065
        %2361 = vst [vmem:[#allocation2 + $0x420] sm:$0xff] %v2066
        %2362 = vst [vmem:[#allocation2 + $0x428] sm:$0xff] %v2067
        %2363 = vst.msk [vmem:[#allocation2 + $0x430] sm:$0xff] %vm2230, %v2068
        %2364 = vst [vmem:[#allocation2 + $0x438] sm:$0xff] %v2069
        %2365 = vst [vmem:[#allocation2 + $0x440] sm:$0xff] %v2070
        %2366 = vst.msk [vmem:[#allocation2 + $0x448] sm:$0xff] %vm2230, %v2071
        %2367 = vst [vmem:[#allocation2 + $0x450] sm:$0xff] %v2072
        %2368 = vst [vmem:[#allocation2 + $0x458] sm:$0xff] %v2073
        %2369 = vst.msk [vmem:[#allocation2 + $0x460] sm:$0xff] %vm2230, %v2074
        %2370 = vst [vmem:[#allocation2 + $0x468] sm:$0xff] %v2075
        %2371 = vst [vmem:[#allocation2 + $0x470] sm:$0xff] %v2076
        %2372 = vst.msk [vmem:[#allocation2 + $0x478] sm:$0xff] %vm2230, %v2077
        %2373 = vst [vmem:[#allocation2 + $0x480] sm:$0xff] %v2078
        %2374 = vst [vmem:[#allocation2 + $0x488] sm:$0xff] %v2079
        %2375 = vst.msk [vmem:[#allocation2 + $0x490] sm:$0xff] %vm2230, %v2080
        %2376 = vst [vmem:[#allocation2 + $0x498] sm:$0xff] %v2081
        %2377 = vst [vmem:[#allocation2 + $0x4a0] sm:$0xff] %v2082
        %2378 = vst.msk [vmem:[#allocation2 + $0x4a8] sm:$0xff] %vm2230, %v2083
        %2379 = vst [vmem:[#allocation2 + $0x4b0] sm:$0xff] %v2084
        %2380 = vst [vmem:[#allocation2 + $0x4b8] sm:$0xff] %v2085
        %2381 = vst.msk [vmem:[#allocation2 + $0x4c0] sm:$0xff] %vm2230, %v2086
        %2382 = vst [vmem:[#allocation2 + $0x4c8] sm:$0xff] %v2087
        %2383 = vst [vmem:[#allocation2 + $0x4d0] sm:$0xff] %v2088
        %2384 = vst.msk [vmem:[#allocation2 + $0x4d8] sm:$0xff] %vm2230, %v2089
        %2385 = vst [vmem:[#allocation2 + $0x4e0] sm:$0xff] %v2090
        %2386 = vst [vmem:[#allocation2 + $0x4e8] sm:$0xff] %v2091
        %2387 = vst.msk [vmem:[#allocation2 + $0x4f0] sm:$0xff] %vm2230, %v2092
        %2388 = vst [vmem:[#allocation2 + $0x4f8] sm:$0xff] %v2093
        %2389 = vst [vmem:[#allocation2 + $0x500] sm:$0xff] %v2094
        %2390 = vst.msk [vmem:[#allocation2 + $0x508] sm:$0xff] %vm2230, %v2095
        %2391 = vst [vmem:[#allocation2 + $0x510] sm:$0xff] %v2096
        %2392 = vst [vmem:[#allocation2 + $0x518] sm:$0xff] %v2097
        %2393 = vst.msk [vmem:[#allocation2 + $0x520] sm:$0xff] %vm2230, %v2098
        %2394 = vst [vmem:[#allocation2 + $0x528] sm:$0xff] %v2099
        %2395 = vst [vmem:[#allocation2 + $0x530] sm:$0xff] %v2100
        %2396 = vst.msk [vmem:[#allocation2 + $0x538] sm:$0xff] %vm2230, %v2101
        %2397 = vst [vmem:[#allocation2 + $0x540] sm:$0xff] %v2102
        %2398 = vst [vmem:[#allocation2 + $0x548] sm:$0xff] %v2103
        %2399 = vst.msk [vmem:[#allocation2 + $0x550] sm:$0xff] %vm2230, %v2104
        %2400 = vst [vmem:[#allocation2 + $0x558] sm:$0xff] %v2105
        %2401 = vst [vmem:[#allocation2 + $0x560] sm:$0xff] %v2106
        %2402 = vst.msk [vmem:[#allocation2 + $0x568] sm:$0xff] %vm2230, %v2107
        %2403 = vst [vmem:[#allocation2 + $0x570] sm:$0xff] %v2108
        %2404 = vst [vmem:[#allocation2 + $0x578] sm:$0xff] %v2109
        %2405 = vst.msk [vmem:[#allocation2 + $0x580] sm:$0xff] %vm2230, %v2110
        %2406 = vst [vmem:[#allocation2 + $0x588] sm:$0xff] %v2111
        %2407 = vst [vmem:[#allocation2 + $0x590] sm:$0xff] %v2112
        %2408 = vst.msk [vmem:[#allocation2 + $0x598] sm:$0xff] %vm2230, %v2113
        %2409 = vst [vmem:[#allocation2 + $0x5a0] sm:$0xff] %v2114
        %2410 = vst [vmem:[#allocation2 + $0x5a8] sm:$0xff] %v2115
        %2411 = vst.msk [vmem:[#allocation2 + $0x5b0] sm:$0xff] %vm2230, %v2116
        %2412 = vst [vmem:[#allocation2 + $0x5b8] sm:$0xff] %v2117
        %2413 = vst [vmem:[#allocation2 + $0x5c0] sm:$0xff] %v2118
        %2414 = vst.msk [vmem:[#allocation2 + $0x5c8] sm:$0xff] %vm2230, %v2119
        %2415 = vst [vmem:[#allocation2 + $0x5d0] sm:$0xff] %v2120
        %2416 = vst [vmem:[#allocation2 + $0x5d8] sm:$0xff] %v2121
        %2417 = vst.msk [vmem:[#allocation2 + $0x5e0] sm:$0xff] %vm2230, %v2122
        %2418 = vst [vmem:[#allocation2 + $0x5e8] sm:$0xff] %v2123
        %2419 = vst [vmem:[#allocation2 + $0x5f0] sm:$0xff] %v2124
        %2420 = vst.msk [vmem:[#allocation2 + $0x5f8] sm:$0xff] %vm2230, %v2125
        %2421 = vst [vmem:[#allocation2 + $0x600] sm:$0xff] %v2126
        %2422 = vst [vmem:[#allocation2 + $0x608] sm:$0xff] %v2127
        %2423 = vst.msk [vmem:[#allocation2 + $0x610] sm:$0xff] %vm2230, %v2128
        %2424 = vst [vmem:[#allocation2 + $0x618] sm:$0xff] %v2129
        %2425 = vst [vmem:[#allocation2 + $0x620] sm:$0xff] %v2130
        %2426 = vst.msk [vmem:[#allocation2 + $0x628] sm:$0xff] %vm2230, %v2131
        %2427 = vst [vmem:[#allocation2 + $0x630] sm:$0xff] %v2132
        %2428 = vst [vmem:[#allocation2 + $0x638] sm:$0xff] %v2133
        %2429 = vst.msk [vmem:[#allocation2 + $0x640] sm:$0xff] %vm2230, %v2134
        %2430 = vst [vmem:[#allocation2 + $0x648] sm:$0xff] %v2135
        %2431 = vst [vmem:[#allocation2 + $0x650] sm:$0xff] %v2136
        %2432 = vst.msk [vmem:[#allocation2 + $0x658] sm:$0xff] %vm2230, %v2137
        %2433 = vst [vmem:[#allocation2 + $0x660] sm:$0xff] %v2138
        %2434 = vst [vmem:[#allocation2 + $0x668] sm:$0xff] %v2139
        %2435 = vst.msk [vmem:[#allocation2 + $0x670] sm:$0xff] %vm2230, %v2140
        %2436 = vst [vmem:[#allocation2 + $0x678] sm:$0xff] %v2141
        %2437 = vst [vmem:[#allocation2 + $0x680] sm:$0xff] %v2142
        %2438 = vst.msk [vmem:[#allocation2 + $0x688] sm:$0xff] %vm2230, %v2143
        %2439 = vst [vmem:[#allocation2 + $0x690] sm:$0xff] %v2144
        %2440 = vst [vmem:[#allocation2 + $0x698] sm:$0xff] %v2145
        %2441 = vst.msk [vmem:[#allocation2 + $0x6a0] sm:$0xff] %vm2230, %v2146
        %2442 = vst [vmem:[#allocation2 + $0x6a8] sm:$0xff] %v2147
        %2443 = vst [vmem:[#allocation2 + $0x6b0] sm:$0xff] %v2148
        %2444 = vst.msk [vmem:[#allocation2 + $0x6b8] sm:$0xff] %vm2230, %v2149
        %2445 = vst [vmem:[#allocation2 + $0x6c0] sm:$0xff] %v2150
        %2446 = vst [vmem:[#allocation2 + $0x6c8] sm:$0xff] %v2151
        %2447 = vst.msk [vmem:[#allocation2 + $0x6d0] sm:$0xff] %vm2230, %v2152
        %2448 = vst [vmem:[#allocation2 + $0x6d8] sm:$0xff] %v2153
        %2449 = vst [vmem:[#allocation2 + $0x6e0] sm:$0xff] %v2154
        %2450 = vst.msk [vmem:[#allocation2 + $0x6e8] sm:$0xff] %vm2230, %v2155
        %2451 = vst [vmem:[#allocation2 + $0x6f0] sm:$0xff] %v2156
        %2452 = vst [vmem:[#allocation2 + $0x6f8] sm:$0xff] %v2157
        %2453 = vst.msk [vmem:[#allocation2 + $0x700] sm:$0xff] %vm2230, %v2158
        %2454 = vst [vmem:[#allocation2 + $0x708] sm:$0xff] %v2159
        %2455 = vst [vmem:[#allocation2 + $0x710] sm:$0xff] %v2160
        %2456 = vst.msk [vmem:[#allocation2 + $0x718] sm:$0xff] %vm2230, %v2161
        %2457 = vst [vmem:[#allocation2 + $0x720] sm:$0xff] %v2162
        %2458 = vst [vmem:[#allocation2 + $0x728] sm:$0xff] %v2163
        %2459 = vst.msk [vmem:[#allocation2 + $0x730] sm:$0xff] %vm2230, %v2164
        %2460 = vst [vmem:[#allocation2 + $0x738] sm:$0xff] %v2165
        %2461 = vst [vmem:[#allocation2 + $0x740] sm:$0xff] %v2166
        %2462 = vst.msk [vmem:[#allocation2 + $0x748] sm:$0xff] %vm2230, %v2167
        %2463 = vst [vmem:[#allocation2 + $0x750] sm:$0xff] %v2168
        %2464 = vst [vmem:[#allocation2 + $0x758] sm:$0xff] %v2169
        %2465 = vst.msk [vmem:[#allocation2 + $0x760] sm:$0xff] %vm2230, %v2170
        %2466 = vst [vmem:[#allocation2 + $0x768] sm:$0xff] %v2171
        %2467 = vst [vmem:[#allocation2 + $0x770] sm:$0xff] %v2172
        %2468 = vst.msk [vmem:[#allocation2 + $0x778] sm:$0xff] %vm2230, %v2173
        %2469 = vst [vmem:[#allocation2 + $0x780] sm:$0xff] %v2174
        %2470 = vst [vmem:[#allocation2 + $0x788] sm:$0xff] %v2175
        %2471 = vst.msk [vmem:[#allocation2 + $0x790] sm:$0xff] %vm2230, %v2176
        %2472 = vst [vmem:[#allocation2 + $0x798] sm:$0xff] %v2177
        %2473 = vst [vmem:[#allocation2 + $0x7a0] sm:$0xff] %v2178
        %2474 = vst.msk [vmem:[#allocation2 + $0x7a8] sm:$0xff] %vm2230, %v2179
        %2475 = vst [vmem:[#allocation2 + $0x7b0] sm:$0xff] %v2180
        %2476 = vst [vmem:[#allocation2 + $0x7b8] sm:$0xff] %v2181
        %2477 = vst.msk [vmem:[#allocation2 + $0x7c0] sm:$0xff] %vm2230, %v2182
        %2478 = vst [vmem:[#allocation2 + $0x7c8] sm:$0xff] %v2183
        %2479 = vst [vmem:[#allocation2 + $0x7d0] sm:$0xff] %v2184
        %2480 = vst.msk [vmem:[#allocation2 + $0x7d8] sm:$0xff] %vm2230, %v2185
        %2481 = vst [vmem:[#allocation2 + $0x7e0] sm:$0xff] %v2186
        %2482 = vst [vmem:[#allocation2 + $0x7e8] sm:$0xff] %v2187
        %2483 = vst.msk [vmem:[#allocation2 + $0x7f0] sm:$0xff] %vm2230, %v2188
        %2484 = vst [vmem:[#allocation2 + $0x7f8] sm:$0xff] %v2189
        %2485 = vst [vmem:[#allocation2 + $0x800] sm:$0xff] %v2190
        %2486 = vst.msk [vmem:[#allocation2 + $0x808] sm:$0xff] %vm2230, %v2191
        %2487 = vst [vmem:[#allocation2 + $0x810] sm:$0xff] %v2192
        %2488 = vst [vmem:[#allocation2 + $0x818] sm:$0xff] %v2193
        %2489 = vst.msk [vmem:[#allocation2 + $0x820] sm:$0xff] %vm2230, %v2194
        %2490 = vst [vmem:[#allocation2 + $0x828] sm:$0xff] %v2195
        %2491 = vst [vmem:[#allocation2 + $0x830] sm:$0xff] %v2196
        %2492 = vst.msk [vmem:[#allocation2 + $0x838] sm:$0xff] %vm2230, %v2197
        %2493 = vst [vmem:[#allocation2 + $0x840] sm:$0xff] %v2198
        %2494 = vst [vmem:[#allocation2 + $0x848] sm:$0xff] %v2199
        %2495 = vst.msk [vmem:[#allocation2 + $0x850] sm:$0xff] %vm2230, %v2200
        %2496 = vst [vmem:[#allocation2 + $0x858] sm:$0xff] %v2201
        %2497 = vst [vmem:[#allocation2 + $0x860] sm:$0xff] %v2202
        %2498 = vst.msk [vmem:[#allocation2 + $0x868] sm:$0xff] %vm2230, %v2203
        %2499 = vst [vmem:[#allocation2 + $0x870] sm:$0xff] %v2204
        %2500 = vst [vmem:[#allocation2 + $0x878] sm:$0xff] %v2205
        %2501 = vst.msk [vmem:[#allocation2 + $0x880] sm:$0xff] %vm2230, %v2206
        %2502 = vst [vmem:[#allocation2 + $0x888] sm:$0xff] %v2207
        %2503 = vst [vmem:[#allocation2 + $0x890] sm:$0xff] %v2208
        %2504 = vst.msk [vmem:[#allocation2 + $0x898] sm:$0xff] %vm2230, %v2209
        %2505 = vst [vmem:[#allocation2 + $0x8a0] sm:$0xff] %v2210
        %2506 = vst [vmem:[#allocation2 + $0x8a8] sm:$0xff] %v2211
        %2507 = vst.msk [vmem:[#allocation2 + $0x8b0] sm:$0xff] %vm2230, %v2212
        %2508 = vst [vmem:[#allocation2 + $0x8b8] sm:$0xff] %v2213
        %2509 = vst [vmem:[#allocation2 + $0x8c0] sm:$0xff] %v2214
        %2510 = vst.msk [vmem:[#allocation2 + $0x8c8] sm:$0xff] %vm2230, %v2215
        %2511 = vst [vmem:[#allocation2 + $0x8d0] sm:$0xff] %v2216
        %2512 = vst [vmem:[#allocation2 + $0x8d8] sm:$0xff] %v2217
        %2513 = vst.msk [vmem:[#allocation2 + $0x8e0] sm:$0xff] %vm2230, %v2218
        %2514 = vst [vmem:[#allocation2 + $0x8e8] sm:$0xff] %v2219
        %2515 = vst [vmem:[#allocation2 + $0x8f0] sm:$0xff] %v2220
        %2516 = vst.msk [vmem:[#allocation2 + $0x8f8] sm:$0xff] %vm2230, %v2221
        %2517 = vst [vmem:[#allocation2 + $0x900] sm:$0xff] %v2222
        %2518 = vst [vmem:[#allocation2 + $0x908] sm:$0xff] %v2223
        %2519 = vst.msk [vmem:[#allocation2 + $0x910] sm:$0xff] %vm2230, %v2224
        %2520 = vst [vmem:[#allocation2 + $0x918] sm:$0xff] %v2225
        %2521 = vst [vmem:[#allocation2 + $0x920] sm:$0xff] %v2226
        %2522 = vst.msk [vmem:[#allocation2 + $0x928] sm:$0xff] %vm2230, %v2227
        %v2523 = vld [vmem:[#allocation2] sm:$0xff]
        %v2524 = vld [vmem:[#allocation2 + $0x8] sm:$0xff]
        %v2525 = vld [vmem:[#allocation2 + $0x10] sm:$0xff]
        %v2526 = vld [vmem:[#allocation2 + $0x18] sm:$0xff]
        %v2527 = vld [vmem:[#allocation2 + $0x20] sm:$0xff]
        %v2528 = vld [vmem:[#allocation2 + $0x28] sm:$0xff]
        %v2529 = vld [vmem:[#allocation2 + $0x30] sm:$0xff]
        %v2530 = vld [vmem:[#allocation2 + $0x38] sm:$0xff]
        %v2531 = vld [vmem:[#allocation2 + $0x40] sm:$0xff]
        %v2532 = vld [vmem:[#allocation2 + $0x48] sm:$0xff]
        %v2533 = vld [vmem:[#allocation2 + $0x50] sm:$0xff]
        %v2534 = vld [vmem:[#allocation2 + $0x58] sm:$0xff]
        %v2535 = vld [vmem:[#allocation2 + $0x60] sm:$0xff]
        %v2536 = vld [vmem:[#allocation2 + $0x68] sm:$0xff]
        %v2537 = vld [vmem:[#allocation2 + $0x70] sm:$0xff]
        %v2538 = vld [vmem:[#allocation2 + $0x78] sm:$0xff]
        %v2539 = vld [vmem:[#allocation2 + $0x80] sm:$0xff]
        %v2540 = vld [vmem:[#allocation2 + $0x88] sm:$0xff]
        %v2541 = vld [vmem:[#allocation2 + $0x90] sm:$0xff]
        %v2542 = vld [vmem:[#allocation2 + $0x98] sm:$0xff]
        %v2543 = vld [vmem:[#allocation2 + $0xa0] sm:$0xff]
        %v2544 = vld [vmem:[#allocation2 + $0xa8] sm:$0xff]
        %v2545 = vld [vmem:[#allocation2 + $0xb0] sm:$0xff]
        %v2546 = vld [vmem:[#allocation2 + $0xb8] sm:$0xff]
        %v2547 = vld [vmem:[#allocation2 + $0xc0] sm:$0xff]
        %v2548 = vld [vmem:[#allocation2 + $0xc8] sm:$0xff]
        %v2549 = vld [vmem:[#allocation2 + $0xd0] sm:$0xff]
        %v2550 = vld [vmem:[#allocation2 + $0xd8] sm:$0xff]
        %v2551 = vld [vmem:[#allocation2 + $0xe0] sm:$0xff]
        %v2552 = vld [vmem:[#allocation2 + $0xe8] sm:$0xff]
        %v2553 = vld [vmem:[#allocation2 + $0xf0] sm:$0xff]
        %v2554 = vld [vmem:[#allocation2 + $0xf8] sm:$0xff]
        %v2555 = vld [vmem:[#allocation2 + $0x100] sm:$0xff]
        %v2556 = vld [vmem:[#allocation2 + $0x108] sm:$0xff]
        %v2557 = vld [vmem:[#allocation2 + $0x110] sm:$0xff]
        %v2558 = vld [vmem:[#allocation2 + $0x118] sm:$0xff]
        %v2559 = vld [vmem:[#allocation2 + $0x120] sm:$0xff]
        %v2560 = vld [vmem:[#allocation2 + $0x128] sm:$0xff]
        %v2561 = vld [vmem:[#allocation2 + $0x130] sm:$0xff]
        %v2562 = vld [vmem:[#allocation2 + $0x138] sm:$0xff]
        %v2563 = vld [vmem:[#allocation2 + $0x140] sm:$0xff]
        %v2564 = vld [vmem:[#allocation2 + $0x148] sm:$0xff]
        %v2565 = vld [vmem:[#allocation2 + $0x150] sm:$0xff]
        %v2566 = vld [vmem:[#allocation2 + $0x158] sm:$0xff]
        %v2567 = vld [vmem:[#allocation2 + $0x160] sm:$0xff]
        %v2568 = vld [vmem:[#allocation2 + $0x168] sm:$0xff]
        %v2569 = vld [vmem:[#allocation2 + $0x170] sm:$0xff]
        %v2570 = vld [vmem:[#allocation2 + $0x178] sm:$0xff]
        %v2571 = vld [vmem:[#allocation2 + $0x180] sm:$0xff]
        %v2572 = vld [vmem:[#allocation2 + $0x188] sm:$0xff]
        %v2573 = vld [vmem:[#allocation2 + $0x190] sm:$0xff]
        %v2574 = vld [vmem:[#allocation2 + $0x198] sm:$0xff]
        %v2575 = vld [vmem:[#allocation2 + $0x1a0] sm:$0xff]
        %v2576 = vld [vmem:[#allocation2 + $0x1a8] sm:$0xff]
        %v2577 = vld [vmem:[#allocation2 + $0x1b0] sm:$0xff]
        %v2578 = vld [vmem:[#allocation2 + $0x1b8] sm:$0xff]
        %v2579 = vld [vmem:[#allocation2 + $0x1c0] sm:$0xff]
        %v2580 = vld [vmem:[#allocation2 + $0x1c8] sm:$0xff]
        %v2581 = vld [vmem:[#allocation2 + $0x1d0] sm:$0xff]
        %v2582 = vld [vmem:[#allocation2 + $0x1d8] sm:$0xff]
        %v2583 = vld [vmem:[#allocation2 + $0x1e0] sm:$0xff]
        %v2584 = vld [vmem:[#allocation2 + $0x1e8] sm:$0xff]
        %v2585 = vld [vmem:[#allocation2 + $0x1f0] sm:$0xff]
        %v2586 = vld [vmem:[#allocation2 + $0x1f8] sm:$0xff]
        %v2587 = vld [vmem:[#allocation2 + $0x200] sm:$0xff]
        %v2588 = vld [vmem:[#allocation2 + $0x208] sm:$0xff]
        %v2589 = vld [vmem:[#allocation2 + $0x210] sm:$0xff]
        %v2590 = vld [vmem:[#allocation2 + $0x218] sm:$0xff]
        %v2591 = vld [vmem:[#allocation2 + $0x220] sm:$0xff]
        %v2592 = vld [vmem:[#allocation2 + $0x228] sm:$0xff]
        %v2593 = vld [vmem:[#allocation2 + $0x230] sm:$0xff]
        %v2594 = vld [vmem:[#allocation2 + $0x238] sm:$0xff]
        %v2595 = vld [vmem:[#allocation2 + $0x240] sm:$0xff]
        %v2596 = vld [vmem:[#allocation2 + $0x248] sm:$0xff]
        %v2597 = vld [vmem:[#allocation2 + $0x250] sm:$0xff]
        %v2598 = vld [vmem:[#allocation2 + $0x258] sm:$0xff]
        %v2599 = vld [vmem:[#allocation2 + $0x260] sm:$0xff]
        %v2600 = vld [vmem:[#allocation2 + $0x268] sm:$0xff]
        %v2601 = vld [vmem:[#allocation2 + $0x270] sm:$0xff]
        %v2602 = vld [vmem:[#allocation2 + $0x278] sm:$0xff]
        %v2603 = vld [vmem:[#allocation2 + $0x280] sm:$0xff]
        %v2604 = vld [vmem:[#allocation2 + $0x288] sm:$0xff]
        %v2605 = vld [vmem:[#allocation2 + $0x290] sm:$0xff]
        %v2606 = vld [vmem:[#allocation2 + $0x298] sm:$0xff]
        %v2607 = vld [vmem:[#allocation2 + $0x2a0] sm:$0xff]
        %v2608 = vld [vmem:[#allocation2 + $0x2a8] sm:$0xff]
        %v2609 = vld [vmem:[#allocation2 + $0x2b0] sm:$0xff]
        %v2610 = vld [vmem:[#allocation2 + $0x2b8] sm:$0xff]
        %v2611 = vld [vmem:[#allocation2 + $0x2c0] sm:$0xff]
        %v2612 = vld [vmem:[#allocation2 + $0x2c8] sm:$0xff]
        %v2613 = vld [vmem:[#allocation2 + $0x2d0] sm:$0xff]
        %v2614 = vld [vmem:[#allocation2 + $0x2d8] sm:$0xff]
        %v2615 = vld [vmem:[#allocation2 + $0x2e0] sm:$0xff]
        %v2616 = vld [vmem:[#allocation2 + $0x2e8] sm:$0xff]
        %v2617 = vld [vmem:[#allocation2 + $0x2f0] sm:$0xff]
        %v2618 = vld [vmem:[#allocation2 + $0x2f8] sm:$0xff]
        %v2619 = vld [vmem:[#allocation2 + $0x300] sm:$0xff]
        %v2620 = vld [vmem:[#allocation2 + $0x308] sm:$0xff]
        %v2621 = vld [vmem:[#allocation2 + $0x310] sm:$0xff]
        %v2622 = vld [vmem:[#allocation2 + $0x318] sm:$0xff]
        %v2623 = vld [vmem:[#allocation2 + $0x320] sm:$0xff]
        %v2624 = vld [vmem:[#allocation2 + $0x328] sm:$0xff]
        %v2625 = vld [vmem:[#allocation2 + $0x330] sm:$0xff]
        %v2626 = vld [vmem:[#allocation2 + $0x338] sm:$0xff]
        %v2627 = vld [vmem:[#allocation2 + $0x340] sm:$0xff]
        %v2628 = vld [vmem:[#allocation2 + $0x348] sm:$0xff]
        %v2629 = vld [vmem:[#allocation2 + $0x350] sm:$0xff]
        %v2630 = vld [vmem:[#allocation2 + $0x358] sm:$0xff]
        %v2631 = vld [vmem:[#allocation2 + $0x360] sm:$0xff]
        %v2632 = vld [vmem:[#allocation2 + $0x368] sm:$0xff]
        %v2633 = vld [vmem:[#allocation2 + $0x370] sm:$0xff]
        %v2634 = vld [vmem:[#allocation2 + $0x378] sm:$0xff]
        %v2635 = vld [vmem:[#allocation2 + $0x380] sm:$0xff]
        %v2636 = vld [vmem:[#allocation2 + $0x388] sm:$0xff]
        %v2637 = vld [vmem:[#allocation2 + $0x390] sm:$0xff]
        %v2638 = vld [vmem:[#allocation2 + $0x398] sm:$0xff]
        %v2639 = vld [vmem:[#allocation2 + $0x3a0] sm:$0xff]
        %v2640 = vld [vmem:[#allocation2 + $0x3a8] sm:$0xff]
        %v2641 = vld [vmem:[#allocation2 + $0x3b0] sm:$0xff]
        %v2642 = vld [vmem:[#allocation2 + $0x3b8] sm:$0xff]
        %v2643 = vld [vmem:[#allocation2 + $0x3c0] sm:$0xff]
        %v2644 = vld [vmem:[#allocation2 + $0x3c8] sm:$0xff]
        %v2645 = vld [vmem:[#allocation2 + $0x3d0] sm:$0xff]
        %v2646 = vld [vmem:[#allocation2 + $0x3d8] sm:$0xff]
        %v2647 = vld [vmem:[#allocation2 + $0x3e0] sm:$0xff]
        %v2648 = vld [vmem:[#allocation2 + $0x3e8] sm:$0xff]
        %v2649 = vld [vmem:[#allocation2 + $0x3f0] sm:$0xff]
        %v2650 = vld [vmem:[#allocation2 + $0x3f8] sm:$0xff]
        %v2651 = vld [vmem:[#allocation2 + $0x400] sm:$0xff]
        %v2652 = vld [vmem:[#allocation2 + $0x408] sm:$0xff]
        %v2653 = vld [vmem:[#allocation2 + $0x410] sm:$0xff]
        %v2654 = vld [vmem:[#allocation2 + $0x418] sm:$0xff]
        %v2655 = vld [vmem:[#allocation2 + $0x420] sm:$0xff]
        %v2656 = vld [vmem:[#allocation2 + $0x428] sm:$0xff]
        %v2657 = vld [vmem:[#allocation2 + $0x430] sm:$0xff]
        %v2658 = vld [vmem:[#allocation2 + $0x438] sm:$0xff]
        %v2659 = vld [vmem:[#allocation2 + $0x440] sm:$0xff]
        %v2660 = vld [vmem:[#allocation2 + $0x448] sm:$0xff]
        %v2661 = vld [vmem:[#allocation2 + $0x450] sm:$0xff]
        %v2662 = vld [vmem:[#allocation2 + $0x458] sm:$0xff]
        %v2663 = vld [vmem:[#allocation2 + $0x460] sm:$0xff]
        %v2664 = vld [vmem:[#allocation2 + $0x468] sm:$0xff]
        %v2665 = vld [vmem:[#allocation2 + $0x470] sm:$0xff]
        %v2666 = vld [vmem:[#allocation2 + $0x478] sm:$0xff]
        %v2667 = vld [vmem:[#allocation2 + $0x480] sm:$0xff]
        %v2668 = vld [vmem:[#allocation2 + $0x488] sm:$0xff]
        %v2669 = vld [vmem:[#allocation2 + $0x490] sm:$0xff]
        %v2670 = vld [vmem:[#allocation2 + $0x498] sm:$0xff]
        %v2671 = vld [vmem:[#allocation2 + $0x4a0] sm:$0xff]
        %v2672 = vld [vmem:[#allocation2 + $0x4a8] sm:$0xff]
        %v2673 = vld [vmem:[#allocation2 + $0x4b0] sm:$0xff]
        %v2674 = vld [vmem:[#allocation2 + $0x4b8] sm:$0xff]
        %v2675 = vld [vmem:[#allocation2 + $0x4c0] sm:$0xff]
        %v2676 = vld [vmem:[#allocation2 + $0x4c8] sm:$0xff]
        %v2677 = vld [vmem:[#allocation2 + $0x4d0] sm:$0xff]
        %v2678 = vld [vmem:[#allocation2 + $0x4d8] sm:$0xff]
        %v2679 = vld [vmem:[#allocation2 + $0x4e0] sm:$0xff]
        %v2680 = vld [vmem:[#allocation2 + $0x4e8] sm:$0xff]
        %v2681 = vld [vmem:[#allocation2 + $0x4f0] sm:$0xff]
        %v2682 = vld [vmem:[#allocation2 + $0x4f8] sm:$0xff]
        %v2683 = vld [vmem:[#allocation2 + $0x500] sm:$0xff]
        %v2684 = vld [vmem:[#allocation2 + $0x508] sm:$0xff]
        %v2685 = vld [vmem:[#allocation2 + $0x510] sm:$0xff]
        %v2686 = vld [vmem:[#allocation2 + $0x518] sm:$0xff]
        %v2687 = vld [vmem:[#allocation2 + $0x520] sm:$0xff]
        %v2688 = vld [vmem:[#allocation2 + $0x528] sm:$0xff]
        %v2689 = vld [vmem:[#allocation2 + $0x530] sm:$0xff]
        %v2690 = vld [vmem:[#allocation2 + $0x538] sm:$0xff]
        %v2691 = vld [vmem:[#allocation2 + $0x540] sm:$0xff]
        %v2692 = vld [vmem:[#allocation2 + $0x548] sm:$0xff]
        %v2693 = vld [vmem:[#allocation2 + $0x550] sm:$0xff]
        %v2694 = vld [vmem:[#allocation2 + $0x558] sm:$0xff]
        %v2695 = vld [vmem:[#allocation2 + $0x560] sm:$0xff]
        %v2696 = vld [vmem:[#allocation2 + $0x568] sm:$0xff]
        %v2697 = vld [vmem:[#allocation2 + $0x570] sm:$0xff]
        %v2698 = vld [vmem:[#allocation2 + $0x578] sm:$0xff]
        %v2699 = vld [vmem:[#allocation2 + $0x580] sm:$0xff]
        %v2700 = vld [vmem:[#allocation2 + $0x588] sm:$0xff]
        %v2701 = vld [vmem:[#allocation2 + $0x590] sm:$0xff]
        %v2702 = vld [vmem:[#allocation2 + $0x598] sm:$0xff]
        %v2703 = vld [vmem:[#allocation2 + $0x5a0] sm:$0xff]
        %v2704 = vld [vmem:[#allocation2 + $0x5a8] sm:$0xff]
        %v2705 = vld [vmem:[#allocation2 + $0x5b0] sm:$0xff]
        %v2706 = vld [vmem:[#allocation2 + $0x5b8] sm:$0xff]
        %v2707 = vld [vmem:[#allocation2 + $0x5c0] sm:$0xff]
        %v2708 = vld [vmem:[#allocation2 + $0x5c8] sm:$0xff]
        %v2709 = vld [vmem:[#allocation2 + $0x5d0] sm:$0xff]
        %v2710 = vld [vmem:[#allocation2 + $0x5d8] sm:$0xff]
        %v2711 = vld [vmem:[#allocation2 + $0x5e0] sm:$0xff]
        %v2712 = vld [vmem:[#allocation2 + $0x5e8] sm:$0xff]
        %v2713 = vld [vmem:[#allocation2 + $0x5f0] sm:$0xff]
        %v2714 = vld [vmem:[#allocation2 + $0x5f8] sm:$0xff]
        %v2715 = vld [vmem:[#allocation2 + $0x600] sm:$0xff]
        %v2716 = vld [vmem:[#allocation2 + $0x608] sm:$0xff]
        %v2717 = vld [vmem:[#allocation2 + $0x610] sm:$0xff]
        %v2718 = vld [vmem:[#allocation2 + $0x618] sm:$0xff]
        %v2719 = vld [vmem:[#allocation2 + $0x620] sm:$0xff]
        %v2720 = vld [vmem:[#allocation2 + $0x628] sm:$0xff]
        %v2721 = vld [vmem:[#allocation2 + $0x630] sm:$0xff]
        %v2722 = vld [vmem:[#allocation2 + $0x638] sm:$0xff]
        %v2723 = vld [vmem:[#allocation2 + $0x640] sm:$0xff]
        %v2724 = vld [vmem:[#allocation2 + $0x648] sm:$0xff]
        %v2725 = vld [vmem:[#allocation2 + $0x650] sm:$0xff]
        %v2726 = vld [vmem:[#allocation2 + $0x658] sm:$0xff]
        %v2727 = vld [vmem:[#allocation2 + $0x660] sm:$0xff]
        %v2728 = vld [vmem:[#allocation2 + $0x668] sm:$0xff]
        %v2729 = vld [vmem:[#allocation2 + $0x670] sm:$0xff]
        %v2730 = vld [vmem:[#allocation2 + $0x678] sm:$0xff]
        %v2731 = vld [vmem:[#allocation2 + $0x680] sm:$0xff]
        %v2732 = vld [vmem:[#allocation2 + $0x688] sm:$0xff]
        %v2733 = vld [vmem:[#allocation2 + $0x690] sm:$0xff]
        %v2734 = vld [vmem:[#allocation2 + $0x698] sm:$0xff]
        %v2735 = vld [vmem:[#allocation2 + $0x6a0] sm:$0xff]
        %v2736 = vld [vmem:[#allocation2 + $0x6a8] sm:$0xff]
        %v2737 = vld [vmem:[#allocation2 + $0x6b0] sm:$0xff]
        %v2738 = vld [vmem:[#allocation2 + $0x6b8] sm:$0xff]
        %v2739 = vld [vmem:[#allocation2 + $0x6c0] sm:$0xff]
        %v2740 = vld [vmem:[#allocation2 + $0x6c8] sm:$0xff]
        %v2741 = vld [vmem:[#allocation2 + $0x6d0] sm:$0xff]
        %v2742 = vld [vmem:[#allocation2 + $0x6d8] sm:$0xff]
        %v2743 = vld [vmem:[#allocation2 + $0x6e0] sm:$0xff]
        %v2744 = vld [vmem:[#allocation2 + $0x6e8] sm:$0xff]
        %v2745 = vld [vmem:[#allocation2 + $0x6f0] sm:$0xff]
        %v2746 = vld [vmem:[#allocation2 + $0x6f8] sm:$0xff]
        %v2747 = vld [vmem:[#allocation2 + $0x700] sm:$0xff]
        %v2748 = vld [vmem:[#allocation2 + $0x708] sm:$0xff]
        %v2749 = vld [vmem:[#allocation2 + $0x710] sm:$0xff]
        %v2750 = vld [vmem:[#allocation2 + $0x718] sm:$0xff]
        %v2751 = vld [vmem:[#allocation2 + $0x720] sm:$0xff]
        %v2752 = vld [vmem:[#allocation2 + $0x728] sm:$0xff]
        %v2753 = vld [vmem:[#allocation2 + $0x730] sm:$0xff]
        %v2754 = vld [vmem:[#allocation2 + $0x738] sm:$0xff]
        %v2755 = vld [vmem:[#allocation2 + $0x740] sm:$0xff]
        %v2756 = vld [vmem:[#allocation2 + $0x748] sm:$0xff]
        %v2757 = vld [vmem:[#allocation2 + $0x750] sm:$0xff]
        %v2758 = vld [vmem:[#allocation2 + $0x758] sm:$0xff]
        %v2759 = vld [vmem:[#allocation2 + $0x760] sm:$0xff]
        %v2760 = vld [vmem:[#allocation2 + $0x768] sm:$0xff]
        %v2761 = vld [vmem:[#allocation2 + $0x770] sm:$0xff]
        %v2762 = vld [vmem:[#allocation2 + $0x778] sm:$0xff]
        %v2763 = vld [vmem:[#allocation2 + $0x780] sm:$0xff]
        %v2764 = vld [vmem:[#allocation2 + $0x788] sm:$0xff]
        %v2765 = vld [vmem:[#allocation2 + $0x790] sm:$0xff]
        %v2766 = vld [vmem:[#allocation2 + $0x798] sm:$0xff]
        %v2767 = vld [vmem:[#allocation2 + $0x7a0] sm:$0xff]
        %v2768 = vld [vmem:[#allocation2 + $0x7a8] sm:$0xff]
        %v2769 = vld [vmem:[#allocation2 + $0x7b0] sm:$0xff]
        %v2770 = vld [vmem:[#allocation2 + $0x7b8] sm:$0xff]
        %v2771 = vld [vmem:[#allocation2 + $0x7c0] sm:$0xff]
        %v2772 = vld [vmem:[#allocation2 + $0x7c8] sm:$0xff]
        %v2773 = vld [vmem:[#allocation2 + $0x7d0] sm:$0xff]
        %v2774 = vld [vmem:[#allocation2 + $0x7d8] sm:$0xff]
        %v2775 = vld [vmem:[#allocation2 + $0x7e0] sm:$0xff]
        %v2776 = vld [vmem:[#allocation2 + $0x7e8] sm:$0xff]
        %v2777 = vld [vmem:[#allocation2 + $0x7f0] sm:$0xff]
        %v2778 = vld [vmem:[#allocation2 + $0x7f8] sm:$0xff]
        %v2779 = vld [vmem:[#allocation2 + $0x800] sm:$0xff]
        %v2780 = vld [vmem:[#allocation2 + $0x808] sm:$0xff]
        %v2781 = vld [vmem:[#allocation2 + $0x810] sm:$0xff]
        %v2782 = vld [vmem:[#allocation2 + $0x818] sm:$0xff]
        %v2783 = vld [vmem:[#allocation2 + $0x820] sm:$0xff]
        %v2784 = vld [vmem:[#allocation2 + $0x828] sm:$0xff]
        %v2785 = vld [vmem:[#allocation2 + $0x830] sm:$0xff]
        %v2786 = vld [vmem:[#allocation2 + $0x838] sm:$0xff]
        %v2787 = vld [vmem:[#allocation2 + $0x840] sm:$0xff]
        %v2788 = vld [vmem:[#allocation2 + $0x848] sm:$0xff]
        %v2789 = vld [vmem:[#allocation2 + $0x850] sm:$0xff]
        %v2790 = vld [vmem:[#allocation2 + $0x858] sm:$0xff]
        %v2791 = vld [vmem:[#allocation2 + $0x860] sm:$0xff]
        %v2792 = vld [vmem:[#allocation2 + $0x868] sm:$0xff]
        %v2793 = vld [vmem:[#allocation2 + $0x870] sm:$0xff]
        %v2794 = vld [vmem:[#allocation2 + $0x878] sm:$0xff]
        %v2795 = vld [vmem:[#allocation2 + $0x880] sm:$0xff]
        %v2796 = vld [vmem:[#allocation2 + $0x888] sm:$0xff]
        %v2797 = vld [vmem:[#allocation2 + $0x890] sm:$0xff]
        %v2798 = vld [vmem:[#allocation2 + $0x898] sm:$0xff]
        %v2799 = vld [vmem:[#allocation2 + $0x8a0] sm:$0xff]
        %v2800 = vld [vmem:[#allocation2 + $0x8a8] sm:$0xff]
        %v2801 = vld [vmem:[#allocation2 + $0x8b0] sm:$0xff]
        %v2802 = vld [vmem:[#allocation2 + $0x8b8] sm:$0xff]
        %v2803 = vld [vmem:[#allocation2 + $0x8c0] sm:$0xff]
        %v2804 = vld [vmem:[#allocation2 + $0x8c8] sm:$0xff]
        %v2805 = vld [vmem:[#allocation2 + $0x8d0] sm:$0xff]
        %v2806 = vld [vmem:[#allocation2 + $0x8d8] sm:$0xff]
        %v2807 = vld [vmem:[#allocation2 + $0x8e0] sm:$0xff]
        %v2808 = vld [vmem:[#allocation2 + $0x8e8] sm:$0xff]
        %v2809 = vld [vmem:[#allocation2 + $0x8f0] sm:$0xff]
        %v2810 = vld [vmem:[#allocation2 + $0x8f8] sm:$0xff]
        %v2811 = vld [vmem:[#allocation2 + $0x900] sm:$0xff]
        %v2812 = vld [vmem:[#allocation2 + $0x908] sm:$0xff]
        %v2813 = vld [vmem:[#allocation2 + $0x910] sm:$0xff]
        %v2814 = vld [vmem:[#allocation2 + $0x918] sm:$0xff]
        %v2815 = vld [vmem:[#allocation2 + $0x920] sm:$0xff]
        %v2816 = vld [vmem:[#allocation2 + $0x928] sm:$0xff]
        %v2817 = vld [vmem:[%s3] sm:$0xff]
        %v2818 = vld [vmem:[%s3 + $0x8] sm:$0xff]
        %v2819 = vld [vmem:[%s3 + $0x10] sm:$0xff]
        %v2820 = vld [vmem:[%s3 + $0x18] sm:$0xff]
        %v2821 = vld [vmem:[%s3 + $0x20] sm:$0xff]
        %v2822 = vld [vmem:[%s3 + $0x28] sm:$0xff]
        %v2823 = vld [vmem:[%s3 + $0x30] sm:$0xff]
        %v2824 = vld [vmem:[%s3 + $0x38] sm:$0xff]
        %v2825 = vld [vmem:[%s3 + $0x40] sm:$0xff]
        %v2826 = vld [vmem:[%s3 + $0x48] sm:$0xff]
        %v2827 = vld [vmem:[%s3 + $0x50] sm:$0xff]
        %v2828 = vld [vmem:[%s3 + $0x58] sm:$0xff]
        %v2829 = vld [vmem:[%s3 + $0x60] sm:$0xff]
        %v2830 = vld [vmem:[%s3 + $0x68] sm:$0xff]
        %v2831 = vld [vmem:[%s3 + $0x70] sm:$0xff]
        %v2832 = vld [vmem:[%s3 + $0x78] sm:$0xff]
        %v2833 = vld [vmem:[%s3 + $0x80] sm:$0xff]
        %v2834 = vld [vmem:[%s3 + $0x88] sm:$0xff]
        %v2835 = vld [vmem:[%s3 + $0x90] sm:$0xff]
        %v2836 = vld [vmem:[%s3 + $0x98] sm:$0xff]
        %v2837 = vld [vmem:[%s3 + $0xa0] sm:$0xff]
        %v2838 = vld [vmem:[%s3 + $0xa8] sm:$0xff]
        %v2839 = vld [vmem:[%s3 + $0xb0] sm:$0xff]
        %v2840 = vld [vmem:[%s3 + $0xb8] sm:$0xff]
        %v2841 = vld [vmem:[%s3 + $0xc0] sm:$0xff]
        %v2842 = vld [vmem:[%s3 + $0xc8] sm:$0xff]
        %v2843 = vld [vmem:[%s3 + $0xd0] sm:$0xff]
        %v2844 = vld [vmem:[%s3 + $0xd8] sm:$0xff]
        %v2845 = vld [vmem:[%s3 + $0xe0] sm:$0xff]
        %v2846 = vld [vmem:[%s3 + $0xe8] sm:$0xff]
        %v2847 = vld [vmem:[%s3 + $0xf0] sm:$0xff]
        %v2848 = vld [vmem:[%s3 + $0xf8] sm:$0xff]
        %v2849 = vld [vmem:[%s3 + $0x100] sm:$0xff]
        %v2850 = vld [vmem:[%s3 + $0x108] sm:$0xff]
        %v2851 = vld [vmem:[%s3 + $0x110] sm:$0xff]
        %v2852 = vld [vmem:[%s3 + $0x118] sm:$0xff]
        %v2853 = vld [vmem:[%s4] sm:$0x1]
        %v2855 = vlaneseq
        %v2856 = vshrl.u32 %v2855, 7
        %v2857 = vsub.s32 0, %v2856
        %v2858 = vrot.slane %v2853, %v2857
        %v2861 = vsel %vm2230, %v2525, 0
        %v2864 = vsel %vm2230, %v2528, 0
        %v2867 = vsel %vm2230, %v2531, 0
        %v2870 = vsel %vm2230, %v2534, 0
        %v2873 = vsel %vm2230, %v2537, 0
        %v2876 = vsel %vm2230, %v2540, 0
        %v2879 = vsel %vm2230, %v2543, 0
        %v2882 = vsel %vm2230, %v2546, 0
        %v2885 = vsel %vm2230, %v2549, 0
        %v2888 = vsel %vm2230, %v2552, 0
        %v2891 = vsel %vm2230, %v2555, 0
        %v2894 = vsel %vm2230, %v2558, 0
        %v2897 = vsel %vm2230, %v2561, 0
        %v2900 = vsel %vm2230, %v2564, 0
        %v2903 = vsel %vm2230, %v2567, 0
        %v2906 = vsel %vm2230, %v2570, 0
        %v2909 = vsel %vm2230, %v2573, 0
        %v2912 = vsel %vm2230, %v2576, 0
        %v2915 = vsel %vm2230, %v2579, 0
        %v2918 = vsel %vm2230, %v2582, 0
        %v2921 = vsel %vm2230, %v2585, 0
        %v2924 = vsel %vm2230, %v2588, 0
        %v2927 = vsel %vm2230, %v2591, 0
        %v2930 = vsel %vm2230, %v2594, 0
        %v2933 = vsel %vm2230, %v2597, 0
        %v2936 = vsel %vm2230, %v2600, 0
        %v2939 = vsel %vm2230, %v2603, 0
        %v2942 = vsel %vm2230, %v2606, 0
        %v2945 = vsel %vm2230, %v2609, 0
        %v2948 = vsel %vm2230, %v2612, 0
        %v2951 = vsel %vm2230, %v2615, 0
        %v2954 = vsel %vm2230, %v2618, 0
        %v2957 = vsel %vm2230, %v2621, 0
        %v2960 = vsel %vm2230, %v2624, 0
        %v2963 = vsel %vm2230, %v2627, 0
        %v2966 = vsel %vm2230, %v2630, 0
        %v2969 = vsel %vm2230, %v2633, 0
        %v2972 = vsel %vm2230, %v2636, 0
        %v2975 = vsel %vm2230, %v2639, 0
        %v2978 = vsel %vm2230, %v2642, 0
        %v2981 = vsel %vm2230, %v2645, 0
        %v2984 = vsel %vm2230, %v2648, 0
        %v2987 = vsel %vm2230, %v2651, 0
        %v2990 = vsel %vm2230, %v2654, 0
        %v2993 = vsel %vm2230, %v2657, 0
        %v2996 = vsel %vm2230, %v2660, 0
        %v2999 = vsel %vm2230, %v2663, 0
        %v3002 = vsel %vm2230, %v2666, 0
        %v3005 = vsel %vm2230, %v2669, 0
        %v3008 = vsel %vm2230, %v2672, 0
        %v3011 = vsel %vm2230, %v2675, 0
        %v3014 = vsel %vm2230, %v2678, 0
        %v3017 = vsel %vm2230, %v2681, 0
        %v3020 = vsel %vm2230, %v2684, 0
        %v3023 = vsel %vm2230, %v2687, 0
        %v3026 = vsel %vm2230, %v2690, 0
        %v3029 = vsel %vm2230, %v2693, 0
        %v3032 = vsel %vm2230, %v2696, 0
        %v3035 = vsel %vm2230, %v2699, 0
        %v3038 = vsel %vm2230, %v2702, 0
        %v3041 = vsel %vm2230, %v2705, 0
        %v3044 = vsel %vm2230, %v2708, 0
        %v3047 = vsel %vm2230, %v2711, 0
        %v3050 = vsel %vm2230, %v2714, 0
        %v3053 = vsel %vm2230, %v2717, 0
        %v3056 = vsel %vm2230, %v2720, 0
        %v3059 = vsel %vm2230, %v2723, 0
        %v3062 = vsel %vm2230, %v2726, 0
        %v3065 = vsel %vm2230, %v2729, 0
        %v3068 = vsel %vm2230, %v2732, 0
        %v3071 = vsel %vm2230, %v2735, 0
        %v3074 = vsel %vm2230, %v2738, 0
        %v3077 = vsel %vm2230, %v2741, 0
        %v3080 = vsel %vm2230, %v2744, 0
        %v3083 = vsel %vm2230, %v2747, 0
        %v3086 = vsel %vm2230, %v2750, 0
        %v3089 = vsel %vm2230, %v2753, 0
        %v3092 = vsel %vm2230, %v2756, 0
        %v3095 = vsel %vm2230, %v2759, 0
        %v3098 = vsel %vm2230, %v2762, 0
        %v3101 = vsel %vm2230, %v2765, 0
        %v3104 = vsel %vm2230, %v2768, 0
        %v3107 = vsel %vm2230, %v2771, 0
        %v3110 = vsel %vm2230, %v2774, 0
        %v3113 = vsel %vm2230, %v2777, 0
        %v3116 = vsel %vm2230, %v2780, 0
        %v3119 = vsel %vm2230, %v2783, 0
        %v3122 = vsel %vm2230, %v2786, 0
        %v3125 = vsel %vm2230, %v2789, 0
        %v3128 = vsel %vm2230, %v2792, 0
        %v3131 = vsel %vm2230, %v2795, 0
        %v3134 = vsel %vm2230, %v2798, 0
        %v3137 = vsel %vm2230, %v2801, 0
        %v3140 = vsel %vm2230, %v2804, 0
        %v3143 = vsel %vm2230, %v2807, 0
        %v3146 = vsel %vm2230, %v2810, 0
        %v3149 = vsel %vm2230, %v2813, 0
        %v3152 = vsel %vm2230, %v2816, 0
        %3154 = vmatprep.subr.mxu0 0.0
        %3155 = vmatpush1.msra.mxu0 %v2817
        %3156 = vmatprep.subr.mxu0 0.0
        %3157 = vmatpush1.msra.mxu0 %v2818
        %3158 = vmatprep.subr.mxu0 0.0
        %3159 = vmatpush1.msra.mxu0 %v2819
        %3160 = vmatprep.subr.mxu0 0.0
        %3161 = vmatpush1.msra.mxu0 %v2820
        %3162 = vmatprep.subr.mxu0 0.0
        %3163 = vmatpush1.msra.mxu0 %v2821
        %3164 = vmatprep.subr.mxu0 0.0
        %3165 = vmatpush1.msra.mxu0 %v2822
        %3166 = vmatprep.subr.mxu0 0.0
        %3167 = vmatpush1.msra.mxu0 %v2823
        %3168 = vmatprep.subr.mxu0 0.0
        %3169 = vmatpush1.msra.mxu0 %v2824
        %3170 = vmatprep.subr.mxu0 0.0
        %3171 = vmatpush1.msra.mxu0 %v2825
        %3172 = vmatprep.subr.mxu0 0.0
        %3173 = vmatpush1.msra.mxu0 %v2826
        %3174 = vmatprep.subr.mxu0 0.0
        %3175 = vmatpush1.msra.mxu0 %v2827
        %3176 = vmatprep.subr.mxu0 0.0
        %3177 = vmatpush1.msra.mxu0 %v2828
        %3178 = vmatprep.subr.mxu0 0.0
        %3179 = vmatpush1.msra.mxu0 %v2829
        %3180 = vmatprep.subr.mxu0 0.0
        %3181 = vmatpush1.msra.mxu0 %v2830
        %3182 = vmatprep.subr.mxu0 0.0
        %3183 = vmatpush1.msra.mxu0 %v2831
        %3184 = vmatprep.subr.mxu0 0.0
        %3185 = vmatpush1.msra.mxu0 %v2832
        %3186 = vmatprep.subr.mxu0 0.0
        %3187 = vmatpush1.msra.mxu0 %v2833
        %3188 = vmatprep.subr.mxu0 0.0
        %3189 = vmatpush1.msra.mxu0 %v2834
        %3190 = vmatprep.subr.mxu0 0.0
        %3191 = vmatpush1.msra.mxu0 %v2835
        %3192 = vmatprep.subr.mxu0 0.0
        %3193 = vmatpush1.msra.mxu0 %v2836
        %3194 = vmatprep.subr.mxu0 0.0
        %3195 = vmatpush1.msra.mxu0 %v2837
        %3196 = vmatprep.subr.mxu0 0.0
        %3197 = vmatpush1.msra.mxu0 %v2838
        %3198 = vmatprep.subr.mxu0 0.0
        %3199 = vmatpush1.msra.mxu0 %v2839
        %3200 = vmatprep.subr.mxu0 0.0
        %3201 = vmatpush1.msra.mxu0 %v2840
        %3202 = vmatprep.subr.mxu0 0.0
        %3203 = vmatpush1.msra.mxu0 %v2841
        %3204 = vmatprep.subr.mxu0 0.0
        %3205 = vmatpush1.msra.mxu0 %v2842
        %3206 = vmatprep.subr.mxu0 0.0
        %3207 = vmatpush1.msra.mxu0 %v2843
        %3208 = vmatprep.subr.mxu0 0.0
        %3209 = vmatpush1.msra.mxu0 %v2844
        %3210 = vmatprep.subr.mxu0 0.0
        %3211 = vmatpush1.msra.mxu0 %v2845
        %3212 = vmatprep.subr.mxu0 0.0
        %3213 = vmatpush1.msra.mxu0 %v2846
        %3214 = vmatprep.subr.mxu0 0.0
        %3215 = vmatpush1.msra.mxu0 %v2847
        %3216 = vmatprep.subr.mxu0 0.0
        %3217 = vmatpush1.msra.mxu0 %v2848
        %3218 = vmatprep.mubr.f32.mxu0 %v2524
        %3219 = vmatmul.mubr.f32.gmra.mrb[0].mxu0 %v2523
        %v3220 = vpop.f32.mrb[0].mxu0
        %v3221 = vadd.f32 %v2858, %v3220
        %v3222 = vpop.f32.mrb[0].mxu0
        %3223 = vmatprep.mubr.f32.mxu0 %v2527
        %3224 = vmatmul.mubr.f32.gmra.mrb[0].mxu0 %v2526
        %v3225 = vpop.f32.mrb[0].mxu0
        %v3226 = vadd.f32 %v2858, %v3225
        %v3227 = vpop.f32.mrb[0].mxu0
        %3228 = vmatprep.mubr.f32.mxu0 %v2530
        %3229 = vmatmul.mubr.f32.gmra.mrb[0].mxu0 %v2529
        %v3230 = vpop.f32.mrb[0].mxu0
        %v3231 = vadd.f32 %v2858, %v3230
        %v3232 = vpop.f32.mrb[0].mxu0
        %3233 = vmatprep.mubr.f32.mxu0 %v2533
        %3234 = vmatmul.mubr.f32.gmra.mrb[0].mxu0 %v2532
        %v3235 = vpop.f32.mrb[0].mxu0
        %v3236 = vadd.f32 %v2858, %v3235
        %v3237 = vpop.f32.mrb[0].mxu0
        %3238 = vmatprep.mubr.f32.mxu0 %v2536
        %3239 = vmatmul.mubr.f32.gmra.mrb[0].mxu0 %v2535
        %v3240 = vpop.f32.mrb[0].mxu0
        %v3241 = vadd.f32 %v2858, %v3240
        %v3242 = vpop.f32.mrb[0].mxu0
        %3243 = vmatprep.mubr.f32.mxu0 %v2539
        %3244 = vmatmul.mubr.f32.gmra.mrb[0].mxu0 %v2538
        %v3245 = vpop.f32.mrb[0].mxu0
        %v3246 = vadd.f32 %v2858, %v3245
        %v3247 = vpop.f32.mrb[0].mxu0
        %3248 = vmatprep.mubr.f32.mxu0 %v2542
        %3249 = vmatmul.mubr.f32.gmra.mrb[0].mxu0 %v2541
        %v3250 = vpop.f32.mrb[0].mxu0
        %v3251 = vadd.f32 %v2858, %v3250
        %v3252 = vpop.f32.mrb[0].mxu0
        %3253 = vmatprep.mubr.f32.mxu0 %v2545
        %3254 = vmatmul.mubr.f32.gmra.mrb[0].mxu0 %v2544
        %v3255 = vpop.f32.mrb[0].mxu0
        %v3256 = vadd.f32 %v2858, %v3255
        %v3257 = vpop.f32.mrb[0].mxu0
        %3258 = vmatprep.mubr.f32.mxu0 %v2548
        %3259 = vmatmul.mubr.f32.gmra.mrb[0].mxu0 %v2547
        %v3260 = vpop.f32.mrb[0].mxu0
        %v3261 = vadd.f32 %v2858, %v3260
        %v3262 = vpop.f32.mrb[0].mxu0
        %3263 = vmatprep.mubr.f32.mxu0 %v2551
        %3264 = vmatmul.mubr.f32.gmra.mrb[0].mxu0 %v2550
        %v3265 = vpop.f32.mrb[0].mxu0
        %v3266 = vadd.f32 %v2858, %v3265
        %v3267 = vpop.f32.mrb[0].mxu0
        %3268 = vmatprep.mubr.f32.mxu0 %v2554
        %3269 = vmatmul.mubr.f32.gmra.mrb[0].mxu0 %v2553
        %v3270 = vpop.f32.mrb[0].mxu0
        %v3271 = vadd.f32 %v2858, %v3270
        %v3272 = vpop.f32.mrb[0].mxu0
        %3273 = vmatprep.mubr.f32.mxu0 %v2557
        %3274 = vmatmul.mubr.f32.gmra.mrb[0].mxu0 %v2556
        %v3275 = vpop.f32.mrb[0].mxu0
        %v3276 = vadd.f32 %v2858, %v3275
        %v3277 = vpop.f32.mrb[0].mxu0
        %3278 = vmatprep.mubr.f32.mxu0 %v2560
        %3279 = vmatmul.mubr.f32.gmra.mrb[0].mxu0 %v2559
        %v3280 = vpop.f32.mrb[0].mxu0
        %v3281 = vadd.f32 %v2858, %v3280
        %v3282 = vpop.f32.mrb[0].mxu0
        %3283 = vmatprep.mubr.f32.mxu0 %v2563
        %3284 = vmatmul.mubr.f32.gmra.mrb[0].mxu0 %v2562
        %v3285 = vpop.f32.mrb[0].mxu0
        %v3286 = vadd.f32 %v2858, %v3285
        %v3287 = vpop.f32.mrb[0].mxu0
        %3288 = vmatprep.mubr.f32.mxu0 %v2566
        %3289 = vmatmul.mubr.f32.gmra.mrb[0].mxu0 %v2565
        %v3290 = vpop.f32.mrb[0].mxu0
        %v3291 = vadd.f32 %v2858, %v3290
        %v3292 = vpop.f32.mrb[0].mxu0
        %3293 = vmatprep.mubr.f32.mxu0 %v2569
        %3294 = vmatmul.mubr.f32.gmra.mrb[0].mxu0 %v2568
        %v3295 = vpop.f32.mrb[0].mxu0
        %v3296 = vadd.f32 %v2858, %v3295
        %v3297 = vpop.f32.mrb[0].mxu0
        %3298 = vmatprep.mubr.f32.mxu0 %v2572
        %3299 = vmatmul.mubr.f32.gmra.mrb[0].mxu0 %v2571
        %v3300 = vpop.f32.mrb[0].mxu0
        %v3301 = vadd.f32 %v2858, %v3300
        %v3302 = vpop.f32.mrb[0].mxu0
        %3303 = vmatprep.mubr.f32.mxu0 %v2575
        %3304 = vmatmul.mubr.f32.gmra.mrb[0].mxu0 %v2574
        %v3305 = vpop.f32.mrb[0].mxu0
        %v3306 = vadd.f32 %v2858, %v3305
        %v3307 = vpop.f32.mrb[0].mxu0
        %3308 = vmatprep.mubr.f32.mxu0 %v2578
        %3309 = vmatmul.mubr.f32.gmra.mrb[0].mxu0 %v2577
        %v3310 = vpop.f32.mrb[0].mxu0
        %v3311 = vadd.f32 %v2858, %v3310
        %v3312 = vpop.f32.mrb[0].mxu0
        %3313 = vmatprep.mubr.f32.mxu0 %v2581
        %3314 = vmatmul.mubr.f32.gmra.mrb[0].mxu0 %v2580
        %v3315 = vpop.f32.mrb[0].mxu0
        %v3316 = vadd.f32 %v2858, %v3315
        %v3317 = vpop.f32.mrb[0].mxu0
        %3318 = vmatprep.mubr.f32.mxu0 %v2584
        %3319 = vmatmul.mubr.f32.gmra.mrb[0].mxu0 %v2583
        %v3320 = vpop.f32.mrb[0].mxu0
        %v3321 = vadd.f32 %v2858, %v3320
        %v3322 = vpop.f32.mrb[0].mxu0
        %3323 = vmatprep.mubr.f32.mxu0 %v2587
        %3324 = vmatmul.mubr.f32.gmra.mrb[0].mxu0 %v2586
        %v3325 = vpop.f32.mrb[0].mxu0
        %v3326 = vadd.f32 %v2858, %v3325
        %v3327 = vpop.f32.mrb[0].mxu0
        %3328 = vmatprep.mubr.f32.mxu0 %v2590
        %3329 = vmatmul.mubr.f32.gmra.mrb[0].mxu0 %v2589
        %v3330 = vpop.f32.mrb[0].mxu0
        %v3331 = vadd.f32 %v2858, %v3330
        %v3332 = vpop.f32.mrb[0].mxu0
        %3333 = vmatprep.mubr.f32.mxu0 %v2593
        %3334 = vmatmul.mubr.f32.gmra.mrb[0].mxu0 %v2592
        %v3335 = vpop.f32.mrb[0].mxu0
        %v3336 = vadd.f32 %v2858, %v3335
        %v3337 = vpop.f32.mrb[0].mxu0
        %3338 = vmatprep.mubr.f32.mxu0 %v2596
        %3339 = vmatmul.mubr.f32.gmra.mrb[0].mxu0 %v2595
        %v3340 = vpop.f32.mrb[0].mxu0
        %v3341 = vadd.f32 %v2858, %v3340
        %v3342 = vpop.f32.mrb[0].mxu0
        %3343 = vmatprep.mubr.f32.mxu0 %v2599
        %3344 = vmatmul.mubr.f32.gmra.mrb[0].mxu0 %v2598
        %v3345 = vpop.f32.mrb[0].mxu0
        %v3346 = vadd.f32 %v2858, %v3345
        %v3347 = vpop.f32.mrb[0].mxu0
        %3348 = vmatprep.mubr.f32.mxu0 %v2602
        %3349 = vmatmul.mubr.f32.gmra.mrb[0].mxu0 %v2601
        %v3350 = vpop.f32.mrb[0].mxu0
        %v3351 = vadd.f32 %v2858, %v3350
        %v3352 = vpop.f32.mrb[0].mxu0
        %3353 = vmatprep.mubr.f32.mxu0 %v2605
        %3354 = vmatmul.mubr.f32.gmra.mrb[0].mxu0 %v2604
        %v3355 = vpop.f32.mrb[0].mxu0
        %v3356 = vadd.f32 %v2858, %v3355
        %v3357 = vpop.f32.mrb[0].mxu0
        %3358 = vmatprep.mubr.f32.mxu0 %v2608
        %3359 = vmatmul.mubr.f32.gmra.mrb[0].mxu0 %v2607
        %v3360 = vpop.f32.mrb[0].mxu0
        %v3361 = vadd.f32 %v2858, %v3360
        %v3362 = vpop.f32.mrb[0].mxu0
        %3363 = vmatprep.mubr.f32.mxu0 %v2611
        %3364 = vmatmul.mubr.f32.gmra.mrb[0].mxu0 %v2610
        %v3365 = vpop.f32.mrb[0].mxu0
        %v3366 = vadd.f32 %v2858, %v3365
        %v3367 = vpop.f32.mrb[0].mxu0
        %3368 = vmatprep.mubr.f32.mxu0 %v2614
        %3369 = vmatmul.mubr.f32.gmra.mrb[0].mxu0 %v2613
        %v3370 = vpop.f32.mrb[0].mxu0
        %v3371 = vadd.f32 %v2858, %v3370
        %v3372 = vpop.f32.mrb[0].mxu0
        %3373 = vmatprep.mubr.f32.mxu0 %v2617
        %3374 = vmatmul.mubr.f32.gmra.mrb[0].mxu0 %v2616
        %v3375 = vpop.f32.mrb[0].mxu0
        %v3376 = vadd.f32 %v2858, %v3375
        %v3377 = vpop.f32.mrb[0].mxu0
        %3378 = vmatprep.mubr.f32.mxu0 %v2620
        %3379 = vmatmul.mubr.f32.gmra.mrb[0].mxu0 %v2619
        %v3380 = vpop.f32.mrb[0].mxu0
        %v3381 = vadd.f32 %v2858, %v3380
        %v3382 = vpop.f32.mrb[0].mxu0
        %3383 = vmatprep.mubr.f32.mxu0 %v2623
        %3384 = vmatmul.mubr.f32.gmra.mrb[0].mxu0 %v2622
        %v3385 = vpop.f32.mrb[0].mxu0
        %v3386 = vadd.f32 %v2858, %v3385
        %v3387 = vpop.f32.mrb[0].mxu0
        %3388 = vmatprep.mubr.f32.mxu0 %v2626
        %3389 = vmatmul.mubr.f32.gmra.mrb[0].mxu0 %v2625
        %v3390 = vpop.f32.mrb[0].mxu0
        %v3391 = vadd.f32 %v2858, %v3390
        %v3392 = vpop.f32.mrb[0].mxu0
        %3393 = vmatprep.mubr.f32.mxu0 %v2629
        %3394 = vmatmul.mubr.f32.gmra.mrb[0].mxu0 %v2628
        %v3395 = vpop.f32.mrb[0].mxu0
        %v3396 = vadd.f32 %v2858, %v3395
        %v3397 = vpop.f32.mrb[0].mxu0
        %3398 = vmatprep.mubr.f32.mxu0 %v2632
        %3399 = vmatmul.mubr.f32.gmra.mrb[0].mxu0 %v2631
        %v3400 = vpop.f32.mrb[0].mxu0
        %v3401 = vadd.f32 %v2858, %v3400
        %v3402 = vpop.f32.mrb[0].mxu0
        %3403 = vmatprep.mubr.f32.mxu0 %v2635
        %3404 = vmatmul.mubr.f32.gmra.mrb[0].mxu0 %v2634
        %v3405 = vpop.f32.mrb[0].mxu0
        %v3406 = vadd.f32 %v2858, %v3405
        %v3407 = vpop.f32.mrb[0].mxu0
        %3408 = vmatprep.mubr.f32.mxu0 %v2638
        %3409 = vmatmul.mubr.f32.gmra.mrb[0].mxu0 %v2637
        %v3410 = vpop.f32.mrb[0].mxu0
        %v3411 = vadd.f32 %v2858, %v3410
        %v3412 = vpop.f32.mrb[0].mxu0
        %3413 = vmatprep.mubr.f32.mxu0 %v2641
        %3414 = vmatmul.mubr.f32.gmra.mrb[0].mxu0 %v2640
        %v3415 = vpop.f32.mrb[0].mxu0
        %v3416 = vadd.f32 %v2858, %v3415
        %v3417 = vpop.f32.mrb[0].mxu0
        %3418 = vmatprep.mubr.f32.mxu0 %v2644
        %3419 = vmatmul.mubr.f32.gmra.mrb[0].mxu0 %v2643
        %v3420 = vpop.f32.mrb[0].mxu0
        %v3421 = vadd.f32 %v2858, %v3420
        %v3422 = vpop.f32.mrb[0].mxu0
        %3423 = vmatprep.mubr.f32.mxu0 %v2647
        %3424 = vmatmul.mubr.f32.gmra.mrb[0].mxu0 %v2646
        %v3425 = vpop.f32.mrb[0].mxu0
        %v3426 = vadd.f32 %v2858, %v3425
        %v3427 = vpop.f32.mrb[0].mxu0
        %3428 = vmatprep.mubr.f32.mxu0 %v2650
        %3429 = vmatmul.mubr.f32.gmra.mrb[0].mxu0 %v2649
        %v3430 = vpop.f32.mrb[0].mxu0
        %v3431 = vadd.f32 %v2858, %v3430
        %v3432 = vpop.f32.mrb[0].mxu0
        %3433 = vmatprep.mubr.f32.mxu0 %v2653
        %3434 = vmatmul.mubr.f32.gmra.mrb[0].mxu0 %v2652
        %v3435 = vpop.f32.mrb[0].mxu0
        %v3436 = vadd.f32 %v2858, %v3435
        %v3437 = vpop.f32.mrb[0].mxu0
        %3438 = vmatprep.mubr.f32.mxu0 %v2656
        %3439 = vmatmul.mubr.f32.gmra.mrb[0].mxu0 %v2655
        %v3440 = vpop.f32.mrb[0].mxu0
        %v3441 = vadd.f32 %v2858, %v3440
        %v3442 = vpop.f32.mrb[0].mxu0
        %3443 = vmatprep.mubr.f32.mxu0 %v2659
        %3444 = vmatmul.mubr.f32.gmra.mrb[0].mxu0 %v2658
        %v3445 = vpop.f32.mrb[0].mxu0
        %v3446 = vadd.f32 %v2858, %v3445
        %v3447 = vpop.f32.mrb[0].mxu0
        %3448 = vmatprep.mubr.f32.mxu0 %v2662
        %3449 = vmatmul.mubr.f32.gmra.mrb[0].mxu0 %v2661
        %v3450 = vpop.f32.mrb[0].mxu0
        %v3451 = vadd.f32 %v2858, %v3450
        %v3452 = vpop.f32.mrb[0].mxu0
        %3453 = vmatprep.mubr.f32.mxu0 %v2665
        %3454 = vmatmul.mubr.f32.gmra.mrb[0].mxu0 %v2664
        %v3455 = vpop.f32.mrb[0].mxu0
        %v3456 = vadd.f32 %v2858, %v3455
        %v3457 = vpop.f32.mrb[0].mxu0
        %3458 = vmatprep.mubr.f32.mxu0 %v2668
        %3459 = vmatmul.mubr.f32.gmra.mrb[0].mxu0 %v2667
        %v3460 = vpop.f32.mrb[0].mxu0
        %v3461 = vadd.f32 %v2858, %v3460
        %v3462 = vpop.f32.mrb[0].mxu0
        %3463 = vmatprep.mubr.f32.mxu0 %v2671
        %3464 = vmatmul.mubr.f32.gmra.mrb[0].mxu0 %v2670
        %v3465 = vpop.f32.mrb[0].mxu0
        %v3466 = vadd.f32 %v2858, %v3465
        %v3467 = vpop.f32.mrb[0].mxu0
        %3468 = vmatprep.mubr.f32.mxu0 %v2674
        %3469 = vmatmul.mubr.f32.gmra.mrb[0].mxu0 %v2673
        %v3470 = vpop.f32.mrb[0].mxu0
        %v3471 = vadd.f32 %v2858, %v3470
        %v3472 = vpop.f32.mrb[0].mxu0
        %3473 = vmatprep.mubr.f32.mxu0 %v2677
        %3474 = vmatmul.mubr.f32.gmra.mrb[0].mxu0 %v2676
        %v3475 = vpop.f32.mrb[0].mxu0
        %v3476 = vadd.f32 %v2858, %v3475
        %v3477 = vpop.f32.mrb[0].mxu0
        %3478 = vmatprep.mubr.f32.mxu0 %v2680
        %3479 = vmatmul.mubr.f32.gmra.mrb[0].mxu0 %v2679
        %v3480 = vpop.f32.mrb[0].mxu0
        %v3481 = vadd.f32 %v2858, %v3480
        %v3482 = vpop.f32.mrb[0].mxu0
        %3483 = vmatprep.mubr.f32.mxu0 %v2683
        %3484 = vmatmul.mubr.f32.gmra.mrb[0].mxu0 %v2682
        %v3485 = vpop.f32.mrb[0].mxu0
        %v3486 = vadd.f32 %v2858, %v3485
        %v3487 = vpop.f32.mrb[0].mxu0
        %3488 = vmatprep.mubr.f32.mxu0 %v2686
        %3489 = vmatmul.mubr.f32.gmra.mrb[0].mxu0 %v2685
        %v3490 = vpop.f32.mrb[0].mxu0
        %v3491 = vadd.f32 %v2858, %v3490
        %v3492 = vpop.f32.mrb[0].mxu0
        %3493 = vmatprep.mubr.f32.mxu0 %v2689
        %3494 = vmatmul.mubr.f32.gmra.mrb[0].mxu0 %v2688
        %v3495 = vpop.f32.mrb[0].mxu0
        %v3496 = vadd.f32 %v2858, %v3495
        %v3497 = vpop.f32.mrb[0].mxu0
        %3498 = vmatprep.mubr.f32.mxu0 %v2692
        %3499 = vmatmul.mubr.f32.gmra.mrb[0].mxu0 %v2691
        %v3500 = vpop.f32.mrb[0].mxu0
        %v3501 = vadd.f32 %v2858, %v3500
        %v3502 = vpop.f32.mrb[0].mxu0
        %3503 = vmatprep.mubr.f32.mxu0 %v2695
        %3504 = vmatmul.mubr.f32.gmra.mrb[0].mxu0 %v2694
        %v3505 = vpop.f32.mrb[0].mxu0
        %v3506 = vadd.f32 %v2858, %v3505
        %v3507 = vpop.f32.mrb[0].mxu0
        %3508 = vmatprep.mubr.f32.mxu0 %v2698
        %3509 = vmatmul.mubr.f32.gmra.mrb[0].mxu0 %v2697
        %v3510 = vpop.f32.mrb[0].mxu0
        %v3511 = vadd.f32 %v2858, %v3510
        %v3512 = vpop.f32.mrb[0].mxu0
        %3513 = vmatprep.mubr.f32.mxu0 %v2701
        %3514 = vmatmul.mubr.f32.gmra.mrb[0].mxu0 %v2700
        %v3515 = vpop.f32.mrb[0].mxu0
        %v3516 = vadd.f32 %v2858, %v3515
        %v3517 = vpop.f32.mrb[0].mxu0
        %3518 = vmatprep.mubr.f32.mxu0 %v2704
        %3519 = vmatmul.mubr.f32.gmra.mrb[0].mxu0 %v2703
        %v3520 = vpop.f32.mrb[0].mxu0
        %v3521 = vadd.f32 %v2858, %v3520
        %v3522 = vpop.f32.mrb[0].mxu0
        %3523 = vmatprep.mubr.f32.mxu0 %v2707
        %3524 = vmatmul.mubr.f32.gmra.mrb[0].mxu0 %v2706
        %v3525 = vpop.f32.mrb[0].mxu0
        %v3526 = vadd.f32 %v2858, %v3525
        %v3527 = vpop.f32.mrb[0].mxu0
        %3528 = vmatprep.mubr.f32.mxu0 %v2710
        %3529 = vmatmul.mubr.f32.gmra.mrb[0].mxu0 %v2709
        %v3530 = vpop.f32.mrb[0].mxu0
        %v3531 = vadd.f32 %v2858, %v3530
        %v3532 = vpop.f32.mrb[0].mxu0
        %3533 = vmatprep.mubr.f32.mxu0 %v2713
        %3534 = vmatmul.mubr.f32.gmra.mrb[0].mxu0 %v2712
        %v3535 = vpop.f32.mrb[0].mxu0
        %v3536 = vadd.f32 %v2858, %v3535
        %v3537 = vpop.f32.mrb[0].mxu0
        %3538 = vmatprep.mubr.f32.mxu0 %v2716
        %3539 = vmatmul.mubr.f32.gmra.mrb[0].mxu0 %v2715
        %v3540 = vpop.f32.mrb[0].mxu0
        %v3541 = vadd.f32 %v2858, %v3540
        %v3542 = vpop.f32.mrb[0].mxu0
        %3543 = vmatprep.mubr.f32.mxu0 %v2719
        %3544 = vmatmul.mubr.f32.gmra.mrb[0].mxu0 %v2718
        %v3545 = vpop.f32.mrb[0].mxu0
        %v3546 = vadd.f32 %v2858, %v3545
        %v3547 = vpop.f32.mrb[0].mxu0
        %3548 = vmatprep.mubr.f32.mxu0 %v2722
        %3549 = vmatmul.mubr.f32.gmra.mrb[0].mxu0 %v2721
        %v3550 = vpop.f32.mrb[0].mxu0
        %v3551 = vadd.f32 %v2858, %v3550
        %v3552 = vpop.f32.mrb[0].mxu0
        %3553 = vmatprep.mubr.f32.mxu0 %v2725
        %3554 = vmatmul.mubr.f32.gmra.mrb[0].mxu0 %v2724
        %v3555 = vpop.f32.mrb[0].mxu0
        %v3556 = vadd.f32 %v2858, %v3555
        %v3557 = vpop.f32.mrb[0].mxu0
        %3558 = vmatprep.mubr.f32.mxu0 %v2728
        %3559 = vmatmul.mubr.f32.gmra.mrb[0].mxu0 %v2727
        %v3560 = vpop.f32.mrb[0].mxu0
        %v3561 = vadd.f32 %v2858, %v3560
        %v3562 = vpop.f32.mrb[0].mxu0
        %3563 = vmatprep.mubr.f32.mxu0 %v2731
        %3564 = vmatmul.mubr.f32.gmra.mrb[0].mxu0 %v2730
        %v3565 = vpop.f32.mrb[0].mxu0
        %v3566 = vadd.f32 %v2858, %v3565
        %v3567 = vpop.f32.mrb[0].mxu0
        %3568 = vmatprep.mubr.f32.mxu0 %v2734
        %3569 = vmatmul.mubr.f32.gmra.mrb[0].mxu0 %v2733
        %v3570 = vpop.f32.mrb[0].mxu0
        %v3571 = vadd.f32 %v2858, %v3570
        %v3572 = vpop.f32.mrb[0].mxu0
        %3573 = vmatprep.mubr.f32.mxu0 %v2737
        %3574 = vmatmul.mubr.f32.gmra.mrb[0].mxu0 %v2736
        %v3575 = vpop.f32.mrb[0].mxu0
        %v3576 = vadd.f32 %v2858, %v3575
        %v3577 = vpop.f32.mrb[0].mxu0
        %3578 = vmatprep.mubr.f32.mxu0 %v2740
        %3579 = vmatmul.mubr.f32.gmra.mrb[0].mxu0 %v2739
        %v3580 = vpop.f32.mrb[0].mxu0
        %v3581 = vadd.f32 %v2858, %v3580
        %v3582 = vpop.f32.mrb[0].mxu0
        %3583 = vmatprep.mubr.f32.mxu0 %v2743
        %3584 = vmatmul.mubr.f32.gmra.mrb[0].mxu0 %v2742
        %v3585 = vpop.f32.mrb[0].mxu0
        %v3586 = vadd.f32 %v2858, %v3585
        %v3587 = vpop.f32.mrb[0].mxu0
        %3588 = vmatprep.mubr.f32.mxu0 %v2746
        %3589 = vmatmul.mubr.f32.gmra.mrb[0].mxu0 %v2745
        %v3590 = vpop.f32.mrb[0].mxu0
        %v3591 = vadd.f32 %v2858, %v3590
        %v3592 = vpop.f32.mrb[0].mxu0
        %3593 = vmatprep.mubr.f32.mxu0 %v2749
        %3594 = vmatmul.mubr.f32.gmra.mrb[0].mxu0 %v2748
        %v3595 = vpop.f32.mrb[0].mxu0
        %v3596 = vadd.f32 %v2858, %v3595
        %v3597 = vpop.f32.mrb[0].mxu0
        %3598 = vmatprep.mubr.f32.mxu0 %v2752
        %3599 = vmatmul.mubr.f32.gmra.mrb[0].mxu0 %v2751
        %v3600 = vpop.f32.mrb[0].mxu0
        %v3601 = vadd.f32 %v2858, %v3600
        %v3602 = vpop.f32.mrb[0].mxu0
        %3603 = vmatprep.mubr.f32.mxu0 %v2755
        %3604 = vmatmul.mubr.f32.gmra.mrb[0].mxu0 %v2754
        %v3605 = vpop.f32.mrb[0].mxu0
        %v3606 = vadd.f32 %v2858, %v3605
        %v3607 = vpop.f32.mrb[0].mxu0
        %3608 = vmatprep.mubr.f32.mxu0 %v2758
        %3609 = vmatmul.mubr.f32.gmra.mrb[0].mxu0 %v2757
        %v3610 = vpop.f32.mrb[0].mxu0
        %v3611 = vadd.f32 %v2858, %v3610
        %v3612 = vpop.f32.mrb[0].mxu0
        %3613 = vmatprep.mubr.f32.mxu0 %v2761
        %3614 = vmatmul.mubr.f32.gmra.mrb[0].mxu0 %v2760
        %v3615 = vpop.f32.mrb[0].mxu0
        %v3616 = vadd.f32 %v2858, %v3615
        %v3617 = vpop.f32.mrb[0].mxu0
        %3618 = vmatprep.mubr.f32.mxu0 %v2764
        %3619 = vmatmul.mubr.f32.gmra.mrb[0].mxu0 %v2763
        %v3620 = vpop.f32.mrb[0].mxu0
        %v3621 = vadd.f32 %v2858, %v3620
        %v3622 = vpop.f32.mrb[0].mxu0
        %3623 = vmatprep.mubr.f32.mxu0 %v2767
        %3624 = vmatmul.mubr.f32.gmra.mrb[0].mxu0 %v2766
        %v3625 = vpop.f32.mrb[0].mxu0
        %v3626 = vadd.f32 %v2858, %v3625
        %v3627 = vpop.f32.mrb[0].mxu0
        %3628 = vmatprep.mubr.f32.mxu0 %v2770
        %3629 = vmatmul.mubr.f32.gmra.mrb[0].mxu0 %v2769
        %v3630 = vpop.f32.mrb[0].mxu0
        %v3631 = vadd.f32 %v2858, %v3630
        %v3632 = vpop.f32.mrb[0].mxu0
        %3633 = vmatprep.mubr.f32.mxu0 %v2773
        %3634 = vmatmul.mubr.f32.gmra.mrb[0].mxu0 %v2772
        %v3635 = vpop.f32.mrb[0].mxu0
        %v3636 = vadd.f32 %v2858, %v3635
        %v3637 = vpop.f32.mrb[0].mxu0
        %3638 = vmatprep.mubr.f32.mxu0 %v2776
        %3639 = vmatmul.mubr.f32.gmra.mrb[0].mxu0 %v2775
        %v3640 = vpop.f32.mrb[0].mxu0
        %v3641 = vadd.f32 %v2858, %v3640
        %v3642 = vpop.f32.mrb[0].mxu0
        %3643 = vmatprep.mubr.f32.mxu0 %v2779
        %3644 = vmatmul.mubr.f32.gmra.mrb[0].mxu0 %v2778
        %v3645 = vpop.f32.mrb[0].mxu0
        %v3646 = vadd.f32 %v2858, %v3645
        %v3647 = vpop.f32.mrb[0].mxu0
        %3648 = vmatprep.mubr.f32.mxu0 %v2782
        %3649 = vmatmul.mubr.f32.gmra.mrb[0].mxu0 %v2781
        %v3650 = vpop.f32.mrb[0].mxu0
        %v3651 = vadd.f32 %v2858, %v3650
        %v3652 = vpop.f32.mrb[0].mxu0
        %3653 = vmatprep.mubr.f32.mxu0 %v2785
        %3654 = vmatmul.mubr.f32.gmra.mrb[0].mxu0 %v2784
        %v3655 = vpop.f32.mrb[0].mxu0
        %v3656 = vadd.f32 %v2858, %v3655
        %v3657 = vpop.f32.mrb[0].mxu0
        %3658 = vmatprep.mubr.f32.mxu0 %v2788
        %3659 = vmatmul.mubr.f32.gmra.mrb[0].mxu0 %v2787
        %v3660 = vpop.f32.mrb[0].mxu0
        %v3661 = vadd.f32 %v2858, %v3660
        %v3662 = vpop.f32.mrb[0].mxu0
        %3663 = vmatprep.mubr.f32.mxu0 %v2791
        %3664 = vmatmul.mubr.f32.gmra.mrb[0].mxu0 %v2790
        %v3665 = vpop.f32.mrb[0].mxu0
        %v3666 = vadd.f32 %v2858, %v3665
        %v3667 = vpop.f32.mrb[0].mxu0
        %3668 = vmatprep.mubr.f32.mxu0 %v2794
        %3669 = vmatmul.mubr.f32.gmra.mrb[0].mxu0 %v2793
        %v3670 = vpop.f32.mrb[0].mxu0
        %v3671 = vadd.f32 %v2858, %v3670
        %v3672 = vpop.f32.mrb[0].mxu0
        %3673 = vmatprep.mubr.f32.mxu0 %v2797
        %3674 = vmatmul.mubr.f32.gmra.mrb[0].mxu0 %v2796
        %v3675 = vpop.f32.mrb[0].mxu0
        %v3676 = vadd.f32 %v2858, %v3675
        %v3677 = vpop.f32.mrb[0].mxu0
        %3678 = vmatprep.mubr.f32.mxu0 %v2800
        %3679 = vmatmul.mubr.f32.gmra.mrb[0].mxu0 %v2799
        %v3680 = vpop.f32.mrb[0].mxu0
        %v3681 = vadd.f32 %v2858, %v3680
        %v3682 = vpop.f32.mrb[0].mxu0
        %3683 = vmatprep.mubr.f32.mxu0 %v2803
        %3684 = vmatmul.mubr.f32.gmra.mrb[0].mxu0 %v2802
        %v3685 = vpop.f32.mrb[0].mxu0
        %v3686 = vadd.f32 %v2858, %v3685
        %v3687 = vpop.f32.mrb[0].mxu0
        %3688 = vmatprep.mubr.f32.mxu0 %v2806
        %3689 = vmatmul.mubr.f32.gmra.mrb[0].mxu0 %v2805
        %v3690 = vpop.f32.mrb[0].mxu0
        %v3691 = vadd.f32 %v2858, %v3690
        %v3692 = vpop.f32.mrb[0].mxu0
        %3693 = vmatprep.mubr.f32.mxu0 %v2809
        %3694 = vmatmul.mubr.f32.gmra.mrb[0].mxu0 %v2808
        %v3695 = vpop.f32.mrb[0].mxu0
        %v3696 = vadd.f32 %v2858, %v3695
        %v3697 = vpop.f32.mrb[0].mxu0
        %3698 = vmatprep.mubr.f32.mxu0 %v2812
        %3699 = vmatmul.mubr.f32.gmra.mrb[0].mxu0 %v2811
        %v3700 = vpop.f32.mrb[0].mxu0
        %v3701 = vadd.f32 %v2858, %v3700
        %v3702 = vpop.f32.mrb[0].mxu0
        %3703 = vmatprep.mubr.f32.mxu0 %v2815
        %3704 = vmatmul.mubr.f32.gmra.mrb[0].mxu0 %v2814
        %v3705 = vpop.f32.mrb[0].mxu0
        %v3706 = vadd.f32 %v2858, %v3705
        %v3707 = vpop.f32.mrb[0].mxu0
        %3708 = vdwg.mxu0
        %3709 = vmatprep.subr.mxu0 0.0
        %3710 = vmatpush1.msra.mxu0 %v2849
        %3711 = vmatprep.subr.mxu0 0.0
        %3712 = vmatpush1.msra.mxu0 %v2850
        %3713 = vmatprep.subr.mxu0 0.0
        %3714 = vmatpush1.msra.mxu0 %v2851
        %3715 = vmatprep.subr.mxu0 0.0
        %3716 = vmatpush1.msra.mxu0 %v2852
        %3717 = vmatprep.subr.mxu0 0.0
        %3718 = vmatpush1.msra.mxu0 0.0
        %3719 = vmatprep.subr.mxu0 0.0
        %3720 = vmatpush1.msra.mxu0 0.0
        %3721 = vmatprep.subr.mxu0 0.0
        %3722 = vmatpush1.msra.mxu0 0.0
        %3723 = vmatprep.subr.mxu0 0.0
        %3724 = vmatpush1.msra.mxu0 0.0
        %3725 = vmatprep.subr.mxu0 0.0
        %3726 = vmatpush1.msra.mxu0 0.0
        %3727 = vmatprep.subr.mxu0 0.0
        %3728 = vmatpush1.msra.mxu0 0.0
        %3729 = vmatprep.subr.mxu0 0.0
        %3730 = vmatpush1.msra.mxu0 0.0
        %3731 = vmatprep.subr.mxu0 0.0
        %3732 = vmatpush1.msra.mxu0 0.0
        %3733 = vmatprep.subr.mxu0 0.0
        %3734 = vmatpush1.msra.mxu0 0.0
        %3735 = vmatprep.subr.mxu0 0.0
        %3736 = vmatpush1.msra.mxu0 0.0
        %3737 = vmatprep.subr.mxu0 0.0
        %3738 = vmatpush1.msra.mxu0 0.0
        %3739 = vmatprep.subr.mxu0 0.0
        %3740 = vmatpush1.msra.mxu0 0.0
        %3741 = vmatprep.subr.mxu0 0.0
        %3742 = vmatpush1.msra.mxu0 0.0
        %3743 = vmatprep.subr.mxu0 0.0
        %3744 = vmatpush1.msra.mxu0 0.0
        %3745 = vmatprep.subr.mxu0 0.0
        %3746 = vmatpush1.msra.mxu0 0.0
        %3747 = vmatprep.subr.mxu0 0.0
        %3748 = vmatpush1.msra.mxu0 0.0
        %3749 = vmatprep.subr.mxu0 0.0
        %3750 = vmatpush1.msra.mxu0 0.0
        %3751 = vmatprep.subr.mxu0 0.0
        %3752 = vmatpush1.msra.mxu0 0.0
        %3753 = vmatprep.subr.mxu0 0.0
        %3754 = vmatpush1.msra.mxu0 0.0
        %3755 = vmatprep.subr.mxu0 0.0
        %3756 = vmatpush1.msra.mxu0 0.0
        %3757 = vmatprep.subr.mxu0 0.0
        %3758 = vmatpush1.msra.mxu0 0.0
        %3759 = vmatprep.subr.mxu0 0.0
        %3760 = vmatpush1.msra.mxu0 0.0
        %3761 = vmatprep.subr.mxu0 0.0
        %3762 = vmatpush1.msra.mxu0 0.0
        %3763 = vmatprep.subr.mxu0 0.0
        %3764 = vmatpush1.msra.mxu0 0.0
        %3765 = vmatprep.subr.mxu0 0.0
        %3766 = vmatpush1.msra.mxu0 0.0
        %3767 = vmatprep.subr.mxu0 0.0
        %3768 = vmatpush1.msra.mxu0 0.0
        %3769 = vmatprep.subr.mxu0 0.0
        %3770 = vmatpush1.msra.mxu0 0.0
        %3771 = vmatprep.subr.mxu0 0.0
        %3772 = vmatpush1.msra.mxu0 0.0
        %3773 = vmatprep.mubr.f32.mxu0 0.0
        %3774 = vmatmul.mubr.f32.gmra.mrb[0].mxu0 %v2861
        %v3775 = vpop.f32.mrb[0].mxu0
        %v3776 = vadd.f32 %v3221, %v3775
        %v3777 = vpop.f32.mrb[0].mxu0
        %3778 = vmatprep.mubr.f32.mxu0 0.0
        %3779 = vmatmul.mubr.f32.gmra.mrb[0].mxu0 %v2864
        %v3780 = vpop.f32.mrb[0].mxu0
        %v3781 = vadd.f32 %v3226, %v3780
        %v3782 = vpop.f32.mrb[0].mxu0
        %3783 = vmatprep.mubr.f32.mxu0 0.0
        %3784 = vmatmul.mubr.f32.gmra.mrb[0].mxu0 %v2867
        %v3785 = vpop.f32.mrb[0].mxu0
        %v3786 = vadd.f32 %v3231, %v3785
        %v3787 = vpop.f32.mrb[0].mxu0
        %3788 = vmatprep.mubr.f32.mxu0 0.0
        %3789 = vmatmul.mubr.f32.gmra.mrb[0].mxu0 %v2870
        %v3790 = vpop.f32.mrb[0].mxu0
        %v3791 = vadd.f32 %v3236, %v3790
        %v3792 = vpop.f32.mrb[0].mxu0
        %3793 = vmatprep.mubr.f32.mxu0 0.0
        %3794 = vmatmul.mubr.f32.gmra.mrb[0].mxu0 %v2873
        %v3795 = vpop.f32.mrb[0].mxu0
        %v3796 = vadd.f32 %v3241, %v3795
        %v3797 = vpop.f32.mrb[0].mxu0
        %3798 = vmatprep.mubr.f32.mxu0 0.0
        %3799 = vmatmul.mubr.f32.gmra.mrb[0].mxu0 %v2876
        %v3800 = vpop.f32.mrb[0].mxu0
        %v3801 = vadd.f32 %v3246, %v3800
        %v3802 = vpop.f32.mrb[0].mxu0
        %3803 = vmatprep.mubr.f32.mxu0 0.0
        %3804 = vmatmul.mubr.f32.gmra.mrb[0].mxu0 %v2879
        %v3805 = vpop.f32.mrb[0].mxu0
        %v3806 = vadd.f32 %v3251, %v3805
        %v3807 = vpop.f32.mrb[0].mxu0
        %3808 = vmatprep.mubr.f32.mxu0 0.0
        %3809 = vmatmul.mubr.f32.gmra.mrb[0].mxu0 %v2882
        %v3810 = vpop.f32.mrb[0].mxu0
        %v3811 = vadd.f32 %v3256, %v3810
        %v3812 = vpop.f32.mrb[0].mxu0
        %3813 = vmatprep.mubr.f32.mxu0 0.0
        %3814 = vmatmul.mubr.f32.gmra.mrb[0].mxu0 %v2885
        %v3815 = vpop.f32.mrb[0].mxu0
        %v3816 = vadd.f32 %v3261, %v3815
        %v3817 = vpop.f32.mrb[0].mxu0
        %3818 = vmatprep.mubr.f32.mxu0 0.0
        %3819 = vmatmul.mubr.f32.gmra.mrb[0].mxu0 %v2888
        %v3820 = vpop.f32.mrb[0].mxu0
        %v3821 = vadd.f32 %v3266, %v3820
        %v3822 = vpop.f32.mrb[0].mxu0
        %3823 = vmatprep.mubr.f32.mxu0 0.0
        %3824 = vmatmul.mubr.f32.gmra.mrb[0].mxu0 %v2891
        %v3825 = vpop.f32.mrb[0].mxu0
        %v3826 = vadd.f32 %v3271, %v3825
        %v3827 = vpop.f32.mrb[0].mxu0
        %3828 = vmatprep.mubr.f32.mxu0 0.0
        %3829 = vmatmul.mubr.f32.gmra.mrb[0].mxu0 %v2894
        %v3830 = vpop.f32.mrb[0].mxu0
        %v3831 = vadd.f32 %v3276, %v3830
        %v3832 = vpop.f32.mrb[0].mxu0
        %3833 = vmatprep.mubr.f32.mxu0 0.0
        %3834 = vmatmul.mubr.f32.gmra.mrb[0].mxu0 %v2897
        %v3835 = vpop.f32.mrb[0].mxu0
        %v3836 = vadd.f32 %v3281, %v3835
        %v3837 = vpop.f32.mrb[0].mxu0
        %3838 = vmatprep.mubr.f32.mxu0 0.0
        %3839 = vmatmul.mubr.f32.gmra.mrb[0].mxu0 %v2900
        %v3840 = vpop.f32.mrb[0].mxu0
        %v3841 = vadd.f32 %v3286, %v3840
        %v3842 = vpop.f32.mrb[0].mxu0
        %3843 = vmatprep.mubr.f32.mxu0 0.0
        %3844 = vmatmul.mubr.f32.gmra.mrb[0].mxu0 %v2903
        %v3845 = vpop.f32.mrb[0].mxu0
        %v3846 = vadd.f32 %v3291, %v3845
        %v3847 = vpop.f32.mrb[0].mxu0
        %3848 = vmatprep.mubr.f32.mxu0 0.0
        %3849 = vmatmul.mubr.f32.gmra.mrb[0].mxu0 %v2906
        %v3850 = vpop.f32.mrb[0].mxu0
        %v3851 = vadd.f32 %v3296, %v3850
        %v3852 = vpop.f32.mrb[0].mxu0
        %3853 = vmatprep.mubr.f32.mxu0 0.0
        %3854 = vmatmul.mubr.f32.gmra.mrb[0].mxu0 %v2909
        %v3855 = vpop.f32.mrb[0].mxu0
        %v3856 = vadd.f32 %v3301, %v3855
        %v3857 = vpop.f32.mrb[0].mxu0
        %3858 = vmatprep.mubr.f32.mxu0 0.0
        %3859 = vmatmul.mubr.f32.gmra.mrb[0].mxu0 %v2912
        %v3860 = vpop.f32.mrb[0].mxu0
        %v3861 = vadd.f32 %v3306, %v3860
        %v3862 = vpop.f32.mrb[0].mxu0
        %3863 = vmatprep.mubr.f32.mxu0 0.0
        %3864 = vmatmul.mubr.f32.gmra.mrb[0].mxu0 %v2915
        %v3865 = vpop.f32.mrb[0].mxu0
        %v3866 = vadd.f32 %v3311, %v3865
        %v3867 = vpop.f32.mrb[0].mxu0
        %3868 = vmatprep.mubr.f32.mxu0 0.0
        %3869 = vmatmul.mubr.f32.gmra.mrb[0].mxu0 %v2918
        %v3870 = vpop.f32.mrb[0].mxu0
        %v3871 = vadd.f32 %v3316, %v3870
        %v3872 = vpop.f32.mrb[0].mxu0
        %3873 = vmatprep.mubr.f32.mxu0 0.0
        %3874 = vmatmul.mubr.f32.gmra.mrb[0].mxu0 %v2921
        %v3875 = vpop.f32.mrb[0].mxu0
        %v3876 = vadd.f32 %v3321, %v3875
        %v3877 = vpop.f32.mrb[0].mxu0
        %3878 = vmatprep.mubr.f32.mxu0 0.0
        %3879 = vmatmul.mubr.f32.gmra.mrb[0].mxu0 %v2924
        %v3880 = vpop.f32.mrb[0].mxu0
        %v3881 = vadd.f32 %v3326, %v3880
        %v3882 = vpop.f32.mrb[0].mxu0
        %3883 = vmatprep.mubr.f32.mxu0 0.0
        %3884 = vmatmul.mubr.f32.gmra.mrb[0].mxu0 %v2927
        %v3885 = vpop.f32.mrb[0].mxu0
        %v3886 = vadd.f32 %v3331, %v3885
        %v3887 = vpop.f32.mrb[0].mxu0
        %3888 = vmatprep.mubr.f32.mxu0 0.0
        %3889 = vmatmul.mubr.f32.gmra.mrb[0].mxu0 %v2930
        %v3890 = vpop.f32.mrb[0].mxu0
        %v3891 = vadd.f32 %v3336, %v3890
        %v3892 = vpop.f32.mrb[0].mxu0
        %3893 = vmatprep.mubr.f32.mxu0 0.0
        %3894 = vmatmul.mubr.f32.gmra.mrb[0].mxu0 %v2933
        %v3895 = vpop.f32.mrb[0].mxu0
        %v3896 = vadd.f32 %v3341, %v3895
        %v3897 = vpop.f32.mrb[0].mxu0
        %3898 = vmatprep.mubr.f32.mxu0 0.0
        %3899 = vmatmul.mubr.f32.gmra.mrb[0].mxu0 %v2936
        %v3900 = vpop.f32.mrb[0].mxu0
        %v3901 = vadd.f32 %v3346, %v3900
        %v3902 = vpop.f32.mrb[0].mxu0
        %3903 = vmatprep.mubr.f32.mxu0 0.0
        %3904 = vmatmul.mubr.f32.gmra.mrb[0].mxu0 %v2939
        %v3905 = vpop.f32.mrb[0].mxu0
        %v3906 = vadd.f32 %v3351, %v3905
        %v3907 = vpop.f32.mrb[0].mxu0
        %3908 = vmatprep.mubr.f32.mxu0 0.0
        %3909 = vmatmul.mubr.f32.gmra.mrb[0].mxu0 %v2942
        %v3910 = vpop.f32.mrb[0].mxu0
        %v3911 = vadd.f32 %v3356, %v3910
        %v3912 = vpop.f32.mrb[0].mxu0
        %3913 = vmatprep.mubr.f32.mxu0 0.0
        %3914 = vmatmul.mubr.f32.gmra.mrb[0].mxu0 %v2945
        %v3915 = vpop.f32.mrb[0].mxu0
        %v3916 = vadd.f32 %v3361, %v3915
        %v3917 = vpop.f32.mrb[0].mxu0
        %3918 = vmatprep.mubr.f32.mxu0 0.0
        %3919 = vmatmul.mubr.f32.gmra.mrb[0].mxu0 %v2948
        %v3920 = vpop.f32.mrb[0].mxu0
        %v3921 = vadd.f32 %v3366, %v3920
        %v3922 = vpop.f32.mrb[0].mxu0
        %3923 = vmatprep.mubr.f32.mxu0 0.0
        %3924 = vmatmul.mubr.f32.gmra.mrb[0].mxu0 %v2951
        %v3925 = vpop.f32.mrb[0].mxu0
        %v3926 = vadd.f32 %v3371, %v3925
        %v3927 = vpop.f32.mrb[0].mxu0
        %3928 = vmatprep.mubr.f32.mxu0 0.0
        %3929 = vmatmul.mubr.f32.gmra.mrb[0].mxu0 %v2954
        %v3930 = vpop.f32.mrb[0].mxu0
        %v3931 = vadd.f32 %v3376, %v3930
        %v3932 = vpop.f32.mrb[0].mxu0
        %3933 = vmatprep.mubr.f32.mxu0 0.0
        %3934 = vmatmul.mubr.f32.gmra.mrb[0].mxu0 %v2957
        %v3935 = vpop.f32.mrb[0].mxu0
        %v3936 = vadd.f32 %v3381, %v3935
        %v3937 = vpop.f32.mrb[0].mxu0
        %3938 = vmatprep.mubr.f32.mxu0 0.0
        %3939 = vmatmul.mubr.f32.gmra.mrb[0].mxu0 %v2960
        %v3940 = vpop.f32.mrb[0].mxu0
        %v3941 = vadd.f32 %v3386, %v3940
        %v3942 = vpop.f32.mrb[0].mxu0
        %3943 = vmatprep.mubr.f32.mxu0 0.0
        %3944 = vmatmul.mubr.f32.gmra.mrb[0].mxu0 %v2963
        %v3945 = vpop.f32.mrb[0].mxu0
        %v3946 = vadd.f32 %v3391, %v3945
        %v3947 = vpop.f32.mrb[0].mxu0
        %3948 = vmatprep.mubr.f32.mxu0 0.0
        %3949 = vmatmul.mubr.f32.gmra.mrb[0].mxu0 %v2966
        %v3950 = vpop.f32.mrb[0].mxu0
        %v3951 = vadd.f32 %v3396, %v3950
        %v3952 = vpop.f32.mrb[0].mxu0
        %3953 = vmatprep.mubr.f32.mxu0 0.0
        %3954 = vmatmul.mubr.f32.gmra.mrb[0].mxu0 %v2969
        %v3955 = vpop.f32.mrb[0].mxu0
        %v3956 = vadd.f32 %v3401, %v3955
        %v3957 = vpop.f32.mrb[0].mxu0
        %3958 = vmatprep.mubr.f32.mxu0 0.0
        %3959 = vmatmul.mubr.f32.gmra.mrb[0].mxu0 %v2972
        %v3960 = vpop.f32.mrb[0].mxu0
        %v3961 = vadd.f32 %v3406, %v3960
        %v3962 = vpop.f32.mrb[0].mxu0
        %3963 = vmatprep.mubr.f32.mxu0 0.0
        %3964 = vmatmul.mubr.f32.gmra.mrb[0].mxu0 %v2975
        %v3965 = vpop.f32.mrb[0].mxu0
        %v3966 = vadd.f32 %v3411, %v3965
        %v3967 = vpop.f32.mrb[0].mxu0
        %3968 = vmatprep.mubr.f32.mxu0 0.0
        %3969 = vmatmul.mubr.f32.gmra.mrb[0].mxu0 %v2978
        %v3970 = vpop.f32.mrb[0].mxu0
        %v3971 = vadd.f32 %v3416, %v3970
        %v3972 = vpop.f32.mrb[0].mxu0
        %3973 = vmatprep.mubr.f32.mxu0 0.0
        %3974 = vmatmul.mubr.f32.gmra.mrb[0].mxu0 %v2981
        %v3975 = vpop.f32.mrb[0].mxu0
        %v3976 = vadd.f32 %v3421, %v3975
        %v3977 = vpop.f32.mrb[0].mxu0
        %3978 = vmatprep.mubr.f32.mxu0 0.0
        %3979 = vmatmul.mubr.f32.gmra.mrb[0].mxu0 %v2984
        %v3980 = vpop.f32.mrb[0].mxu0
        %v3981 = vadd.f32 %v3426, %v3980
        %v3982 = vpop.f32.mrb[0].mxu0
        %3983 = vmatprep.mubr.f32.mxu0 0.0
        %3984 = vmatmul.mubr.f32.gmra.mrb[0].mxu0 %v2987
        %v3985 = vpop.f32.mrb[0].mxu0
        %v3986 = vadd.f32 %v3431, %v3985
        %v3987 = vpop.f32.mrb[0].mxu0
        %3988 = vmatprep.mubr.f32.mxu0 0.0
        %3989 = vmatmul.mubr.f32.gmra.mrb[0].mxu0 %v2990
        %v3990 = vpop.f32.mrb[0].mxu0
        %v3991 = vadd.f32 %v3436, %v3990
        %v3992 = vpop.f32.mrb[0].mxu0
        %3993 = vmatprep.mubr.f32.mxu0 0.0
        %3994 = vmatmul.mubr.f32.gmra.mrb[0].mxu0 %v2993
        %v3995 = vpop.f32.mrb[0].mxu0
        %v3996 = vadd.f32 %v3441, %v3995
        %v3997 = vpop.f32.mrb[0].mxu0
        %3998 = vmatprep.mubr.f32.mxu0 0.0
        %3999 = vmatmul.mubr.f32.gmra.mrb[0].mxu0 %v2996
        %v4000 = vpop.f32.mrb[0].mxu0
        %v4001 = vadd.f32 %v3446, %v4000
        %v4002 = vpop.f32.mrb[0].mxu0
        %4003 = vmatprep.mubr.f32.mxu0 0.0
        %4004 = vmatmul.mubr.f32.gmra.mrb[0].mxu0 %v2999
        %v4005 = vpop.f32.mrb[0].mxu0
        %v4006 = vadd.f32 %v3451, %v4005
        %v4007 = vpop.f32.mrb[0].mxu0
        %4008 = vmatprep.mubr.f32.mxu0 0.0
        %4009 = vmatmul.mubr.f32.gmra.mrb[0].mxu0 %v3002
        %v4010 = vpop.f32.mrb[0].mxu0
        %v4011 = vadd.f32 %v3456, %v4010
        %v4012 = vpop.f32.mrb[0].mxu0
        %4013 = vmatprep.mubr.f32.mxu0 0.0
        %4014 = vmatmul.mubr.f32.gmra.mrb[0].mxu0 %v3005
        %v4015 = vpop.f32.mrb[0].mxu0
        %v4016 = vadd.f32 %v3461, %v4015
        %v4017 = vpop.f32.mrb[0].mxu0
        %4018 = vmatprep.mubr.f32.mxu0 0.0
        %4019 = vmatmul.mubr.f32.gmra.mrb[0].mxu0 %v3008
        %v4020 = vpop.f32.mrb[0].mxu0
        %v4021 = vadd.f32 %v3466, %v4020
        %v4022 = vpop.f32.mrb[0].mxu0
        %4023 = vmatprep.mubr.f32.mxu0 0.0
        %4024 = vmatmul.mubr.f32.gmra.mrb[0].mxu0 %v3011
        %v4025 = vpop.f32.mrb[0].mxu0
        %v4026 = vadd.f32 %v3471, %v4025
        %v4027 = vpop.f32.mrb[0].mxu0
        %4028 = vmatprep.mubr.f32.mxu0 0.0
        %4029 = vmatmul.mubr.f32.gmra.mrb[0].mxu0 %v3014
        %v4030 = vpop.f32.mrb[0].mxu0
        %v4031 = vadd.f32 %v3476, %v4030
        %v4032 = vpop.f32.mrb[0].mxu0
        %4033 = vmatprep.mubr.f32.mxu0 0.0
        %4034 = vmatmul.mubr.f32.gmra.mrb[0].mxu0 %v3017
        %v4035 = vpop.f32.mrb[0].mxu0
        %v4036 = vadd.f32 %v3481, %v4035
        %v4037 = vpop.f32.mrb[0].mxu0
        %4038 = vmatprep.mubr.f32.mxu0 0.0
        %4039 = vmatmul.mubr.f32.gmra.mrb[0].mxu0 %v3020
        %v4040 = vpop.f32.mrb[0].mxu0
        %v4041 = vadd.f32 %v3486, %v4040
        %v4042 = vpop.f32.mrb[0].mxu0
        %4043 = vmatprep.mubr.f32.mxu0 0.0
        %4044 = vmatmul.mubr.f32.gmra.mrb[0].mxu0 %v3023
        %v4045 = vpop.f32.mrb[0].mxu0
        %v4046 = vadd.f32 %v3491, %v4045
        %v4047 = vpop.f32.mrb[0].mxu0
        %4048 = vmatprep.mubr.f32.mxu0 0.0
        %4049 = vmatmul.mubr.f32.gmra.mrb[0].mxu0 %v3026
        %v4050 = vpop.f32.mrb[0].mxu0
        %v4051 = vadd.f32 %v3496, %v4050
        %v4052 = vpop.f32.mrb[0].mxu0
        %4053 = vmatprep.mubr.f32.mxu0 0.0
        %4054 = vmatmul.mubr.f32.gmra.mrb[0].mxu0 %v3029
        %v4055 = vpop.f32.mrb[0].mxu0
        %v4056 = vadd.f32 %v3501, %v4055
        %v4057 = vpop.f32.mrb[0].mxu0
        %4058 = vmatprep.mubr.f32.mxu0 0.0
        %4059 = vmatmul.mubr.f32.gmra.mrb[0].mxu0 %v3032
        %v4060 = vpop.f32.mrb[0].mxu0
        %v4061 = vadd.f32 %v3506, %v4060
        %v4062 = vpop.f32.mrb[0].mxu0
        %4063 = vmatprep.mubr.f32.mxu0 0.0
        %4064 = vmatmul.mubr.f32.gmra.mrb[0].mxu0 %v3035
        %v4065 = vpop.f32.mrb[0].mxu0
        %v4066 = vadd.f32 %v3511, %v4065
        %v4067 = vpop.f32.mrb[0].mxu0
        %4068 = vmatprep.mubr.f32.mxu0 0.0
        %4069 = vmatmul.mubr.f32.gmra.mrb[0].mxu0 %v3038
        %v4070 = vpop.f32.mrb[0].mxu0
        %v4071 = vadd.f32 %v3516, %v4070
        %v4072 = vpop.f32.mrb[0].mxu0
        %4073 = vmatprep.mubr.f32.mxu0 0.0
        %4074 = vmatmul.mubr.f32.gmra.mrb[0].mxu0 %v3041
        %v4075 = vpop.f32.mrb[0].mxu0
        %v4076 = vadd.f32 %v3521, %v4075
        %v4077 = vpop.f32.mrb[0].mxu0
        %4078 = vmatprep.mubr.f32.mxu0 0.0
        %4079 = vmatmul.mubr.f32.gmra.mrb[0].mxu0 %v3044
        %v4080 = vpop.f32.mrb[0].mxu0
        %v4081 = vadd.f32 %v3526, %v4080
        %v4082 = vpop.f32.mrb[0].mxu0
        %4083 = vmatprep.mubr.f32.mxu0 0.0
        %4084 = vmatmul.mubr.f32.gmra.mrb[0].mxu0 %v3047
        %v4085 = vpop.f32.mrb[0].mxu0
        %v4086 = vadd.f32 %v3531, %v4085
        %v4087 = vpop.f32.mrb[0].mxu0
        %4088 = vmatprep.mubr.f32.mxu0 0.0
        %4089 = vmatmul.mubr.f32.gmra.mrb[0].mxu0 %v3050
        %v4090 = vpop.f32.mrb[0].mxu0
        %v4091 = vadd.f32 %v3536, %v4090
        %v4092 = vpop.f32.mrb[0].mxu0
        %4093 = vmatprep.mubr.f32.mxu0 0.0
        %4094 = vmatmul.mubr.f32.gmra.mrb[0].mxu0 %v3053
        %v4095 = vpop.f32.mrb[0].mxu0
        %v4096 = vadd.f32 %v3541, %v4095
        %v4097 = vpop.f32.mrb[0].mxu0
        %4098 = vmatprep.mubr.f32.mxu0 0.0
        %4099 = vmatmul.mubr.f32.gmra.mrb[0].mxu0 %v3056
        %v4100 = vpop.f32.mrb[0].mxu0
        %v4101 = vadd.f32 %v3546, %v4100
        %v4102 = vpop.f32.mrb[0].mxu0
        %4103 = vmatprep.mubr.f32.mxu0 0.0
        %4104 = vmatmul.mubr.f32.gmra.mrb[0].mxu0 %v3059
        %v4105 = vpop.f32.mrb[0].mxu0
        %v4106 = vadd.f32 %v3551, %v4105
        %v4107 = vpop.f32.mrb[0].mxu0
        %4108 = vmatprep.mubr.f32.mxu0 0.0
        %4109 = vmatmul.mubr.f32.gmra.mrb[0].mxu0 %v3062
        %v4110 = vpop.f32.mrb[0].mxu0
        %v4111 = vadd.f32 %v3556, %v4110
        %v4112 = vpop.f32.mrb[0].mxu0
        %4113 = vmatprep.mubr.f32.mxu0 0.0
        %4114 = vmatmul.mubr.f32.gmra.mrb[0].mxu0 %v3065
        %v4115 = vpop.f32.mrb[0].mxu0
        %v4116 = vadd.f32 %v3561, %v4115
        %v4117 = vpop.f32.mrb[0].mxu0
        %4118 = vmatprep.mubr.f32.mxu0 0.0
        %4119 = vmatmul.mubr.f32.gmra.mrb[0].mxu0 %v3068
        %v4120 = vpop.f32.mrb[0].mxu0
        %v4121 = vadd.f32 %v3566, %v4120
        %v4122 = vpop.f32.mrb[0].mxu0
        %4123 = vmatprep.mubr.f32.mxu0 0.0
        %4124 = vmatmul.mubr.f32.gmra.mrb[0].mxu0 %v3071
        %v4125 = vpop.f32.mrb[0].mxu0
        %v4126 = vadd.f32 %v3571, %v4125
        %v4127 = vpop.f32.mrb[0].mxu0
        %4128 = vmatprep.mubr.f32.mxu0 0.0
        %4129 = vmatmul.mubr.f32.gmra.mrb[0].mxu0 %v3074
        %v4130 = vpop.f32.mrb[0].mxu0
        %v4131 = vadd.f32 %v3576, %v4130
        %v4132 = vpop.f32.mrb[0].mxu0
        %4133 = vmatprep.mubr.f32.mxu0 0.0
        %4134 = vmatmul.mubr.f32.gmra.mrb[0].mxu0 %v3077
        %v4135 = vpop.f32.mrb[0].mxu0
        %v4136 = vadd.f32 %v3581, %v4135
        %v4137 = vpop.f32.mrb[0].mxu0
        %4138 = vmatprep.mubr.f32.mxu0 0.0
        %4139 = vmatmul.mubr.f32.gmra.mrb[0].mxu0 %v3080
        %v4140 = vpop.f32.mrb[0].mxu0
        %v4141 = vadd.f32 %v3586, %v4140
        %v4142 = vpop.f32.mrb[0].mxu0
        %4143 = vmatprep.mubr.f32.mxu0 0.0
        %4144 = vmatmul.mubr.f32.gmra.mrb[0].mxu0 %v3083
        %v4145 = vpop.f32.mrb[0].mxu0
        %v4146 = vadd.f32 %v3591, %v4145
        %v4147 = vpop.f32.mrb[0].mxu0
        %4148 = vmatprep.mubr.f32.mxu0 0.0
        %4149 = vmatmul.mubr.f32.gmra.mrb[0].mxu0 %v3086
        %v4150 = vpop.f32.mrb[0].mxu0
        %v4151 = vadd.f32 %v3596, %v4150
        %v4152 = vpop.f32.mrb[0].mxu0
        %4153 = vmatprep.mubr.f32.mxu0 0.0
        %4154 = vmatmul.mubr.f32.gmra.mrb[0].mxu0 %v3089
        %v4155 = vpop.f32.mrb[0].mxu0
        %v4156 = vadd.f32 %v3601, %v4155
        %v4157 = vpop.f32.mrb[0].mxu0
        %4158 = vmatprep.mubr.f32.mxu0 0.0
        %4159 = vmatmul.mubr.f32.gmra.mrb[0].mxu0 %v3092
        %v4160 = vpop.f32.mrb[0].mxu0
        %v4161 = vadd.f32 %v3606, %v4160
        %v4162 = vpop.f32.mrb[0].mxu0
        %4163 = vmatprep.mubr.f32.mxu0 0.0
        %4164 = vmatmul.mubr.f32.gmra.mrb[0].mxu0 %v3095
        %v4165 = vpop.f32.mrb[0].mxu0
        %v4166 = vadd.f32 %v3611, %v4165
        %v4167 = vpop.f32.mrb[0].mxu0
        %4168 = vmatprep.mubr.f32.mxu0 0.0
        %4169 = vmatmul.mubr.f32.gmra.mrb[0].mxu0 %v3098
        %v4170 = vpop.f32.mrb[0].mxu0
        %v4171 = vadd.f32 %v3616, %v4170
        %v4172 = vpop.f32.mrb[0].mxu0
        %4173 = vmatprep.mubr.f32.mxu0 0.0
        %4174 = vmatmul.mubr.f32.gmra.mrb[0].mxu0 %v3101
        %v4175 = vpop.f32.mrb[0].mxu0
        %v4176 = vadd.f32 %v3621, %v4175
        %v4177 = vpop.f32.mrb[0].mxu0
        %4178 = vmatprep.mubr.f32.mxu0 0.0
        %4179 = vmatmul.mubr.f32.gmra.mrb[0].mxu0 %v3104
        %v4180 = vpop.f32.mrb[0].mxu0
        %v4181 = vadd.f32 %v3626, %v4180
        %v4182 = vpop.f32.mrb[0].mxu0
        %4183 = vmatprep.mubr.f32.mxu0 0.0
        %4184 = vmatmul.mubr.f32.gmra.mrb[0].mxu0 %v3107
        %v4185 = vpop.f32.mrb[0].mxu0
        %v4186 = vadd.f32 %v3631, %v4185
        %v4187 = vpop.f32.mrb[0].mxu0
        %4188 = vmatprep.mubr.f32.mxu0 0.0
        %4189 = vmatmul.mubr.f32.gmra.mrb[0].mxu0 %v3110
        %v4190 = vpop.f32.mrb[0].mxu0
        %v4191 = vadd.f32 %v3636, %v4190
        %v4192 = vpop.f32.mrb[0].mxu0
        %4193 = vmatprep.mubr.f32.mxu0 0.0
        %4194 = vmatmul.mubr.f32.gmra.mrb[0].mxu0 %v3113
        %v4195 = vpop.f32.mrb[0].mxu0
        %v4196 = vadd.f32 %v3641, %v4195
        %v4197 = vpop.f32.mrb[0].mxu0
        %4198 = vmatprep.mubr.f32.mxu0 0.0
        %4199 = vmatmul.mubr.f32.gmra.mrb[0].mxu0 %v3116
        %v4200 = vpop.f32.mrb[0].mxu0
        %v4201 = vadd.f32 %v3646, %v4200
        %v4202 = vpop.f32.mrb[0].mxu0
        %4203 = vmatprep.mubr.f32.mxu0 0.0
        %4204 = vmatmul.mubr.f32.gmra.mrb[0].mxu0 %v3119
        %v4205 = vpop.f32.mrb[0].mxu0
        %v4206 = vadd.f32 %v3651, %v4205
        %v4207 = vpop.f32.mrb[0].mxu0
        %4208 = vmatprep.mubr.f32.mxu0 0.0
        %4209 = vmatmul.mubr.f32.gmra.mrb[0].mxu0 %v3122
        %v4210 = vpop.f32.mrb[0].mxu0
        %v4211 = vadd.f32 %v3656, %v4210
        %v4212 = vpop.f32.mrb[0].mxu0
        %4213 = vmatprep.mubr.f32.mxu0 0.0
        %4214 = vmatmul.mubr.f32.gmra.mrb[0].mxu0 %v3125
        %v4215 = vpop.f32.mrb[0].mxu0
        %v4216 = vadd.f32 %v3661, %v4215
        %v4217 = vpop.f32.mrb[0].mxu0
        %4218 = vmatprep.mubr.f32.mxu0 0.0
        %4219 = vmatmul.mubr.f32.gmra.mrb[0].mxu0 %v3128
        %v4220 = vpop.f32.mrb[0].mxu0
        %v4221 = vadd.f32 %v3666, %v4220
        %v4222 = vpop.f32.mrb[0].mxu0
        %4223 = vmatprep.mubr.f32.mxu0 0.0
        %4224 = vmatmul.mubr.f32.gmra.mrb[0].mxu0 %v3131
        %v4225 = vpop.f32.mrb[0].mxu0
        %v4226 = vadd.f32 %v3671, %v4225
        %v4227 = vpop.f32.mrb[0].mxu0
        %4228 = vmatprep.mubr.f32.mxu0 0.0
        %4229 = vmatmul.mubr.f32.gmra.mrb[0].mxu0 %v3134
        %v4230 = vpop.f32.mrb[0].mxu0
        %v4231 = vadd.f32 %v3676, %v4230
        %v4232 = vpop.f32.mrb[0].mxu0
        %4233 = vmatprep.mubr.f32.mxu0 0.0
        %4234 = vmatmul.mubr.f32.gmra.mrb[0].mxu0 %v3137
        %v4235 = vpop.f32.mrb[0].mxu0
        %v4236 = vadd.f32 %v3681, %v4235
        %v4237 = vpop.f32.mrb[0].mxu0
        %4238 = vmatprep.mubr.f32.mxu0 0.0
        %4239 = vmatmul.mubr.f32.gmra.mrb[0].mxu0 %v3140
        %v4240 = vpop.f32.mrb[0].mxu0
        %v4241 = vadd.f32 %v3686, %v4240
        %v4242 = vpop.f32.mrb[0].mxu0
        %4243 = vmatprep.mubr.f32.mxu0 0.0
        %4244 = vmatmul.mubr.f32.gmra.mrb[0].mxu0 %v3143
        %v4245 = vpop.f32.mrb[0].mxu0
        %v4246 = vadd.f32 %v3691, %v4245
        %v4247 = vpop.f32.mrb[0].mxu0
        %4248 = vmatprep.mubr.f32.mxu0 0.0
        %4249 = vmatmul.mubr.f32.gmra.mrb[0].mxu0 %v3146
        %v4250 = vpop.f32.mrb[0].mxu0
        %v4251 = vadd.f32 %v3696, %v4250
        %v4252 = vpop.f32.mrb[0].mxu0
        %4253 = vmatprep.mubr.f32.mxu0 0.0
        %4254 = vmatmul.mubr.f32.gmra.mrb[0].mxu0 %v3149
        %v4255 = vpop.f32.mrb[0].mxu0
        %v4256 = vadd.f32 %v3701, %v4255
        %v4257 = vpop.f32.mrb[0].mxu0
        %4258 = vmatprep.mubr.f32.mxu0 0.0
        %4259 = vmatmul.mubr.f32.gmra.mrb[0].mxu0 %v3152
        %v4260 = vpop.f32.mrb[0].mxu0
        %v4261 = vadd.f32 %v3706, %v4260
        %v4262 = vpop.f32.mrb[0].mxu0
        %4263 = vdwg.mxu0
        %v4264 = vmax.f32 %v3776, 0.0
        %v4265 = vmax.f32 %v3781, 0.0
        %v4266 = vmax.f32 %v3786, 0.0
        %v4267 = vmax.f32 %v3791, 0.0
        %v4268 = vmax.f32 %v3796, 0.0
        %v4269 = vmax.f32 %v3801, 0.0
        %v4270 = vmax.f32 %v3806, 0.0
        %v4271 = vmax.f32 %v3811, 0.0
        %v4272 = vmax.f32 %v3816, 0.0
        %v4273 = vmax.f32 %v3821, 0.0
        %v4274 = vmax.f32 %v3826, 0.0
        %v4275 = vmax.f32 %v3831, 0.0
        %v4276 = vmax.f32 %v3836, 0.0
        %v4277 = vmax.f32 %v3841, 0.0
        %v4278 = vmax.f32 %v3846, 0.0
        %v4279 = vmax.f32 %v3851, 0.0
        %v4280 = vmax.f32 %v3856, 0.0
        %v4281 = vmax.f32 %v3861, 0.0
        %v4282 = vmax.f32 %v3866, 0.0
        %v4283 = vmax.f32 %v3871, 0.0
        %v4284 = vmax.f32 %v3876, 0.0
        %v4285 = vmax.f32 %v3881, 0.0
        %v4286 = vmax.f32 %v3886, 0.0
        %v4287 = vmax.f32 %v3891, 0.0
        %v4288 = vmax.f32 %v3896, 0.0
        %v4289 = vmax.f32 %v3901, 0.0
        %v4290 = vmax.f32 %v3906, 0.0
        %v4291 = vmax.f32 %v3911, 0.0
        %v4292 = vmax.f32 %v3916, 0.0
        %v4293 = vmax.f32 %v3921, 0.0
        %v4294 = vmax.f32 %v3926, 0.0
        %v4295 = vmax.f32 %v3931, 0.0
        %v4296 = vmax.f32 %v3936, 0.0
        %v4297 = vmax.f32 %v3941, 0.0
        %v4298 = vmax.f32 %v3946, 0.0
        %v4299 = vmax.f32 %v3951, 0.0
        %v4300 = vmax.f32 %v3956, 0.0
        %v4301 = vmax.f32 %v3961, 0.0
        %v4302 = vmax.f32 %v3966, 0.0
        %v4303 = vmax.f32 %v3971, 0.0
        %v4304 = vmax.f32 %v3976, 0.0
        %v4305 = vmax.f32 %v3981, 0.0
        %v4306 = vmax.f32 %v3986, 0.0
        %v4307 = vmax.f32 %v3991, 0.0
        %v4308 = vmax.f32 %v3996, 0.0
        %v4309 = vmax.f32 %v4001, 0.0
        %v4310 = vmax.f32 %v4006, 0.0
        %v4311 = vmax.f32 %v4011, 0.0
        %v4312 = vmax.f32 %v4016, 0.0
        %v4313 = vmax.f32 %v4021, 0.0
        %v4314 = vmax.f32 %v4026, 0.0
        %v4315 = vmax.f32 %v4031, 0.0
        %v4316 = vmax.f32 %v4036, 0.0
        %v4317 = vmax.f32 %v4041, 0.0
        %v4318 = vmax.f32 %v4046, 0.0
        %v4319 = vmax.f32 %v4051, 0.0
        %v4320 = vmax.f32 %v4056, 0.0
        %v4321 = vmax.f32 %v4061, 0.0
        %v4322 = vmax.f32 %v4066, 0.0
        %v4323 = vmax.f32 %v4071, 0.0
        %v4324 = vmax.f32 %v4076, 0.0
        %v4325 = vmax.f32 %v4081, 0.0
        %v4326 = vmax.f32 %v4086, 0.0
        %v4327 = vmax.f32 %v4091, 0.0
        %v4328 = vmax.f32 %v4096, 0.0
        %v4329 = vmax.f32 %v4101, 0.0
        %v4330 = vmax.f32 %v4106, 0.0
        %v4331 = vmax.f32 %v4111, 0.0
        %v4332 = vmax.f32 %v4116, 0.0
        %v4333 = vmax.f32 %v4121, 0.0
        %v4334 = vmax.f32 %v4126, 0.0
        %v4335 = vmax.f32 %v4131, 0.0
        %v4336 = vmax.f32 %v4136, 0.0
        %v4337 = vmax.f32 %v4141, 0.0
        %v4338 = vmax.f32 %v4146, 0.0
        %v4339 = vmax.f32 %v4151, 0.0
        %v4340 = vmax.f32 %v4156, 0.0
        %v4341 = vmax.f32 %v4161, 0.0
        %v4342 = vmax.f32 %v4166, 0.0
        %v4343 = vmax.f32 %v4171, 0.0
        %v4344 = vmax.f32 %v4176, 0.0
        %v4345 = vmax.f32 %v4181, 0.0
        %v4346 = vmax.f32 %v4186, 0.0
        %v4347 = vmax.f32 %v4191, 0.0
        %v4348 = vmax.f32 %v4196, 0.0
        %v4349 = vmax.f32 %v4201, 0.0
        %v4350 = vmax.f32 %v4206, 0.0
        %v4351 = vmax.f32 %v4211, 0.0
        %v4352 = vmax.f32 %v4216, 0.0
        %v4353 = vmax.f32 %v4221, 0.0
        %v4354 = vmax.f32 %v4226, 0.0
        %v4355 = vmax.f32 %v4231, 0.0
        %v4356 = vmax.f32 %v4236, 0.0
        %v4357 = vmax.f32 %v4241, 0.0
        %v4358 = vmax.f32 %v4246, 0.0
        %v4359 = vmax.f32 %v4251, 0.0
        %v4360 = vmax.f32 %v4256, 0.0
        %v4361 = vmax.f32 %v4261, 0.0
        %vm4362 = vcmask 523264
        %4363 = vst.msk [vmem:[#allocation3] sm:$0xff] %vm4362, %v4264
        %4364 = vst.msk [vmem:[#allocation3 + $0x8] sm:$0xff] %vm4362, %v4265
        %4365 = vst.msk [vmem:[#allocation3 + $0x10] sm:$0xff] %vm4362, %v4266
        %4366 = vst.msk [vmem:[#allocation3 + $0x18] sm:$0xff] %vm4362, %v4267
        %4367 = vst.msk [vmem:[#allocation3 + $0x20] sm:$0xff] %vm4362, %v4268
        %4368 = vst.msk [vmem:[#allocation3 + $0x28] sm:$0xff] %vm4362, %v4269
        %4369 = vst.msk [vmem:[#allocation3 + $0x30] sm:$0xff] %vm4362, %v4270
        %4370 = vst.msk [vmem:[#allocation3 + $0x38] sm:$0xff] %vm4362, %v4271
        %4371 = vst.msk [vmem:[#allocation3 + $0x40] sm:$0xff] %vm4362, %v4272
        %4372 = vst.msk [vmem:[#allocation3 + $0x48] sm:$0xff] %vm4362, %v4273
        %4373 = vst.msk [vmem:[#allocation3 + $0x50] sm:$0xff] %vm4362, %v4274
        %4374 = vst.msk [vmem:[#allocation3 + $0x58] sm:$0xff] %vm4362, %v4275
        %4375 = vst.msk [vmem:[#allocation3 + $0x60] sm:$0xff] %vm4362, %v4276
        %4376 = vst.msk [vmem:[#allocation3 + $0x68] sm:$0xff] %vm4362, %v4277
        %4377 = vst.msk [vmem:[#allocation3 + $0x70] sm:$0xff] %vm4362, %v4278
        %4378 = vst.msk [vmem:[#allocation3 + $0x78] sm:$0xff] %vm4362, %v4279
        %4379 = vst.msk [vmem:[#allocation3 + $0x80] sm:$0xff] %vm4362, %v4280
        %4380 = vst.msk [vmem:[#allocation3 + $0x88] sm:$0xff] %vm4362, %v4281
        %4381 = vst.msk [vmem:[#allocation3 + $0x90] sm:$0xff] %vm4362, %v4282
        %4382 = vst.msk [vmem:[#allocation3 + $0x98] sm:$0xff] %vm4362, %v4283
        %4383 = vst.msk [vmem:[#allocation3 + $0xa0] sm:$0xff] %vm4362, %v4284
        %4384 = vst.msk [vmem:[#allocation3 + $0xa8] sm:$0xff] %vm4362, %v4285
        %4385 = vst.msk [vmem:[#allocation3 + $0xb0] sm:$0xff] %vm4362, %v4286
        %4386 = vst.msk [vmem:[#allocation3 + $0xb8] sm:$0xff] %vm4362, %v4287
        %4387 = vst.msk [vmem:[#allocation3 + $0xc0] sm:$0xff] %vm4362, %v4288
        %4388 = vst.msk [vmem:[#allocation3 + $0xc8] sm:$0xff] %vm4362, %v4289
        %4389 = vst.msk [vmem:[#allocation3 + $0xd0] sm:$0xff] %vm4362, %v4290
        %4390 = vst.msk [vmem:[#allocation3 + $0xd8] sm:$0xff] %vm4362, %v4291
        %4391 = vst.msk [vmem:[#allocation3 + $0xe0] sm:$0xff] %vm4362, %v4292
        %4392 = vst.msk [vmem:[#allocation3 + $0xe8] sm:$0xff] %vm4362, %v4293
        %4393 = vst.msk [vmem:[#allocation3 + $0xf0] sm:$0xff] %vm4362, %v4294
        %4394 = vst.msk [vmem:[#allocation3 + $0xf8] sm:$0xff] %vm4362, %v4295
        %4395 = vst.msk [vmem:[#allocation3 + $0x100] sm:$0xff] %vm4362, %v4296
        %4396 = vst.msk [vmem:[#allocation3 + $0x108] sm:$0xff] %vm4362, %v4297
        %4397 = vst.msk [vmem:[#allocation3 + $0x110] sm:$0xff] %vm4362, %v4298
        %4398 = vst.msk [vmem:[#allocation3 + $0x118] sm:$0xff] %vm4362, %v4299
        %4399 = vst.msk [vmem:[#allocation3 + $0x120] sm:$0xff] %vm4362, %v4300
        %4400 = vst.msk [vmem:[#allocation3 + $0x128] sm:$0xff] %vm4362, %v4301
        %4401 = vst.msk [vmem:[#allocation3 + $0x130] sm:$0xff] %vm4362, %v4302
        %4402 = vst.msk [vmem:[#allocation3 + $0x138] sm:$0xff] %vm4362, %v4303
        %4403 = vst.msk [vmem:[#allocation3 + $0x140] sm:$0xff] %vm4362, %v4304
        %4404 = vst.msk [vmem:[#allocation3 + $0x148] sm:$0xff] %vm4362, %v4305
        %4405 = vst.msk [vmem:[#allocation3 + $0x150] sm:$0xff] %vm4362, %v4306
        %4406 = vst.msk [vmem:[#allocation3 + $0x158] sm:$0xff] %vm4362, %v4307
        %4407 = vst.msk [vmem:[#allocation3 + $0x160] sm:$0xff] %vm4362, %v4308
        %4408 = vst.msk [vmem:[#allocation3 + $0x168] sm:$0xff] %vm4362, %v4309
        %4409 = vst.msk [vmem:[#allocation3 + $0x170] sm:$0xff] %vm4362, %v4310
        %4410 = vst.msk [vmem:[#allocation3 + $0x178] sm:$0xff] %vm4362, %v4311
        %4411 = vst.msk [vmem:[#allocation3 + $0x180] sm:$0xff] %vm4362, %v4312
        %4412 = vst.msk [vmem:[#allocation3 + $0x188] sm:$0xff] %vm4362, %v4313
        %4413 = vst.msk [vmem:[#allocation3 + $0x190] sm:$0xff] %vm4362, %v4314
        %4414 = vst.msk [vmem:[#allocation3 + $0x198] sm:$0xff] %vm4362, %v4315
        %4415 = vst.msk [vmem:[#allocation3 + $0x1a0] sm:$0xff] %vm4362, %v4316
        %4416 = vst.msk [vmem:[#allocation3 + $0x1a8] sm:$0xff] %vm4362, %v4317
        %4417 = vst.msk [vmem:[#allocation3 + $0x1b0] sm:$0xff] %vm4362, %v4318
        %4418 = vst.msk [vmem:[#allocation3 + $0x1b8] sm:$0xff] %vm4362, %v4319
        %4419 = vst.msk [vmem:[#allocation3 + $0x1c0] sm:$0xff] %vm4362, %v4320
        %4420 = vst.msk [vmem:[#allocation3 + $0x1c8] sm:$0xff] %vm4362, %v4321
        %4421 = vst.msk [vmem:[#allocation3 + $0x1d0] sm:$0xff] %vm4362, %v4322
        %4422 = vst.msk [vmem:[#allocation3 + $0x1d8] sm:$0xff] %vm4362, %v4323
        %4423 = vst.msk [vmem:[#allocation3 + $0x1e0] sm:$0xff] %vm4362, %v4324
        %4424 = vst.msk [vmem:[#allocation3 + $0x1e8] sm:$0xff] %vm4362, %v4325
        %4425 = vst.msk [vmem:[#allocation3 + $0x1f0] sm:$0xff] %vm4362, %v4326
        %4426 = vst.msk [vmem:[#allocation3 + $0x1f8] sm:$0xff] %vm4362, %v4327
        %4427 = vst.msk [vmem:[#allocation3 + $0x200] sm:$0xff] %vm4362, %v4328
        %4428 = vst.msk [vmem:[#allocation3 + $0x208] sm:$0xff] %vm4362, %v4329
        %4429 = vst.msk [vmem:[#allocation3 + $0x210] sm:$0xff] %vm4362, %v4330
        %4430 = vst.msk [vmem:[#allocation3 + $0x218] sm:$0xff] %vm4362, %v4331
        %4431 = vst.msk [vmem:[#allocation3 + $0x220] sm:$0xff] %vm4362, %v4332
        %4432 = vst.msk [vmem:[#allocation3 + $0x228] sm:$0xff] %vm4362, %v4333
        %4433 = vst.msk [vmem:[#allocation3 + $0x230] sm:$0xff] %vm4362, %v4334
        %4434 = vst.msk [vmem:[#allocation3 + $0x238] sm:$0xff] %vm4362, %v4335
        %4435 = vst.msk [vmem:[#allocation3 + $0x240] sm:$0xff] %vm4362, %v4336
        %4436 = vst.msk [vmem:[#allocation3 + $0x248] sm:$0xff] %vm4362, %v4337
        %4437 = vst.msk [vmem:[#allocation3 + $0x250] sm:$0xff] %vm4362, %v4338
        %4438 = vst.msk [vmem:[#allocation3 + $0x258] sm:$0xff] %vm4362, %v4339
        %4439 = vst.msk [vmem:[#allocation3 + $0x260] sm:$0xff] %vm4362, %v4340
        %4440 = vst.msk [vmem:[#allocation3 + $0x268] sm:$0xff] %vm4362, %v4341
        %4441 = vst.msk [vmem:[#allocation3 + $0x270] sm:$0xff] %vm4362, %v4342
        %4442 = vst.msk [vmem:[#allocation3 + $0x278] sm:$0xff] %vm4362, %v4343
        %4443 = vst.msk [vmem:[#allocation3 + $0x280] sm:$0xff] %vm4362, %v4344
        %4444 = vst.msk [vmem:[#allocation3 + $0x288] sm:$0xff] %vm4362, %v4345
        %4445 = vst.msk [vmem:[#allocation3 + $0x290] sm:$0xff] %vm4362, %v4346
        %4446 = vst.msk [vmem:[#allocation3 + $0x298] sm:$0xff] %vm4362, %v4347
        %4447 = vst.msk [vmem:[#allocation3 + $0x2a0] sm:$0xff] %vm4362, %v4348
        %4448 = vst.msk [vmem:[#allocation3 + $0x2a8] sm:$0xff] %vm4362, %v4349
        %4449 = vst.msk [vmem:[#allocation3 + $0x2b0] sm:$0xff] %vm4362, %v4350
        %4450 = vst.msk [vmem:[#allocation3 + $0x2b8] sm:$0xff] %vm4362, %v4351
        %4451 = vst.msk [vmem:[#allocation3 + $0x2c0] sm:$0xff] %vm4362, %v4352
        %4452 = vst.msk [vmem:[#allocation3 + $0x2c8] sm:$0xff] %vm4362, %v4353
        %4453 = vst.msk [vmem:[#allocation3 + $0x2d0] sm:$0xff] %vm4362, %v4354
        %4454 = vst.msk [vmem:[#allocation3 + $0x2d8] sm:$0xff] %vm4362, %v4355
        %4455 = vst.msk [vmem:[#allocation3 + $0x2e0] sm:$0xff] %vm4362, %v4356
        %4456 = vst.msk [vmem:[#allocation3 + $0x2e8] sm:$0xff] %vm4362, %v4357
        %4457 = vst.msk [vmem:[#allocation3 + $0x2f0] sm:$0xff] %vm4362, %v4358
        %4458 = vst.msk [vmem:[#allocation3 + $0x2f8] sm:$0xff] %vm4362, %v4359
        %4459 = vst.msk [vmem:[#allocation3 + $0x300] sm:$0xff] %vm4362, %v4360
        %4460 = vst.msk [vmem:[#allocation3 + $0x308] sm:$0xff] %vm4362, %v4361
        %v4461 = vld [vmem:[#allocation3] sm:$0xff]
        %v4462 = vld [vmem:[#allocation3 + $0x8] sm:$0xff]
        %v4463 = vld [vmem:[#allocation3 + $0x10] sm:$0xff]
        %v4464 = vld [vmem:[#allocation3 + $0x18] sm:$0xff]
        %v4465 = vld [vmem:[#allocation3 + $0x20] sm:$0xff]
        %v4466 = vld [vmem:[#allocation3 + $0x28] sm:$0xff]
        %v4467 = vld [vmem:[#allocation3 + $0x30] sm:$0xff]
        %v4468 = vld [vmem:[#allocation3 + $0x38] sm:$0xff]
        %v4469 = vld [vmem:[#allocation3 + $0x40] sm:$0xff]
        %v4470 = vld [vmem:[#allocation3 + $0x48] sm:$0xff]
        %v4471 = vld [vmem:[#allocation3 + $0x50] sm:$0xff]
        %v4472 = vld [vmem:[#allocation3 + $0x58] sm:$0xff]
        %v4473 = vld [vmem:[#allocation3 + $0x60] sm:$0xff]
        %v4474 = vld [vmem:[#allocation3 + $0x68] sm:$0xff]
        %v4475 = vld [vmem:[#allocation3 + $0x70] sm:$0xff]
        %v4476 = vld [vmem:[#allocation3 + $0x78] sm:$0xff]
        %v4477 = vld [vmem:[#allocation3 + $0x80] sm:$0xff]
        %v4478 = vld [vmem:[#allocation3 + $0x88] sm:$0xff]
        %v4479 = vld [vmem:[#allocation3 + $0x90] sm:$0xff]
        %v4480 = vld [vmem:[#allocation3 + $0x98] sm:$0xff]
        %v4481 = vld [vmem:[#allocation3 + $0xa0] sm:$0xff]
        %v4482 = vld [vmem:[#allocation3 + $0xa8] sm:$0xff]
        %v4483 = vld [vmem:[#allocation3 + $0xb0] sm:$0x1f]
        %v4484 = vld [vmem:[#allocation3 + $0x1] sm:$0xff]
        %v4485 = vld [vmem:[#allocation3 + $0x9] sm:$0xff]
        %v4486 = vld [vmem:[#allocation3 + $0x11] sm:$0xff]
        %v4487 = vld [vmem:[#allocation3 + $0x19] sm:$0xff]
        %v4488 = vld [vmem:[#allocation3 + $0x21] sm:$0xff]
        %v4489 = vld [vmem:[#allocation3 + $0x29] sm:$0xff]
        %v4490 = vld [vmem:[#allocation3 + $0x31] sm:$0xff]
        %v4491 = vld [vmem:[#allocation3 + $0x39] sm:$0xff]
        %v4492 = vld [vmem:[#allocation3 + $0x41] sm:$0xff]
        %v4493 = vld [vmem:[#allocation3 + $0x49] sm:$0xff]
        %v4494 = vld [vmem:[#allocation3 + $0x51] sm:$0xff]
        %v4495 = vld [vmem:[#allocation3 + $0x59] sm:$0xff]
        %v4496 = vld [vmem:[#allocation3 + $0x61] sm:$0xff]
        %v4497 = vld [vmem:[#allocation3 + $0x69] sm:$0xff]
        %v4498 = vld [vmem:[#allocation3 + $0x71] sm:$0xff]
        %v4499 = vld [vmem:[#allocation3 + $0x79] sm:$0xff]
        %v4500 = vld [vmem:[#allocation3 + $0x81] sm:$0xff]
        %v4501 = vld [vmem:[#allocation3 + $0x89] sm:$0xff]
        %v4502 = vld [vmem:[#allocation3 + $0x91] sm:$0xff]
        %v4503 = vld [vmem:[#allocation3 + $0x99] sm:$0xff]
        %v4504 = vld [vmem:[#allocation3 + $0xa1] sm:$0xff]
        %v4505 = vld [vmem:[#allocation3 + $0xa9] sm:$0xff]
        %v4506 = vld [vmem:[#allocation3 + $0xb1] sm:$0x1f]
        %v4507 = vmax.f32 %v4461, %v4484
        %v4508 = vmax.f32 %v4462, %v4485
        %v4509 = vmax.f32 %v4463, %v4486
        %v4510 = vmax.f32 %v4464, %v4487
        %v4511 = vmax.f32 %v4465, %v4488
        %v4512 = vmax.f32 %v4466, %v4489
        %v4513 = vmax.f32 %v4467, %v4490
        %v4514 = vmax.f32 %v4468, %v4491
        %v4515 = vmax.f32 %v4469, %v4492
        %v4516 = vmax.f32 %v4470, %v4493
        %v4517 = vmax.f32 %v4471, %v4494
        %v4518 = vmax.f32 %v4472, %v4495
        %v4519 = vmax.f32 %v4473, %v4496
        %v4520 = vmax.f32 %v4474, %v4497
        %v4521 = vmax.f32 %v4475, %v4498
        %v4522 = vmax.f32 %v4476, %v4499
        %v4523 = vmax.f32 %v4477, %v4500
        %v4524 = vmax.f32 %v4478, %v4501
        %v4525 = vmax.f32 %v4479, %v4502
        %v4526 = vmax.f32 %v4480, %v4503
        %v4527 = vmax.f32 %v4481, %v4504
        %v4528 = vmax.f32 %v4482, %v4505
        %v4529 = vmax.f32 %v4483, %v4506
        %v4530 = vld [vmem:[#allocation3 + $0xe] sm:$0xff]
        %v4531 = vld [vmem:[#allocation3 + $0x16] sm:$0xff]
        %v4532 = vld [vmem:[#allocation3 + $0x1e] sm:$0xff]
        %v4533 = vld [vmem:[#allocation3 + $0x26] sm:$0xff]
        %v4534 = vld [vmem:[#allocation3 + $0x2e] sm:$0xff]
        %v4535 = vld [vmem:[#allocation3 + $0x36] sm:$0xff]
        %v4536 = vld [vmem:[#allocation3 + $0x3e] sm:$0xff]
        %v4537 = vld [vmem:[#allocation3 + $0x46] sm:$0xff]
        %v4538 = vld [vmem:[#allocation3 + $0x4e] sm:$0xff]
        %v4539 = vld [vmem:[#allocation3 + $0x56] sm:$0xff]
        %v4540 = vld [vmem:[#allocation3 + $0x5e] sm:$0xff]
        %v4541 = vld [vmem:[#allocation3 + $0x66] sm:$0xff]
        %v4542 = vld [vmem:[#allocation3 + $0x6e] sm:$0xff]
        %v4543 = vld [vmem:[#allocation3 + $0x76] sm:$0xff]
        %v4544 = vld [vmem:[#allocation3 + $0x7e] sm:$0xff]
        %v4545 = vld [vmem:[#allocation3 + $0x86] sm:$0xff]
        %v4546 = vld [vmem:[#allocation3 + $0x8e] sm:$0xff]
        %v4547 = vld [vmem:[#allocation3 + $0x96] sm:$0xff]
        %v4548 = vld [vmem:[#allocation3 + $0x9e] sm:$0xff]
        %v4549 = vld [vmem:[#allocation3 + $0xa6] sm:$0xff]
        %v4550 = vld [vmem:[#allocation3 + $0xae] sm:$0xff]
        %v4551 = vld [vmem:[#allocation3 + $0xb6] sm:$0xff]
        %v4552 = vld [vmem:[#allocation3 + $0xbe] sm:$0x1f]
        %v4553 = vmax.f32 %v4507, %v4530
        %v4554 = vmax.f32 %v4508, %v4531
        %v4555 = vmax.f32 %v4509, %v4532
        %v4556 = vmax.f32 %v4510, %v4533
        %v4557 = vmax.f32 %v4511, %v4534
        %v4558 = vmax.f32 %v4512, %v4535
        %v4559 = vmax.f32 %v4513, %v4536
        %v4560 = vmax.f32 %v4514, %v4537
        %v4561 = vmax.f32 %v4515, %v4538
        %v4562 = vmax.f32 %v4516, %v4539
        %v4563 = vmax.f32 %v4517, %v4540
        %v4564 = vmax.f32 %v4518, %v4541
        %v4565 = vmax.f32 %v4519, %v4542
        %v4566 = vmax.f32 %v4520, %v4543
        %v4567 = vmax.f32 %v4521, %v4544
        %v4568 = vmax.f32 %v4522, %v4545
        %v4569 = vmax.f32 %v4523, %v4546
        %v4570 = vmax.f32 %v4524, %v4547
        %v4571 = vmax.f32 %v4525, %v4548
        %v4572 = vmax.f32 %v4526, %v4549
        %v4573 = vmax.f32 %v4527, %v4550
        %v4574 = vmax.f32 %v4528, %v4551
        %v4575 = vmax.f32 %v4529, %v4552
        %v4576 = vld [vmem:[#allocation3 + $0xf] sm:$0xff]
        %v4577 = vld [vmem:[#allocation3 + $0x17] sm:$0xff]
        %v4578 = vld [vmem:[#allocation3 + $0x1f] sm:$0xff]
        %v4579 = vld [vmem:[#allocation3 + $0x27] sm:$0xff]
        %v4580 = vld [vmem:[#allocation3 + $0x2f] sm:$0xff]
        %v4581 = vld [vmem:[#allocation3 + $0x37] sm:$0xff]
        %v4582 = vld [vmem:[#allocation3 + $0x3f] sm:$0xff]
        %v4583 = vld [vmem:[#allocation3 + $0x47] sm:$0xff]
        %v4584 = vld [vmem:[#allocation3 + $0x4f] sm:$0xff]
        %v4585 = vld [vmem:[#allocation3 + $0x57] sm:$0xff]
        %v4586 = vld [vmem:[#allocation3 + $0x5f] sm:$0xff]
        %v4587 = vld [vmem:[#allocation3 + $0x67] sm:$0xff]
        %v4588 = vld [vmem:[#allocation3 + $0x6f] sm:$0xff]
        %v4589 = vld [vmem:[#allocation3 + $0x77] sm:$0xff]
        %v4590 = vld [vmem:[#allocation3 + $0x7f] sm:$0xff]
        %v4591 = vld [vmem:[#allocation3 + $0x87] sm:$0xff]
        %v4592 = vld [vmem:[#allocation3 + $0x8f] sm:$0xff]
        %v4593 = vld [vmem:[#allocation3 + $0x97] sm:$0xff]
        %v4594 = vld [vmem:[#allocation3 + $0x9f] sm:$0xff]
        %v4595 = vld [vmem:[#allocation3 + $0xa7] sm:$0xff]
        %v4596 = vld [vmem:[#allocation3 + $0xaf] sm:$0xff]
        %v4597 = vld [vmem:[#allocation3 + $0xb7] sm:$0xff]
        %v4598 = vld [vmem:[#allocation3 + $0xbf] sm:$0x1f]
        %v4599 = vmax.f32 %v4553, %v4576
        %v4600 = vmax.f32 %v4554, %v4577
        %v4601 = vmax.f32 %v4555, %v4578
        %v4602 = vmax.f32 %v4556, %v4579
        %v4603 = vmax.f32 %v4557, %v4580
        %v4604 = vmax.f32 %v4558, %v4581
        %v4605 = vmax.f32 %v4559, %v4582
        %v4606 = vmax.f32 %v4560, %v4583
        %v4607 = vmax.f32 %v4561, %v4584
        %v4608 = vmax.f32 %v4562, %v4585
        %v4609 = vmax.f32 %v4563, %v4586
        %v4610 = vmax.f32 %v4564, %v4587
        %v4611 = vmax.f32 %v4565, %v4588
        %v4612 = vmax.f32 %v4566, %v4589
        %v4613 = vmax.f32 %v4567, %v4590
        %v4614 = vmax.f32 %v4568, %v4591
        %v4615 = vmax.f32 %v4569, %v4592
        %v4616 = vmax.f32 %v4570, %v4593
        %v4617 = vmax.f32 %v4571, %v4594
        %v4618 = vmax.f32 %v4572, %v4595
        %v4619 = vmax.f32 %v4573, %v4596
        %v4620 = vmax.f32 %v4574, %v4597
        %v4621 = vmax.f32 %v4575, %v4598
        %v4622 = vld [vmem:[#allocation3 + $0xc4] sm:$0xff]
        %v4623 = vld [vmem:[#allocation3 + $0xcc] sm:$0xff]
        %v4624 = vld [vmem:[#allocation3 + $0xd4] sm:$0xff]
        %v4625 = vld [vmem:[#allocation3 + $0xdc] sm:$0xff]
        %v4626 = vld [vmem:[#allocation3 + $0xe4] sm:$0xff]
        %v4627 = vld [vmem:[#allocation3 + $0xec] sm:$0xff]
        %v4628 = vld [vmem:[#allocation3 + $0xf4] sm:$0xff]
        %v4629 = vld [vmem:[#allocation3 + $0xfc] sm:$0xff]
        %v4630 = vld [vmem:[#allocation3 + $0x104] sm:$0xff]
        %v4631 = vld [vmem:[#allocation3 + $0x10c] sm:$0xff]
        %v4632 = vld [vmem:[#allocation3 + $0x114] sm:$0xff]
        %v4633 = vld [vmem:[#allocation3 + $0x11c] sm:$0xff]
        %v4634 = vld [vmem:[#allocation3 + $0x124] sm:$0xff]
        %v4635 = vld [vmem:[#allocation3 + $0x12c] sm:$0xff]
        %v4636 = vld [vmem:[#allocation3 + $0x134] sm:$0xff]
        %v4637 = vld [vmem:[#allocation3 + $0x13c] sm:$0xff]
        %v4638 = vld [vmem:[#allocation3 + $0x144] sm:$0xff]
        %v4639 = vld [vmem:[#allocation3 + $0x14c] sm:$0xff]
        %v4640 = vld [vmem:[#allocation3 + $0x154] sm:$0xff]
        %v4641 = vld [vmem:[#allocation3 + $0x15c] sm:$0xff]
        %v4642 = vld [vmem:[#allocation3 + $0x164] sm:$0xff]
        %v4643 = vld [vmem:[#allocation3 + $0x16c] sm:$0xff]
        %v4644 = vld [vmem:[#allocation3 + $0x174] sm:$0x1f]
        %v4645 = vmax.f32 %v4599, %v4622
        %v4646 = vmax.f32 %v4600, %v4623
        %v4647 = vmax.f32 %v4601, %v4624
        %v4648 = vmax.f32 %v4602, %v4625
        %v4649 = vmax.f32 %v4603, %v4626
        %v4650 = vmax.f32 %v4604, %v4627
        %v4651 = vmax.f32 %v4605, %v4628
        %v4652 = vmax.f32 %v4606, %v4629
        %v4653 = vmax.f32 %v4607, %v4630
        %v4654 = vmax.f32 %v4608, %v4631
        %v4655 = vmax.f32 %v4609, %v4632
        %v4656 = vmax.f32 %v4610, %v4633
        %v4657 = vmax.f32 %v4611, %v4634
        %v4658 = vmax.f32 %v4612, %v4635
        %v4659 = vmax.f32 %v4613, %v4636
        %v4660 = vmax.f32 %v4614, %v4637
        %v4661 = vmax.f32 %v4615, %v4638
        %v4662 = vmax.f32 %v4616, %v4639
        %v4663 = vmax.f32 %v4617, %v4640
        %v4664 = vmax.f32 %v4618, %v4641
        %v4665 = vmax.f32 %v4619, %v4642
        %v4666 = vmax.f32 %v4620, %v4643
        %v4667 = vmax.f32 %v4621, %v4644
        %v4668 = vld [vmem:[#allocation3 + $0xc5] sm:$0xff]
        %v4669 = vld [vmem:[#allocation3 + $0xcd] sm:$0xff]
        %v4670 = vld [vmem:[#allocation3 + $0xd5] sm:$0xff]
        %v4671 = vld [vmem:[#allocation3 + $0xdd] sm:$0xff]
        %v4672 = vld [vmem:[#allocation3 + $0xe5] sm:$0xff]
        %v4673 = vld [vmem:[#allocation3 + $0xed] sm:$0xff]
        %v4674 = vld [vmem:[#allocation3 + $0xf5] sm:$0xff]
        %v4675 = vld [vmem:[#allocation3 + $0xfd] sm:$0xff]
        %v4676 = vld [vmem:[#allocation3 + $0x105] sm:$0xff]
        %v4677 = vld [vmem:[#allocation3 + $0x10d] sm:$0xff]
        %v4678 = vld [vmem:[#allocation3 + $0x115] sm:$0xff]
        %v4679 = vld [vmem:[#allocation3 + $0x11d] sm:$0xff]
        %v4680 = vld [vmem:[#allocation3 + $0x125] sm:$0xff]
        %v4681 = vld [vmem:[#allocation3 + $0x12d] sm:$0xff]
        %v4682 = vld [vmem:[#allocation3 + $0x135] sm:$0xff]
        %v4683 = vld [vmem:[#allocation3 + $0x13d] sm:$0xff]
        %v4684 = vld [vmem:[#allocation3 + $0x145] sm:$0xff]
        %v4685 = vld [vmem:[#allocation3 + $0x14d] sm:$0xff]
        %v4686 = vld [vmem:[#allocation3 + $0x155] sm:$0xff]
        %v4687 = vld [vmem:[#allocation3 + $0x15d] sm:$0xff]
        %v4688 = vld [vmem:[#allocation3 + $0x165] sm:$0xff]
        %v4689 = vld [vmem:[#allocation3 + $0x16d] sm:$0xff]
        %v4690 = vld [vmem:[#allocation3 + $0x175] sm:$0x1f]
        %v4691 = vmax.f32 %v4645, %v4668
        %v4692 = vmax.f32 %v4646, %v4669
        %v4693 = vmax.f32 %v4647, %v4670
        %v4694 = vmax.f32 %v4648, %v4671
        %v4695 = vmax.f32 %v4649, %v4672
        %v4696 = vmax.f32 %v4650, %v4673
        %v4697 = vmax.f32 %v4651, %v4674
        %v4698 = vmax.f32 %v4652, %v4675
        %v4699 = vmax.f32 %v4653, %v4676
        %v4700 = vmax.f32 %v4654, %v4677
        %v4701 = vmax.f32 %v4655, %v4678
        %v4702 = vmax.f32 %v4656, %v4679
        %v4703 = vmax.f32 %v4657, %v4680
        %v4704 = vmax.f32 %v4658, %v4681
        %v4705 = vmax.f32 %v4659, %v4682
        %v4706 = vmax.f32 %v4660, %v4683
        %v4707 = vmax.f32 %v4661, %v4684
        %v4708 = vmax.f32 %v4662, %v4685
        %v4709 = vmax.f32 %v4663, %v4686
        %v4710 = vmax.f32 %v4664, %v4687
        %v4711 = vmax.f32 %v4665, %v4688
        %v4712 = vmax.f32 %v4666, %v4689
        %v4713 = vmax.f32 %v4667, %v4690
        %v4714 = vld [vmem:[#allocation3 + $0xd2] sm:$0xff]
        %v4715 = vld [vmem:[#allocation3 + $0xda] sm:$0xff]
        %v4716 = vld [vmem:[#allocation3 + $0xe2] sm:$0xff]
        %v4717 = vld [vmem:[#allocation3 + $0xea] sm:$0xff]
        %v4718 = vld [vmem:[#allocation3 + $0xf2] sm:$0xff]
        %v4719 = vld [vmem:[#allocation3 + $0xfa] sm:$0xff]
        %v4720 = vld [vmem:[#allocation3 + $0x102] sm:$0xff]
        %v4721 = vld [vmem:[#allocation3 + $0x10a] sm:$0xff]
        %v4722 = vld [vmem:[#allocation3 + $0x112] sm:$0xff]
        %v4723 = vld [vmem:[#allocation3 + $0x11a] sm:$0xff]
        %v4724 = vld [vmem:[#allocation3 + $0x122] sm:$0xff]
        %v4725 = vld [vmem:[#allocation3 + $0x12a] sm:$0xff]
        %v4726 = vld [vmem:[#allocation3 + $0x132] sm:$0xff]
        %v4727 = vld [vmem:[#allocation3 + $0x13a] sm:$0xff]
        %v4728 = vld [vmem:[#allocation3 + $0x142] sm:$0xff]
        %v4729 = vld [vmem:[#allocation3 + $0x14a] sm:$0xff]
        %v4730 = vld [vmem:[#allocation3 + $0x152] sm:$0xff]
        %v4731 = vld [vmem:[#allocation3 + $0x15a] sm:$0xff]
        %v4732 = vld [vmem:[#allocation3 + $0x162] sm:$0xff]
        %v4733 = vld [vmem:[#allocation3 + $0x16a] sm:$0xff]
        %v4734 = vld [vmem:[#allocation3 + $0x172] sm:$0xff]
        %v4735 = vld [vmem:[#allocation3 + $0x17a] sm:$0xff]
        %v4736 = vld [vmem:[#allocation3 + $0x182] sm:$0x1f]
        %v4737 = vmax.f32 %v4691, %v4714
        %v4738 = vmax.f32 %v4692, %v4715
        %v4739 = vmax.f32 %v4693, %v4716
        %v4740 = vmax.f32 %v4694, %v4717
        %v4741 = vmax.f32 %v4695, %v4718
        %v4742 = vmax.f32 %v4696, %v4719
        %v4743 = vmax.f32 %v4697, %v4720
        %v4744 = vmax.f32 %v4698, %v4721
        %v4745 = vmax.f32 %v4699, %v4722
        %v4746 = vmax.f32 %v4700, %v4723
        %v4747 = vmax.f32 %v4701, %v4724
        %v4748 = vmax.f32 %v4702, %v4725
        %v4749 = vmax.f32 %v4703, %v4726
        %v4750 = vmax.f32 %v4704, %v4727
        %v4751 = vmax.f32 %v4705, %v4728
        %v4752 = vmax.f32 %v4706, %v4729
        %v4753 = vmax.f32 %v4707, %v4730
        %v4754 = vmax.f32 %v4708, %v4731
        %v4755 = vmax.f32 %v4709, %v4732
        %v4756 = vmax.f32 %v4710, %v4733
        %v4757 = vmax.f32 %v4711, %v4734
        %v4758 = vmax.f32 %v4712, %v4735
        %v4759 = vmax.f32 %v4713, %v4736
        %v4760 = vld [vmem:[#allocation3 + $0xd3] sm:$0xff]
        %v4761 = vld [vmem:[#allocation3 + $0xdb] sm:$0xff]
        %v4762 = vld [vmem:[#allocation3 + $0xe3] sm:$0xff]
        %v4763 = vld [vmem:[#allocation3 + $0xeb] sm:$0xff]
        %v4764 = vld [vmem:[#allocation3 + $0xf3] sm:$0xff]
        %v4765 = vld [vmem:[#allocation3 + $0xfb] sm:$0xff]
        %v4766 = vld [vmem:[#allocation3 + $0x103] sm:$0xff]
        %v4767 = vld [vmem:[#allocation3 + $0x10b] sm:$0xff]
        %v4768 = vld [vmem:[#allocation3 + $0x113] sm:$0xff]
        %v4769 = vld [vmem:[#allocation3 + $0x11b] sm:$0xff]
        %v4770 = vld [vmem:[#allocation3 + $0x123] sm:$0xff]
        %v4771 = vld [vmem:[#allocation3 + $0x12b] sm:$0xff]
        %v4772 = vld [vmem:[#allocation3 + $0x133] sm:$0xff]
        %v4773 = vld [vmem:[#allocation3 + $0x13b] sm:$0xff]
        %v4774 = vld [vmem:[#allocation3 + $0x143] sm:$0xff]
        %v4775 = vld [vmem:[#allocation3 + $0x14b] sm:$0xff]
        %v4776 = vld [vmem:[#allocation3 + $0x153] sm:$0xff]
        %v4777 = vld [vmem:[#allocation3 + $0x15b] sm:$0xff]
        %v4778 = vld [vmem:[#allocation3 + $0x163] sm:$0xff]
        %v4779 = vld [vmem:[#allocation3 + $0x16b] sm:$0xff]
        %v4780 = vld [vmem:[#allocation3 + $0x173] sm:$0xff]
        %v4781 = vld [vmem:[#allocation3 + $0x17b] sm:$0xff]
        %v4782 = vld [vmem:[#allocation3 + $0x183] sm:$0x1f]
        %v4783 = vmax.f32 %v4737, %v4760
        %v4784 = vmax.f32 %v4738, %v4761
        %v4785 = vmax.f32 %v4739, %v4762
        %v4786 = vmax.f32 %v4740, %v4763
        %v4787 = vmax.f32 %v4741, %v4764
        %v4788 = vmax.f32 %v4742, %v4765
        %v4789 = vmax.f32 %v4743, %v4766
        %v4790 = vmax.f32 %v4744, %v4767
        %v4791 = vmax.f32 %v4745, %v4768
        %v4792 = vmax.f32 %v4746, %v4769
        %v4793 = vmax.f32 %v4747, %v4770
        %v4794 = vmax.f32 %v4748, %v4771
        %v4795 = vmax.f32 %v4749, %v4772
        %v4796 = vmax.f32 %v4750, %v4773
        %v4797 = vmax.f32 %v4751, %v4774
        %v4798 = vmax.f32 %v4752, %v4775
        %v4799 = vmax.f32 %v4753, %v4776
        %v4800 = vmax.f32 %v4754, %v4777
        %v4801 = vmax.f32 %v4755, %v4778
        %v4802 = vmax.f32 %v4756, %v4779
        %v4803 = vmax.f32 %v4757, %v4780
        %v4804 = vmax.f32 %v4758, %v4781
        %v4805 = vmax.f32 %v4759, %v4782
        %v4806 = vld [vmem:[#allocation3 + $0x188] sm:$0xff]
        %v4807 = vld [vmem:[#allocation3 + $0x190] sm:$0xff]
        %v4808 = vld [vmem:[#allocation3 + $0x198] sm:$0xff]
        %v4809 = vld [vmem:[#allocation3 + $0x1a0] sm:$0xff]
        %v4810 = vld [vmem:[#allocation3 + $0x1a8] sm:$0xff]
        %v4811 = vld [vmem:[#allocation3 + $0x1b0] sm:$0xff]
        %v4812 = vld [vmem:[#allocation3 + $0x1b8] sm:$0xff]
        %v4813 = vld [vmem:[#allocation3 + $0x1c0] sm:$0xff]
        %v4814 = vld [vmem:[#allocation3 + $0x1c8] sm:$0xff]
        %v4815 = vld [vmem:[#allocation3 + $0x1d0] sm:$0xff]
        %v4816 = vld [vmem:[#allocation3 + $0x1d8] sm:$0xff]
        %v4817 = vld [vmem:[#allocation3 + $0x1e0] sm:$0xff]
        %v4818 = vld [vmem:[#allocation3 + $0x1e8] sm:$0xff]
        %v4819 = vld [vmem:[#allocation3 + $0x1f0] sm:$0xff]
        %v4820 = vld [vmem:[#allocation3 + $0x1f8] sm:$0xff]
        %v4821 = vld [vmem:[#allocation3 + $0x200] sm:$0xff]
        %v4822 = vld [vmem:[#allocation3 + $0x208] sm:$0xff]
        %v4823 = vld [vmem:[#allocation3 + $0x210] sm:$0xff]
        %v4824 = vld [vmem:[#allocation3 + $0x218] sm:$0xff]
        %v4825 = vld [vmem:[#allocation3 + $0x220] sm:$0xff]
        %v4826 = vld [vmem:[#allocation3 + $0x228] sm:$0xff]
        %v4827 = vld [vmem:[#allocation3 + $0x230] sm:$0xff]
        %v4828 = vld [vmem:[#allocation3 + $0x238] sm:$0x1f]
        %v4829 = vmax.f32 %v4783, %v4806
        %v4830 = vmax.f32 %v4784, %v4807
        %v4831 = vmax.f32 %v4785, %v4808
        %v4832 = vmax.f32 %v4786, %v4809
        %v4833 = vmax.f32 %v4787, %v4810
        %v4834 = vmax.f32 %v4788, %v4811
        %v4835 = vmax.f32 %v4789, %v4812
        %v4836 = vmax.f32 %v4790, %v4813
        %v4837 = vmax.f32 %v4791, %v4814
        %v4838 = vmax.f32 %v4792, %v4815
        %v4839 = vmax.f32 %v4793, %v4816
        %v4840 = vmax.f32 %v4794, %v4817
        %v4841 = vmax.f32 %v4795, %v4818
        %v4842 = vmax.f32 %v4796, %v4819
        %v4843 = vmax.f32 %v4797, %v4820
        %v4844 = vmax.f32 %v4798, %v4821
        %v4845 = vmax.f32 %v4799, %v4822
        %v4846 = vmax.f32 %v4800, %v4823
        %v4847 = vmax.f32 %v4801, %v4824
        %v4848 = vmax.f32 %v4802, %v4825
        %v4849 = vmax.f32 %v4803, %v4826
        %v4850 = vmax.f32 %v4804, %v4827
        %v4851 = vmax.f32 %v4805, %v4828
        %v4852 = vld [vmem:[#allocation3 + $0x189] sm:$0xff]
        %v4853 = vld [vmem:[#allocation3 + $0x191] sm:$0xff]
        %v4854 = vld [vmem:[#allocation3 + $0x199] sm:$0xff]
        %v4855 = vld [vmem:[#allocation3 + $0x1a1] sm:$0xff]
        %v4856 = vld [vmem:[#allocation3 + $0x1a9] sm:$0xff]
        %v4857 = vld [vmem:[#allocation3 + $0x1b1] sm:$0xff]
        %v4858 = vld [vmem:[#allocation3 + $0x1b9] sm:$0xff]
        %v4859 = vld [vmem:[#allocation3 + $0x1c1] sm:$0xff]
        %v4860 = vld [vmem:[#allocation3 + $0x1c9] sm:$0xff]
        %v4861 = vld [vmem:[#allocation3 + $0x1d1] sm:$0xff]
        %v4862 = vld [vmem:[#allocation3 + $0x1d9] sm:$0xff]
        %v4863 = vld [vmem:[#allocation3 + $0x1e1] sm:$0xff]
        %v4864 = vld [vmem:[#allocation3 + $0x1e9] sm:$0xff]
        %v4865 = vld [vmem:[#allocation3 + $0x1f1] sm:$0xff]
        %v4866 = vld [vmem:[#allocation3 + $0x1f9] sm:$0xff]
        %v4867 = vld [vmem:[#allocation3 + $0x201] sm:$0xff]
        %v4868 = vld [vmem:[#allocation3 + $0x209] sm:$0xff]
        %v4869 = vld [vmem:[#allocation3 + $0x211] sm:$0xff]
        %v4870 = vld [vmem:[#allocation3 + $0x219] sm:$0xff]
        %v4871 = vld [vmem:[#allocation3 + $0x221] sm:$0xff]
        %v4872 = vld [vmem:[#allocation3 + $0x229] sm:$0xff]
        %v4873 = vld [vmem:[#allocation3 + $0x231] sm:$0xff]
        %v4874 = vld [vmem:[#allocation3 + $0x239] sm:$0x1f]
        %v4875 = vmax.f32 %v4829, %v4852
        %v4876 = vmax.f32 %v4830, %v4853
        %v4877 = vmax.f32 %v4831, %v4854
        %v4878 = vmax.f32 %v4832, %v4855
        %v4879 = vmax.f32 %v4833, %v4856
        %v4880 = vmax.f32 %v4834, %v4857
        %v4881 = vmax.f32 %v4835, %v4858
        %v4882 = vmax.f32 %v4836, %v4859
        %v4883 = vmax.f32 %v4837, %v4860
        %v4884 = vmax.f32 %v4838, %v4861
        %v4885 = vmax.f32 %v4839, %v4862
        %v4886 = vmax.f32 %v4840, %v4863
        %v4887 = vmax.f32 %v4841, %v4864
        %v4888 = vmax.f32 %v4842, %v4865
        %v4889 = vmax.f32 %v4843, %v4866
        %v4890 = vmax.f32 %v4844, %v4867
        %v4891 = vmax.f32 %v4845, %v4868
        %v4892 = vmax.f32 %v4846, %v4869
        %v4893 = vmax.f32 %v4847, %v4870
        %v4894 = vmax.f32 %v4848, %v4871
        %v4895 = vmax.f32 %v4849, %v4872
        %v4896 = vmax.f32 %v4850, %v4873
        %v4897 = vmax.f32 %v4851, %v4874
        %v4898 = vld [vmem:[#allocation3 + $0x196] sm:$0xff]
        %v4899 = vld [vmem:[#allocation3 + $0x19e] sm:$0xff]
        %v4900 = vld [vmem:[#allocation3 + $0x1a6] sm:$0xff]
        %v4901 = vld [vmem:[#allocation3 + $0x1ae] sm:$0xff]
        %v4902 = vld [vmem:[#allocation3 + $0x1b6] sm:$0xff]
        %v4903 = vld [vmem:[#allocation3 + $0x1be] sm:$0xff]
        %v4904 = vld [vmem:[#allocation3 + $0x1c6] sm:$0xff]
        %v4905 = vld [vmem:[#allocation3 + $0x1ce] sm:$0xff]
        %v4906 = vld [vmem:[#allocation3 + $0x1d6] sm:$0xff]
        %v4907 = vld [vmem:[#allocation3 + $0x1de] sm:$0xff]
        %v4908 = vld [vmem:[#allocation3 + $0x1e6] sm:$0xff]
        %v4909 = vld [vmem:[#allocation3 + $0x1ee] sm:$0xff]
        %v4910 = vld [vmem:[#allocation3 + $0x1f6] sm:$0xff]
        %v4911 = vld [vmem:[#allocation3 + $0x1fe] sm:$0xff]
        %v4912 = vld [vmem:[#allocation3 + $0x206] sm:$0xff]
        %v4913 = vld [vmem:[#allocation3 + $0x20e] sm:$0xff]
        %v4914 = vld [vmem:[#allocation3 + $0x216] sm:$0xff]
        %v4915 = vld [vmem:[#allocation3 + $0x21e] sm:$0xff]
        %v4916 = vld [vmem:[#allocation3 + $0x226] sm:$0xff]
        %v4917 = vld [vmem:[#allocation3 + $0x22e] sm:$0xff]
        %v4918 = vld [vmem:[#allocation3 + $0x236] sm:$0xff]
        %v4919 = vld [vmem:[#allocation3 + $0x23e] sm:$0xff]
        %v4920 = vld [vmem:[#allocation3 + $0x246] sm:$0x1f]
        %v4921 = vmax.f32 %v4875, %v4898
        %v4922 = vmax.f32 %v4876, %v4899
        %v4923 = vmax.f32 %v4877, %v4900
        %v4924 = vmax.f32 %v4878, %v4901
        %v4925 = vmax.f32 %v4879, %v4902
        %v4926 = vmax.f32 %v4880, %v4903
        %v4927 = vmax.f32 %v4881, %v4904
        %v4928 = vmax.f32 %v4882, %v4905
        %v4929 = vmax.f32 %v4883, %v4906
        %v4930 = vmax.f32 %v4884, %v4907
        %v4931 = vmax.f32 %v4885, %v4908
        %v4932 = vmax.f32 %v4886, %v4909
        %v4933 = vmax.f32 %v4887, %v4910
        %v4934 = vmax.f32 %v4888, %v4911
        %v4935 = vmax.f32 %v4889, %v4912
        %v4936 = vmax.f32 %v4890, %v4913
        %v4937 = vmax.f32 %v4891, %v4914
        %v4938 = vmax.f32 %v4892, %v4915
        %v4939 = vmax.f32 %v4893, %v4916
        %v4940 = vmax.f32 %v4894, %v4917
        %v4941 = vmax.f32 %v4895, %v4918
        %v4942 = vmax.f32 %v4896, %v4919
        %v4943 = vmax.f32 %v4897, %v4920
        %v4944 = vld [vmem:[#allocation3 + $0x197] sm:$0xff]
        %v4945 = vld [vmem:[#allocation3 + $0x19f] sm:$0xff]
        %v4946 = vld [vmem:[#allocation3 + $0x1a7] sm:$0xff]
        %v4947 = vld [vmem:[#allocation3 + $0x1af] sm:$0xff]
        %v4948 = vld [vmem:[#allocation3 + $0x1b7] sm:$0xff]
        %v4949 = vld [vmem:[#allocation3 + $0x1bf] sm:$0xff]
        %v4950 = vld [vmem:[#allocation3 + $0x1c7] sm:$0xff]
        %v4951 = vld [vmem:[#allocation3 + $0x1cf] sm:$0xff]
        %v4952 = vld [vmem:[#allocation3 + $0x1d7] sm:$0xff]
        %v4953 = vld [vmem:[#allocation3 + $0x1df] sm:$0xff]
        %v4954 = vld [vmem:[#allocation3 + $0x1e7] sm:$0xff]
        %v4955 = vld [vmem:[#allocation3 + $0x1ef] sm:$0xff]
        %v4956 = vld [vmem:[#allocation3 + $0x1f7] sm:$0xff]
        %v4957 = vld [vmem:[#allocation3 + $0x1ff] sm:$0xff]
        %v4958 = vld [vmem:[#allocation3 + $0x207] sm:$0xff]
        %v4959 = vld [vmem:[#allocation3 + $0x20f] sm:$0xff]
        %v4960 = vld [vmem:[#allocation3 + $0x217] sm:$0xff]
        %v4961 = vld [vmem:[#allocation3 + $0x21f] sm:$0xff]
        %v4962 = vld [vmem:[#allocation3 + $0x227] sm:$0xff]
        %v4963 = vld [vmem:[#allocation3 + $0x22f] sm:$0xff]
        %v4964 = vld [vmem:[#allocation3 + $0x237] sm:$0xff]
        %v4965 = vld [vmem:[#allocation3 + $0x23f] sm:$0xff]
        %v4966 = vld [vmem:[#allocation3 + $0x247] sm:$0x1f]
        %v4967 = vmax.f32 %v4921, %v4944
        %v4968 = vmax.f32 %v4922, %v4945
        %v4969 = vmax.f32 %v4923, %v4946
        %v4970 = vmax.f32 %v4924, %v4947
        %v4971 = vmax.f32 %v4925, %v4948
        %v4972 = vmax.f32 %v4926, %v4949
        %v4973 = vmax.f32 %v4927, %v4950
        %v4974 = vmax.f32 %v4928, %v4951
        %v4975 = vmax.f32 %v4929, %v4952
        %v4976 = vmax.f32 %v4930, %v4953
        %v4977 = vmax.f32 %v4931, %v4954
        %v4978 = vmax.f32 %v4932, %v4955
        %v4979 = vmax.f32 %v4933, %v4956
        %v4980 = vmax.f32 %v4934, %v4957
        %v4981 = vmax.f32 %v4935, %v4958
        %v4982 = vmax.f32 %v4936, %v4959
        %v4983 = vmax.f32 %v4937, %v4960
        %v4984 = vmax.f32 %v4938, %v4961
        %v4985 = vmax.f32 %v4939, %v4962
        %v4986 = vmax.f32 %v4940, %v4963
        %v4987 = vmax.f32 %v4941, %v4964
        %v4988 = vmax.f32 %v4942, %v4965
        %v4989 = vmax.f32 %v4943, %v4966
        %v4990 = vld [vmem:[#allocation3 + $0x24c] sm:$0xff]
        %v4991 = vld [vmem:[#allocation3 + $0x254] sm:$0xff]
        %v4992 = vld [vmem:[#allocation3 + $0x25c] sm:$0xff]
        %v4993 = vld [vmem:[#allocation3 + $0x264] sm:$0xff]
        %v4994 = vld [vmem:[#allocation3 + $0x26c] sm:$0xff]
        %v4995 = vld [vmem:[#allocation3 + $0x274] sm:$0xff]
        %v4996 = vld [vmem:[#allocation3 + $0x27c] sm:$0xff]
        %v4997 = vld [vmem:[#allocation3 + $0x284] sm:$0xff]
        %v4998 = vld [vmem:[#allocation3 + $0x28c] sm:$0xff]
        %v4999 = vld [vmem:[#allocation3 + $0x294] sm:$0xff]
        %v5000 = vld [vmem:[#allocation3 + $0x29c] sm:$0xff]
        %v5001 = vld [vmem:[#allocation3 + $0x2a4] sm:$0xff]
        %v5002 = vld [vmem:[#allocation3 + $0x2ac] sm:$0xff]
        %v5003 = vld [vmem:[#allocation3 + $0x2b4] sm:$0xff]
        %v5004 = vld [vmem:[#allocation3 + $0x2bc] sm:$0xff]
        %v5005 = vld [vmem:[#allocation3 + $0x2c4] sm:$0xff]
        %v5006 = vld [vmem:[#allocation3 + $0x2cc] sm:$0xff]
        %v5007 = vld [vmem:[#allocation3 + $0x2d4] sm:$0xff]
        %v5008 = vld [vmem:[#allocation3 + $0x2dc] sm:$0xff]
        %v5009 = vld [vmem:[#allocation3 + $0x2e4] sm:$0xff]
        %v5010 = vld [vmem:[#allocation3 + $0x2ec] sm:$0xff]
        %v5011 = vld [vmem:[#allocation3 + $0x2f4] sm:$0xff]
        %v5012 = vld [vmem:[#allocation3 + $0x2fc] sm:$0x1f]
        %v5013 = vmax.f32 %v4967, %v4990
        %v5014 = vmax.f32 %v4968, %v4991
        %v5015 = vmax.f32 %v4969, %v4992
        %v5016 = vmax.f32 %v4970, %v4993
        %v5017 = vmax.f32 %v4971, %v4994
        %v5018 = vmax.f32 %v4972, %v4995
        %v5019 = vmax.f32 %v4973, %v4996
        %v5020 = vmax.f32 %v4974, %v4997
        %v5021 = vmax.f32 %v4975, %v4998
        %v5022 = vmax.f32 %v4976, %v4999
        %v5023 = vmax.f32 %v4977, %v5000
        %v5024 = vmax.f32 %v4978, %v5001
        %v5025 = vmax.f32 %v4979, %v5002
        %v5026 = vmax.f32 %v4980, %v5003
        %v5027 = vmax.f32 %v4981, %v5004
        %v5028 = vmax.f32 %v4982, %v5005
        %v5029 = vmax.f32 %v4983, %v5006
        %v5030 = vmax.f32 %v4984, %v5007
        %v5031 = vmax.f32 %v4985, %v5008
        %v5032 = vmax.f32 %v4986, %v5009
        %v5033 = vmax.f32 %v4987, %v5010
        %v5034 = vmax.f32 %v4988, %v5011
        %v5035 = vmax.f32 %v4989, %v5012
        %v5036 = vld [vmem:[#allocation3 + $0x24d] sm:$0xff]
        %v5037 = vld [vmem:[#allocation3 + $0x255] sm:$0xff]
        %v5038 = vld [vmem:[#allocation3 + $0x25d] sm:$0xff]
        %v5039 = vld [vmem:[#allocation3 + $0x265] sm:$0xff]
        %v5040 = vld [vmem:[#allocation3 + $0x26d] sm:$0xff]
        %v5041 = vld [vmem:[#allocation3 + $0x275] sm:$0xff]
        %v5042 = vld [vmem:[#allocation3 + $0x27d] sm:$0xff]
        %v5043 = vld [vmem:[#allocation3 + $0x285] sm:$0xff]
        %v5044 = vld [vmem:[#allocation3 + $0x28d] sm:$0xff]
        %v5045 = vld [vmem:[#allocation3 + $0x295] sm:$0xff]
        %v5046 = vld [vmem:[#allocation3 + $0x29d] sm:$0xff]
        %v5047 = vld [vmem:[#allocation3 + $0x2a5] sm:$0xff]
        %v5048 = vld [vmem:[#allocation3 + $0x2ad] sm:$0xff]
        %v5049 = vld [vmem:[#allocation3 + $0x2b5] sm:$0xff]
        %v5050 = vld [vmem:[#allocation3 + $0x2bd] sm:$0xff]
        %v5051 = vld [vmem:[#allocation3 + $0x2c5] sm:$0xff]
        %v5052 = vld [vmem:[#allocation3 + $0x2cd] sm:$0xff]
        %v5053 = vld [vmem:[#allocation3 + $0x2d5] sm:$0xff]
        %v5054 = vld [vmem:[#allocation3 + $0x2dd] sm:$0xff]
        %v5055 = vld [vmem:[#allocation3 + $0x2e5] sm:$0xff]
        %v5056 = vld [vmem:[#allocation3 + $0x2ed] sm:$0xff]
        %v5057 = vld [vmem:[#allocation3 + $0x2f5] sm:$0xff]
        %v5058 = vld [vmem:[#allocation3 + $0x2fd] sm:$0x1f]
        %v5059 = vmax.f32 %v5013, %v5036
        %v5060 = vmax.f32 %v5014, %v5037
        %v5061 = vmax.f32 %v5015, %v5038
        %v5062 = vmax.f32 %v5016, %v5039
        %v5063 = vmax.f32 %v5017, %v5040
        %v5064 = vmax.f32 %v5018, %v5041
        %v5065 = vmax.f32 %v5019, %v5042
        %v5066 = vmax.f32 %v5020, %v5043
        %v5067 = vmax.f32 %v5021, %v5044
        %v5068 = vmax.f32 %v5022, %v5045
        %v5069 = vmax.f32 %v5023, %v5046
        %v5070 = vmax.f32 %v5024, %v5047
        %v5071 = vmax.f32 %v5025, %v5048
        %v5072 = vmax.f32 %v5026, %v5049
        %v5073 = vmax.f32 %v5027, %v5050
        %v5074 = vmax.f32 %v5028, %v5051
        %v5075 = vmax.f32 %v5029, %v5052
        %v5076 = vmax.f32 %v5030, %v5053
        %v5077 = vmax.f32 %v5031, %v5054
        %v5078 = vmax.f32 %v5032, %v5055
        %v5079 = vmax.f32 %v5033, %v5056
        %v5080 = vmax.f32 %v5034, %v5057
        %v5081 = vmax.f32 %v5035, %v5058
        %v5082 = vld [vmem:[#allocation3 + $0x25a] sm:$0xff]
        %v5083 = vld [vmem:[#allocation3 + $0x262] sm:$0xff]
        %v5084 = vld [vmem:[#allocation3 + $0x26a] sm:$0xff]
        %v5085 = vld [vmem:[#allocation3 + $0x272] sm:$0xff]
        %v5086 = vld [vmem:[#allocation3 + $0x27a] sm:$0xff]
        %v5087 = vld [vmem:[#allocation3 + $0x282] sm:$0xff]
        %v5088 = vld [vmem:[#allocation3 + $0x28a] sm:$0xff]
        %v5089 = vld [vmem:[#allocation3 + $0x292] sm:$0xff]
        %v5090 = vld [vmem:[#allocation3 + $0x29a] sm:$0xff]
        %v5091 = vld [vmem:[#allocation3 + $0x2a2] sm:$0xff]
        %v5092 = vld [vmem:[#allocation3 + $0x2aa] sm:$0xff]
        %v5093 = vld [vmem:[#allocation3 + $0x2b2] sm:$0xff]
        %v5094 = vld [vmem:[#allocation3 + $0x2ba] sm:$0xff]
        %v5095 = vld [vmem:[#allocation3 + $0x2c2] sm:$0xff]
        %v5096 = vld [vmem:[#allocation3 + $0x2ca] sm:$0xff]
        %v5097 = vld [vmem:[#allocation3 + $0x2d2] sm:$0xff]
        %v5098 = vld [vmem:[#allocation3 + $0x2da] sm:$0xff]
        %v5099 = vld [vmem:[#allocation3 + $0x2e2] sm:$0xff]
        %v5100 = vld [vmem:[#allocation3 + $0x2ea] sm:$0xff]
        %v5101 = vld [vmem:[#allocation3 + $0x2f2] sm:$0xff]
        %v5102 = vld [vmem:[#allocation3 + $0x2fa] sm:$0xff]
        %v5103 = vld [vmem:[#allocation3 + $0x302] sm:$0xff]
        %v5104 = vld [vmem:[#allocation3 + $0x30a] sm:$0x1f]
        %v5105 = vmax.f32 %v5059, %v5082
        %v5106 = vmax.f32 %v5060, %v5083
        %v5107 = vmax.f32 %v5061, %v5084
        %v5108 = vmax.f32 %v5062, %v5085
        %v5109 = vmax.f32 %v5063, %v5086
        %v5110 = vmax.f32 %v5064, %v5087
        %v5111 = vmax.f32 %v5065, %v5088
        %v5112 = vmax.f32 %v5066, %v5089
        %v5113 = vmax.f32 %v5067, %v5090
        %v5114 = vmax.f32 %v5068, %v5091
        %v5115 = vmax.f32 %v5069, %v5092
        %v5116 = vmax.f32 %v5070, %v5093
        %v5117 = vmax.f32 %v5071, %v5094
        %v5118 = vmax.f32 %v5072, %v5095
        %v5119 = vmax.f32 %v5073, %v5096
        %v5120 = vmax.f32 %v5074, %v5097
        %v5121 = vmax.f32 %v5075, %v5098
        %v5122 = vmax.f32 %v5076, %v5099
        %v5123 = vmax.f32 %v5077, %v5100
        %v5124 = vmax.f32 %v5078, %v5101
        %v5125 = vmax.f32 %v5079, %v5102
        %v5126 = vmax.f32 %v5080, %v5103
        %v5127 = vmax.f32 %v5081, %v5104
        %v5128 = vld [vmem:[#allocation3 + $0x25b] sm:$0xff]
        %v5129 = vld [vmem:[#allocation3 + $0x263] sm:$0xff]
        %v5130 = vld [vmem:[#allocation3 + $0x26b] sm:$0xff]
        %v5131 = vld [vmem:[#allocation3 + $0x273] sm:$0xff]
        %v5132 = vld [vmem:[#allocation3 + $0x27b] sm:$0xff]
        %v5133 = vld [vmem:[#allocation3 + $0x283] sm:$0xff]
        %v5134 = vld [vmem:[#allocation3 + $0x28b] sm:$0xff]
        %v5135 = vld [vmem:[#allocation3 + $0x293] sm:$0xff]
        %v5136 = vld [vmem:[#allocation3 + $0x29b] sm:$0xff]
        %v5137 = vld [vmem:[#allocation3 + $0x2a3] sm:$0xff]
        %v5138 = vld [vmem:[#allocation3 + $0x2ab] sm:$0xff]
        %v5139 = vld [vmem:[#allocation3 + $0x2b3] sm:$0xff]
        %v5140 = vld [vmem:[#allocation3 + $0x2bb] sm:$0xff]
        %v5141 = vld [vmem:[#allocation3 + $0x2c3] sm:$0xff]
        %v5142 = vld [vmem:[#allocation3 + $0x2cb] sm:$0xff]
        %v5143 = vld [vmem:[#allocation3 + $0x2d3] sm:$0xff]
        %v5144 = vld [vmem:[#allocation3 + $0x2db] sm:$0xff]
        %v5145 = vld [vmem:[#allocation3 + $0x2e3] sm:$0xff]
        %v5146 = vld [vmem:[#allocation3 + $0x2eb] sm:$0xff]
        %v5147 = vld [vmem:[#allocation3 + $0x2f3] sm:$0xff]
        %v5148 = vld [vmem:[#allocation3 + $0x2fb] sm:$0xff]
        %v5149 = vld [vmem:[#allocation3 + $0x303] sm:$0xff]
        %v5150 = vld [vmem:[#allocation3 + $0x30b] sm:$0x1f]
        %v5151 = vmax.f32 %v5105, %v5128
        %v5152 = vmax.f32 %v5106, %v5129
        %v5153 = vmax.f32 %v5107, %v5130
        %v5154 = vmax.f32 %v5108, %v5131
        %v5155 = vmax.f32 %v5109, %v5132
        %v5156 = vmax.f32 %v5110, %v5133
        %v5157 = vmax.f32 %v5111, %v5134
        %v5158 = vmax.f32 %v5112, %v5135
        %v5159 = vmax.f32 %v5113, %v5136
        %v5160 = vmax.f32 %v5114, %v5137
        %v5161 = vmax.f32 %v5115, %v5138
        %v5162 = vmax.f32 %v5116, %v5139
        %v5163 = vmax.f32 %v5117, %v5140
        %v5164 = vmax.f32 %v5118, %v5141
        %v5165 = vmax.f32 %v5119, %v5142
        %v5166 = vmax.f32 %v5120, %v5143
        %v5167 = vmax.f32 %v5121, %v5144
        %v5168 = vmax.f32 %v5122, %v5145
        %v5169 = vmax.f32 %v5123, %v5146
        %v5170 = vmax.f32 %v5124, %v5147
        %v5171 = vmax.f32 %v5125, %v5148
        %v5172 = vmax.f32 %v5126, %v5149
        %v5173 = vmax.f32 %v5127, %v5150
        %v5174 = vld [vmem:[%s5] sm:$0xff]
        %v5175 = vld [vmem:[%s5 + $0x8] sm:$0xff]
        %v5176 = vld [vmem:[%s5 + $0x10] sm:$0xff]
        %v5177 = vld [vmem:[%s5 + $0x18] sm:$0xff]
        %v5178 = vld [vmem:[%s5 + $0x20] sm:$0xff]
        %v5179 = vld [vmem:[%s5 + $0x28] sm:$0xff]
        %v5180 = vld [vmem:[%s5 + $0x30] sm:$0xff]
        %v5181 = vld [vmem:[%s5 + $0x38] sm:$0xff]
        %v5182 = vld [vmem:[%s5 + $0x40] sm:$0xff]
        %v5183 = vld [vmem:[%s5 + $0x48] sm:$0xff]
        %v5184 = vld [vmem:[%s5 + $0x50] sm:$0xff]
        %v5185 = vld [vmem:[%s5 + $0x58] sm:$0xff]
        %v5186 = vld [vmem:[%s5 + $0x60] sm:$0xff]
        %v5187 = vld [vmem:[%s5 + $0x68] sm:$0xff]
        %v5188 = vld [vmem:[%s5 + $0x70] sm:$0xff]
        %v5189 = vld [vmem:[%s5 + $0x78] sm:$0xff]
        %v5190 = vld [vmem:[%s5 + $0x80] sm:$0xff]
        %v5191 = vld [vmem:[%s5 + $0x88] sm:$0xff]
        %v5192 = vld [vmem:[%s5 + $0x90] sm:$0xff]
        %v5193 = vld [vmem:[%s5 + $0x98] sm:$0xff]
        %v5194 = vld [vmem:[%s5 + $0xa0] sm:$0xff]
        %v5195 = vld [vmem:[%s5 + $0xa8] sm:$0xff]
        %v5196 = vld [vmem:[%s5 + $0xb0] sm:$0x1f]
        %v5197 = vmul.f32 %v5151, %v5174
        %v5198 = vmul.f32 %v5152, %v5175
        %v5199 = vmul.f32 %v5153, %v5176
        %v5200 = vmul.f32 %v5154, %v5177
        %v5201 = vmul.f32 %v5155, %v5178
        %v5202 = vmul.f32 %v5156, %v5179
        %v5203 = vmul.f32 %v5157, %v5180
        %v5204 = vmul.f32 %v5158, %v5181
        %v5205 = vmul.f32 %v5159, %v5182
        %v5206 = vmul.f32 %v5160, %v5183
        %v5207 = vmul.f32 %v5161, %v5184
        %v5208 = vmul.f32 %v5162, %v5185
        %v5209 = vmul.f32 %v5163, %v5186
        %v5210 = vmul.f32 %v5164, %v5187
        %v5211 = vmul.f32 %v5165, %v5188
        %v5212 = vmul.f32 %v5166, %v5189
        %v5213 = vmul.f32 %v5167, %v5190
        %v5214 = vmul.f32 %v5168, %v5191
        %v5215 = vmul.f32 %v5169, %v5192
        %v5216 = vmul.f32 %v5170, %v5193
        %v5217 = vmul.f32 %v5171, %v5194
        %v5218 = vmul.f32 %v5172, %v5195
        %v5219 = vmul.f32 %v5173, %v5196
        %v5220 = vsel %vm4362, %v5197, 0.0
        %v5221 = vsel %vm4362, %v5198, 0.0
        %v5222 = vadd.f32 %v5220, %v5221
        %v5223 = vsel %vm4362, %v5199, 0.0
        %v5224 = vadd.f32 %v5222, %v5223
        %v5225 = vsel %vm4362, %v5200, 0.0
        %v5226 = vadd.f32 %v5224, %v5225
        %v5227 = vsel %vm4362, %v5201, 0.0
        %v5228 = vadd.f32 %v5226, %v5227
        %v5229 = vsel %vm4362, %v5202, 0.0
        %v5230 = vadd.f32 %v5228, %v5229
        %v5231 = vsel %vm4362, %v5203, 0.0
        %v5232 = vadd.f32 %v5230, %v5231
        %v5233 = vsel %vm4362, %v5204, 0.0
        %v5234 = vadd.f32 %v5232, %v5233
        %v5235 = vsel %vm4362, %v5205, 0.0
        %v5236 = vadd.f32 %v5234, %v5235
        %v5237 = vsel %vm4362, %v5206, 0.0
        %v5238 = vadd.f32 %v5236, %v5237
        %v5239 = vsel %vm4362, %v5207, 0.0
        %v5240 = vadd.f32 %v5238, %v5239
        %v5241 = vsel %vm4362, %v5208, 0.0
        %v5242 = vadd.f32 %v5240, %v5241
        %v5243 = vsel %vm4362, %v5209, 0.0
        %v5244 = vadd.f32 %v5242, %v5243
        %v5245 = vsel %vm4362, %v5210, 0.0
        %v5246 = vadd.f32 %v5244, %v5245
        %v5247 = vsel %vm4362, %v5211, 0.0
        %v5248 = vadd.f32 %v5246, %v5247
        %v5249 = vsel %vm4362, %v5212, 0.0
        %v5250 = vadd.f32 %v5248, %v5249
        %v5251 = vsel %vm4362, %v5213, 0.0
        %v5252 = vadd.f32 %v5250, %v5251
        %v5253 = vsel %vm4362, %v5214, 0.0
        %v5254 = vadd.f32 %v5252, %v5253
        %v5255 = vsel %vm4362, %v5215, 0.0
        %v5256 = vadd.f32 %v5254, %v5255
        %v5257 = vsel %vm4362, %v5216, 0.0
        %v5258 = vadd.f32 %v5256, %v5257
        %v5259 = vsel %vm4362, %v5217, 0.0
        %v5260 = vadd.f32 %v5258, %v5259
        %v5261 = vsel %vm4362, %v5218, 0.0
        %v5262 = vadd.f32 %v5260, %v5261
        %vm5263 = vcmask 520192
        %v5264 = vsel %vm5263, %v5219, 0.0
        %v5265 = vadd.f32 %v5262, %v5264
        %v5266 = vrot.slane %v5265, 4
        %v5267 = vadd.f32 %v5265, %v5266
        %v5268 = vrot.slane %v5267, 2
        %v5269 = vadd.f32 %v5267, %v5268
        %v5270 = vrot.slane %v5269, 1
        %v5271 = vadd.f32 %v5269, %v5270
        %v5272 = vsel %vm4362, %v5271, 0.0
        %5273 = vadd.xlane.f32.xlu0 %v5272
        %v5274 = vpop.xlane.xlu0 %5273
        %v5275 = vld [vmem:[%s6] sm:$0x1]
        %v5276 = vadd.f32 %v5274, %v5275
        %vm5277 = vcmask 0
        %5278 = vst.msk [vmem:[%s270] sm:$0x1] %vm5277, %v5276
        %s5279 = scalar_lea.vmem %s5, 184
        %v5280 = vld [vmem:[%s5279] sm:$0xff]
        %v5281 = vld [vmem:[%s5279 + $0x8] sm:$0xff]
        %v5282 = vld [vmem:[%s5279 + $0x10] sm:$0xff]
        %v5283 = vld [vmem:[%s5279 + $0x18] sm:$0xff]
        %v5284 = vld [vmem:[%s5279 + $0x20] sm:$0xff]
        %v5285 = vld [vmem:[%s5279 + $0x28] sm:$0xff]
        %v5286 = vld [vmem:[%s5279 + $0x30] sm:$0xff]
        %v5287 = vld [vmem:[%s5279 + $0x38] sm:$0xff]
        %v5288 = vld [vmem:[%s5279 + $0x40] sm:$0xff]
        %v5289 = vld [vmem:[%s5279 + $0x48] sm:$0xff]
        %v5290 = vld [vmem:[%s5279 + $0x50] sm:$0xff]
        %v5291 = vld [vmem:[%s5279 + $0x58] sm:$0xff]
        %v5292 = vld [vmem:[%s5279 + $0x60] sm:$0xff]
        %v5293 = vld [vmem:[%s5279 + $0x68] sm:$0xff]
        %v5294 = vld [vmem:[%s5279 + $0x70] sm:$0xff]
        %v5295 = vld [vmem:[%s5279 + $0x78] sm:$0xff]
        %v5296 = vld [vmem:[%s5279 + $0x80] sm:$0xff]
        %v5297 = vld [vmem:[%s5279 + $0x88] sm:$0xff]
        %v5298 = vld [vmem:[%s5279 + $0x90] sm:$0xff]
        %v5299 = vld [vmem:[%s5279 + $0x98] sm:$0xff]
        %v5300 = vld [vmem:[%s5279 + $0xa0] sm:$0xff]
        %v5301 = vld [vmem:[%s5279 + $0xa8] sm:$0xff]
        %v5302 = vld [vmem:[%s5279 + $0xb0] sm:$0x1f]
        %v5303 = vmul.f32 %v5151, %v5280
        %v5304 = vmul.f32 %v5152, %v5281
        %v5305 = vmul.f32 %v5153, %v5282
        %v5306 = vmul.f32 %v5154, %v5283
        %v5307 = vmul.f32 %v5155, %v5284
        %v5308 = vmul.f32 %v5156, %v5285
        %v5309 = vmul.f32 %v5157, %v5286
        %v5310 = vmul.f32 %v5158, %v5287
        %v5311 = vmul.f32 %v5159, %v5288
        %v5312 = vmul.f32 %v5160, %v5289
        %v5313 = vmul.f32 %v5161, %v5290
        %v5314 = vmul.f32 %v5162, %v5291
        %v5315 = vmul.f32 %v5163, %v5292
        %v5316 = vmul.f32 %v5164, %v5293
        %v5317 = vmul.f32 %v5165, %v5294
        %v5318 = vmul.f32 %v5166, %v5295
        %v5319 = vmul.f32 %v5167, %v5296
        %v5320 = vmul.f32 %v5168, %v5297
        %v5321 = vmul.f32 %v5169, %v5298
        %v5322 = vmul.f32 %v5170, %v5299
        %v5323 = vmul.f32 %v5171, %v5300
        %v5324 = vmul.f32 %v5172, %v5301
        %v5325 = vmul.f32 %v5173, %v5302
        %v5326 = vsel %vm4362, %v5303, 0.0
        %v5327 = vsel %vm4362, %v5304, 0.0
        %v5328 = vadd.f32 %v5326, %v5327
        %v5329 = vsel %vm4362, %v5305, 0.0
        %v5330 = vadd.f32 %v5328, %v5329
        %v5331 = vsel %vm4362, %v5306, 0.0
        %v5332 = vadd.f32 %v5330, %v5331
        %v5333 = vsel %vm4362, %v5307, 0.0
        %v5334 = vadd.f32 %v5332, %v5333
        %v5335 = vsel %vm4362, %v5308, 0.0
        %v5336 = vadd.f32 %v5334, %v5335
        %v5337 = vsel %vm4362, %v5309, 0.0
        %v5338 = vadd.f32 %v5336, %v5337
        %v5339 = vsel %vm4362, %v5310, 0.0
        %v5340 = vadd.f32 %v5338, %v5339
        %v5341 = vsel %vm4362, %v5311, 0.0
        %v5342 = vadd.f32 %v5340, %v5341
        %v5343 = vsel %vm4362, %v5312, 0.0
        %v5344 = vadd.f32 %v5342, %v5343
        %v5345 = vsel %vm4362, %v5313, 0.0
        %v5346 = vadd.f32 %v5344, %v5345
        %v5347 = vsel %vm4362, %v5314, 0.0
        %v5348 = vadd.f32 %v5346, %v5347
        %v5349 = vsel %vm4362, %v5315, 0.0
        %v5350 = vadd.f32 %v5348, %v5349
        %v5351 = vsel %vm4362, %v5316, 0.0
        %v5352 = vadd.f32 %v5350, %v5351
        %v5353 = vsel %vm4362, %v5317, 0.0
        %v5354 = vadd.f32 %v5352, %v5353
        %v5355 = vsel %vm4362, %v5318, 0.0
        %v5356 = vadd.f32 %v5354, %v5355
        %v5357 = vsel %vm4362, %v5319, 0.0
        %v5358 = vadd.f32 %v5356, %v5357
        %v5359 = vsel %vm4362, %v5320, 0.0
        %v5360 = vadd.f32 %v5358, %v5359
        %v5361 = vsel %vm4362, %v5321, 0.0
        %v5362 = vadd.f32 %v5360, %v5361
        %v5363 = vsel %vm4362, %v5322, 0.0
        %v5364 = vadd.f32 %v5362, %v5363
        %v5365 = vsel %vm4362, %v5323, 0.0
        %v5366 = vadd.f32 %v5364, %v5365
        %v5367 = vsel %vm4362, %v5324, 0.0
        %v5368 = vadd.f32 %v5366, %v5367
        %v5369 = vsel %vm5263, %v5325, 0.0
        %v5370 = vadd.f32 %v5368, %v5369
        %v5371 = vrot.slane %v5370, 4
        %v5372 = vadd.f32 %v5370, %v5371
        %v5373 = vrot.slane %v5372, 2
        %v5374 = vadd.f32 %v5372, %v5373
        %v5375 = vrot.slane %v5374, 1
        %v5376 = vadd.f32 %v5374, %v5375
        %v5377 = vsel %vm4362, %v5376, 0.0
        %5378 = vadd.xlane.f32.xlu0 %v5377
        %v5379 = vpop.xlane.xlu0 %5378
        %v5380 = vld [vmem:[%s6] sm:$0x1]
        %v5381 = vadd.f32 %v5379, %v5380
        %vm5382 = vcmask 8200
        %5383 = vst.msk [vmem:[%s270] sm:$0x1] %vm5382, %v5381
        %s5384 = sand.u32 %s181, 1
        %s5385 = scalar_lea.sflag [#allocation5], %s5384
        %s5386 = sand.u32 %s181, 1
        %s5387 = scalar_lea.vmem [#allocation4], %s5386
        // Predicated region
        $region49: #{model_forward.1} parent=47 // pred_check
          %p5388 = pneg %p191
        $region50: #{model_forward.1} parent=47 // pred_check_branch
          %5390 = sbr.rel (%p5388) target = $region52
        $region51: #{model_forward.1} parent=47 // pred_region
          %s5392 = ssub.s32 16, 16
          %5393 = vsyncadd %s5385, %s5392
          %s5394 = smul.addr %s21, 16
          %s5395 = scalar_lea.hbm %s7, %s5394
          %s5397 = sshll.u32 %s5387, 4
          %s5398 = int_to_ptr.vmem [resolvable:$true] %s5397
          %5400 = dma.vmem_to_hbm [thread:$0]  %s5398, 16, %s5395, %s5385
        $region52: #{model_forward.1} parent=47 // pred_fallthru
          _
      $region48: #{model_forward.1} parent=5 // pred_fallthru
        _
      %p5401 = scmp.le.s32.totalorder 2, %s16
      // Predicated region
      $region53: #{model_forward.1} parent=5 // pred_check
        %p5402 = pneg %p5401
      $region54: #{model_forward.1} parent=5 // pred_check_branch
        %5404 = sbr.rel (%p5402) target = $region56
      $region55: #{model_forward.1} parent=5 // pred_region
        %s5405 = ssub.s32 %s16, 2
        // Predicated region
        $region57: #{model_forward.1} parent=55 // pred_check
          %p5406 = pneg %p197
        $region58: #{model_forward.1} parent=55 // pred_check_branch
          %5408 = sbr.rel (%p5406) target = $region60
        $region59: #{model_forward.1} parent=55 // pred_region
          %s5409 = sand.u32 %s182, 1
          %s5410 = scalar_lea.sflag [#allocation5], %s5409
          %s5411 = sand.u32 %s182, 1
          %s5412 = scalar_lea.vmem [#allocation4], %s5411
          %5413 = dma.done %s5410, 16
        $region60: #{model_forward.1} parent=55 // pred_fallthru
          _
      $region56: #{model_forward.1} parent=5 // pred_fallthru
        _
    $region6: #{model_forward.1} parent=1 // loop_footer
      %s20 = sadd.s32 1, %s16
    $region7: #{model_forward.1} parent=1 // loop_footer_branch
      %15 = sbr.rel target = $region3
    $region8: #{model_forward.1} parent=1 // loop_exit
      _
    %5414 = vsyncpa [#allocation5], 1
    %s5415 = scalar_lea.sflag [#allocation5], 1
    %5416 = vsyncpa %s5415, 1

</llo_original>
